<compile_context>
chip_gen: v5e
topology: v5e:2x2
jax: 0.10.0
libtpu: 0.0.40
codegen_flags: <defaults>
</compile_context>

<pallas_src>
import functools

import jax
import jax.numpy as jnp
from jax import lax
from jax.experimental import pallas as pl
from jax.experimental.pallas import tpu as pltpu


def _round_up(x, m):
    return (x + m - 1) // m * m


# ----------------------------------------------------------------------------
# Fused double-conv kernel (NHWC, channels padded to 128, row pitch Wp % 16).
# One grid step = one batch element x one row strip (with 6-row halo).
# ----------------------------------------------------------------------------
def _fused_double_conv_kernel(x1_ref, x2_ref, m_ref, w1a_ref, w1b_ref, w2_ref,
                              b1_ref, b2_ref, o_ref):
    # x1_ref : (1, SR+6, Wp, C1p) bf16  zero-padded slab of inputs1
    # x2_ref : (1, SR+6, Wp, C2p) bf16  zero-padded slab of upsampled inputs2
    # m_ref  : (1, (SR+3)*Wp, 1)  f32   validity mask for conv1's output
    # w*_ref : (3, 3*Cin_p, Coutp) bf16 ky-major, lanes = kx-major-then-cin,
    #                                   BN scale already folded in
    # b*_ref : (1, Coutp)          f32  folded BN bias
    # o_ref  : (1, SR, Wp, Coutp)  bf16 (valid cols 0..W-1)
    SR = o_ref.shape[1]
    Wp = o_ref.shape[2]
    Cout = o_ref.shape[3]
    R = x1_ref.shape[1]          # SR + 6
    M1 = (SR + 3) * Wp           # conv1 rows (incl. top/bottom halo rows)
    M2 = SR * Wp                 # conv2 (output) rows

    def conv3x3(xf, w_ref, m, acc=None):
        """3x3 'same' conv on a flattened zero-padded image.

        xf: (rows*Wp, C) bf16.  Tap (ky, kx) of output position p is
        xf[p + ky*Wp + kx].  The three kx taps are packed along lanes once
        (two sublane-misaligned shifts total), then each ky is one MXU matmul
        with K = 3*C taken from a Wp-aligned (sublane-aligned) row slice.
        """
        mfull = m + 2 * Wp
        xcat = jnp.concatenate(
            [xf[0:mfull, :], xf[1:mfull + 1, :], xf[2:mfull + 2, :]], axis=-1)
        for ky in range(3):
            d = jnp.dot(xcat[ky * Wp:ky * Wp + m, :], w_ref[ky],
                        preferred_element_type=jnp.float32)
            acc = d if acc is None else acc + d
        return acc

    xf1a = x1_ref[0].reshape(R * Wp, x1_ref.shape[3])   # layout-preserving
    xf1b = x2_ref[0].reshape(R * Wp, x2_ref.shape[3])

    # conv1 (split-K over the two concat halves) + bias + ReLU (f32 epilogue)
    y1 = conv3x3(xf1b, w1b_ref, M1, acc=conv3x3(xf1a, w1a_ref, M1))
    y1 = jnp.maximum(y1 + b1_ref[...], 0.0)

    # Zero out everything outside the valid region (precomputed mask) so y1
    # doubles as conv2's zero-padded input.
    xf2 = (y1 * m_ref[0]).astype(jnp.bfloat16)

    # conv2 + bias + ReLU
    y2 = conv3x3(xf2, w2_ref, M2)
    y2 = jnp.maximum(y2 + b2_ref[...], 0.0)
    o_ref[...] = y2.reshape(1, SR, Wp, Cout).astype(o_ref.dtype)


# ----------------------------------------------------------------------------
# VMEM budgeting / strip selection.
# ----------------------------------------------------------------------------
def _vmem_capacity_bytes():
    try:
        return int(pltpu.get_tpu_info().vmem_capacity_bytes)
    except Exception:
        return 64 << 20          # conservative (v7x per-TC capacity)


def _vmem_estimate(SR, Wp, C1p, C2p, Coutp):
    M1 = (SR + 3) * Wp
    Mfull = M1 + 2 * Wp
    in_blk = (SR + 6) * Wp * (C1p + C2p) * 2          # bf16, per buffer
    out_blk = SR * Wp * Coutp * 2                      # bf16, per buffer
    mask_blk = M1 * 128 * 4                            # lane-padded f32
    w_bytes = 3 * 3 * (C1p + C2p + Coutp) * Coutp * 2 + 2 * Coutp * 4
    inter = (Mfull * 3 * (C1p + C2p) * 2               # conv1 xcat copies
             + Mfull * 3 * Coutp * 2                   # conv2 xcat copy
             + M1 * Coutp * 4                          # conv1 acc / y1 (f32)
             + M1 * Coutp * 2                          # xf2 (bf16)
             + SR * Wp * Coutp * 4)                    # conv2 acc (f32)
    return 2 * (in_blk + out_blk + mask_blk) + 2 * w_bytes + inter + (6 << 20)


def _pick_strip_rows(H, Wp, C1p, C2p, Coutp, cap, target=64):
    budget = int(0.7 * cap)
    divisors = [d for d in range(1, min(H, target) + 1) if H % d == 0]
    fitting = [d for d in divisors
               if _vmem_estimate(d, Wp, C1p, C2p, Coutp) <= budget]
    return (fitting or divisors)[-1]


# ----------------------------------------------------------------------------
# Wrapper: padding, H-halo strip construction, weight/BN folding, pallas_call.
# ----------------------------------------------------------------------------
def fused_double_conv(x1_nhwc, x2_nhwc, w1_hwio, s1, b1, w2_hwio, s2, b2,
                      strip_rows=None):
    """x1: (N,H,W,C1), x2: (N,H,W,C2) (already upsampled/padded), w1:
    (3,3,C1+C2,Cout), w2: (3,3,Cout,Cout), s*/b*: folded BN scale/bias.
    Returns (N,H,W,Cout) bf16."""
    N, H, W, C1 = x1_nhwc.shape
    C2 = x2_nhwc.shape[-1]
    Cout = w1_hwio.shape[-1]
    assert w1_hwio.shape[2] == C1 + C2

    LANE = 128
    C1p, C2p, Coutp = (_round_up(c, LANE) for c in (C1, C2, Cout))
    Wp = _round_up(W + 3, 16)           # left pad 2 + W + right pad, bf16-tiled

    cap = _vmem_capacity_bytes()
    if strip_rows is None:
        strip_rows = _pick_strip_rows(H, Wp, C1p, C2p, Coutp, cap)
    SR = int(strip_rows)
    if H % SR != 0:
        raise ValueError(f"strip_rows={SR} must divide H={H}")
    S = H // SR
    M1 = (SR + 3) * Wp

    def pad_and_strip(x, c, cp):
        # rows: data at offset 2 (top 2, bottom 4 keeps every flat tap slice
        # in bounds); cols: data at offset 2; channels: lane pad.
        xp = jnp.pad(x, ((0, 0), (2, 4), (2, Wp - W - 2), (0, cp - c)))
        xp = xp.astype(jnp.bfloat16)
        # H-halo strips: strip s covers padded rows [s*SR, s*SR + SR + 6).
        xs = jnp.stack([xp[:, s * SR:s * SR + SR + 6] for s in range(S)],
                       axis=1)
        return xs.reshape(N * S, SR + 6, Wp, cp)

    x1s = pad_and_strip(x1_nhwc, C1, C1p)
    x2s = pad_and_strip(x2_nhwc, C2, C2p)

    def pad_w(w, scale, cin, cinp):
        # Fold BN scale into output channels; pad; lanes = kx-major-then-cin.
        w = w * scale[None, None, None, :]
        w = jnp.pad(w, ((0, 0), (0, 0), (0, cinp - cin), (0, Coutp - Cout)))
        return w.reshape(3, 3 * cinp, Coutp).astype(jnp.bfloat16)

    w1a = pad_w(w1_hwio[:, :, :C1, :], s1, C1, C1p)
    w1b = pad_w(w1_hwio[:, :, C1:, :], s1, C2, C2p)
    w2p = pad_w(w2_hwio, s2, Cout, Coutp)
    b1p = jnp.pad(b1, (0, Coutp - Cout)).reshape(1, Coutp).astype(jnp.float32)
    b2p = jnp.pad(b2, (0, Coutp - Cout)).reshape(1, Coutp).astype(jnp.float32)

    # Static validity mask for conv1's output: local row q of strip s holds
    # conv1 output row (s*SR + q - 1); cols 1..W hold conv1 output cols 0..W-1.
    q = jnp.arange(SR + 3)
    grow = jnp.arange(S)[:, None] * SR + q[None, :] - 1
    row_ok = (grow >= 0) & (grow < H)
    col = jnp.arange(Wp)
    col_ok = (col >= 1) & (col <= W)
    mask = (row_ok[:, :, None] & col_ok[None, None, :]).astype(jnp.float32)
    mask = mask.reshape(S, M1, 1)

    vmem_limit = int(min(max(_vmem_estimate(SR, Wp, C1p, C2p, Coutp), 32 << 20),
                         int(0.9 * cap)))

    out = pl.pallas_call(
        _fused_double_conv_kernel,
        out_shape=jax.ShapeDtypeStruct((N * S, SR, Wp, Coutp), jnp.bfloat16),
        grid_spec=pltpu.PrefetchScalarGridSpec(
            num_scalar_prefetch=0,
            grid=(N, S),
            in_specs=[
                pl.BlockSpec((1, SR + 6, Wp, C1p),
                             lambda n, s: (n * S + s, 0, 0, 0)),
                pl.BlockSpec((1, SR + 6, Wp, C2p),
                             lambda n, s: (n * S + s, 0, 0, 0)),
                pl.BlockSpec((1, M1, 1), lambda n, s: (s, 0, 0)),
                pl.BlockSpec((3, 3 * C1p, Coutp), lambda n, s: (0, 0, 0)),
                pl.BlockSpec((3, 3 * C2p, Coutp), lambda n, s: (0, 0, 0)),
                pl.BlockSpec((3, 3 * Coutp, Coutp), lambda n, s: (0, 0, 0)),
                pl.BlockSpec((1, Coutp), lambda n, s: (0, 0)),
                pl.BlockSpec((1, Coutp), lambda n, s: (0, 0)),
            ],
            out_specs=pl.BlockSpec((1, SR, Wp, Coutp),
                                   lambda n, s: (n * S + s, 0, 0, 0)),
        ),
        compiler_params=pltpu.CompilerParams(
            dimension_semantics=("parallel", "parallel"),
            vmem_limit_bytes=vmem_limit),
    )(x1s, x2s, mask, w1a, w1b, w2p, b1p, b2p)

    return out.reshape(N, H, Wp, Coutp)[:, :, :W, :Cout]


# ----------------------------------------------------------------------------
# Glue (plain JAX): gather-free bilinear 2x upsample (align_corners=True),
# centering pad, BN folding, parameter construction.
# ----------------------------------------------------------------------------
def _interp_matrix(out_sz, in_sz):
    if in_sz == 1:
        return jnp.ones((out_sz, 1), jnp.float32)
    src = jnp.arange(out_sz, dtype=jnp.float32) * ((in_sz - 1) / (out_sz - 1))
    cols = jnp.arange(in_sz, dtype=jnp.float32)
    return jnp.maximum(1.0 - jnp.abs(cols[None, :] - src[:, None]), 0.0)


def upsample_bilinear_2x_align_corners(x_nchw):
    """nn.UpsamplingBilinear2d(scale_factor=2) as two small dense matmuls."""
    _, _, H, W = x_nchw.shape
    ah = _interp_matrix(2 * H, H)
    aw = _interp_matrix(2 * W, W)
    y = jnp.einsum("oh,nchw->ncow", ah, x_nchw)
    return jnp.einsum("pw,ncow->ncop", aw, y)


def fold_bn(conv_bias, gamma, beta, running_mean, running_var, eps=1e-5):
    scale = gamma / jnp.sqrt(running_var + eps)
    bias = (conv_bias - running_mean) * scale + beta
    return scale, bias


def init_unet_up_params(key, in_channels, out_channels):
    ks = jax.random.split(key, 10)

    def conv_init(kw, kb, cin, cout):
        fan_in = cin * 3 * 3
        bound = 1.0 / jnp.sqrt(fan_in)
        w = jax.random.uniform(kw, (cout, cin, 3, 3), jnp.float32, -bound, bound)
        b = jax.random.uniform(kb, (cout,), jnp.float32, -bound, bound)
        return w, b

    w1, b1 = conv_init(ks[0], ks[1], in_channels, out_channels)
    w2, b2 = conv_init(ks[2], ks[3], out_channels, out_channels)
    bn1 = dict(gamma=1.0 + 0.1 * jax.random.normal(ks[4], (out_channels,)),
               beta=0.1 * jax.random.normal(ks[5], (out_channels,)),
               mean=0.05 * jax.random.normal(ks[6], (out_channels,)),
               var=jnp.abs(1.0 + 0.1 * jax.random.normal(ks[7], (out_channels,))))
    bn2 = dict(gamma=1.0 + 0.1 * jax.random.normal(ks[8], (out_channels,)),
               beta=0.1 * jax.random.normal(ks[9], (out_channels,)),
               mean=jnp.zeros((out_channels,)),
               var=jnp.ones((out_channels,)))
    return dict(w1=w1, b1=b1, bn1=bn1, w2=w2, b2=b2, bn2=bn2)


def unet_up_forward(params, inputs1_nchw, inputs2_nchw, strip_rows=None):
    """Mirrors unetUp.forward (eval-mode BN).  NCHW in / NCHW out."""
    up2 = upsample_bilinear_2x_align_corners(inputs2_nchw)
    diff_y = inputs1_nchw.shape[2] - up2.shape[2]
    diff_x = inputs1_nchw.shape[3] - up2.shape[3]
    up2 = jnp.pad(up2, ((0, 0), (0, 0),
                        (diff_y // 2, diff_y - diff_y // 2),
                        (diff_x // 2, diff_x - diff_x // 2)))

    # inputs1 / up2 stay separate (split-K conv1 in the kernel; no HBM concat).
    # TODO(synk): keep NHWC end-to-end across UNet stages so these transposes
    # (and the half-res upsample) fold into the kernel instead of extra HBM
    # passes.
    x1 = jnp.transpose(inputs1_nchw, (0, 2, 3, 1))
    x2 = jnp.transpose(up2, (0, 2, 3, 1))

    w1 = jnp.transpose(params["w1"], (2, 3, 1, 0))     # OIHW -> HWIO
    w2 = jnp.transpose(params["w2"], (2, 3, 1, 0))
    s1, bb1 = fold_bn(params["b1"], params["bn1"]["gamma"], params["bn1"]["beta"],
                      params["bn1"]["mean"], params["bn1"]["var"])
    s2, bb2 = fold_bn(params["b2"], params["bn2"]["gamma"], params["bn2"]["beta"],
                      params["bn2"]["mean"], params["bn2"]["var"])

    out_nhwc = fused_double_conv(x1, x2, w1, s1, bb1, w2, s2, bb2,
                                 strip_rows=strip_rows)
    return jnp.transpose(out_nhwc, (0, 3, 1, 2)).astype(jnp.float32)


# ----------------------------------------------------------------------------
# Pure-JAX reference (eval-mode BN, matching bf16 matmul quantization points).
# ----------------------------------------------------------------------------
def _ref_conv_bn_relu_nchw(x, w_oihw, conv_b, bn):
    y = lax.conv_general_dilated(
        x.astype(jnp.bfloat16), w_oihw.astype(jnp.bfloat16),
        window_strides=(1, 1), padding=((1, 1), (1, 1)),
        dimension_numbers=("NCHW", "OIHW", "NCHW"),
        preferred_element_type=jnp.float32)
    y = y + conv_b[None, :, None, None]
    s = bn["gamma"] / jnp.sqrt(bn["var"] + 1e-5)
    y = (y - bn["mean"][None, :, None, None]) * s[None, :, None, None] \
        + bn["beta"][None, :, None, None]
    return jnp.maximum(y, 0.0)


def unet_up_reference(params, inputs1, inputs2):
    i2 = upsample_bilinear_2x_align_corners(inputs2)
    dy = inputs1.shape[2] - i2.shape[2]
    dx = inputs1.shape[3] - i2.shape[3]
    i2 = jnp.pad(i2, ((0, 0), (0, 0), (dy // 2, dy - dy // 2),
                      (dx // 2, dx - dx // 2)))
    x = jnp.concatenate([inputs1, i2], axis=1)
    h = _ref_conv_bn_relu_nchw(x, params["w1"], params["b1"], params["bn1"])
    return _ref_conv_bn_relu_nchw(h, params["w2"], params["b2"], params["bn2"])


if __name__ == "__main__":
    key = jax.random.PRNGKey(0)
    k1, k2, kp = jax.random.split(key, 3)

    # inputs1: skip connection (full res); inputs2: from below (half res).
    N, C1, H, W = 2, 4, 16, 16
    C2 = 4
    in_channels = C1 + C2
    out_channels = 4

    inputs1 = jax.random.normal(k1, (N, C1, H, W), jnp.float32)
    inputs2 = jax.random.normal(k2, (N, C2, H // 2, W // 2), jnp.float32)
    params = init_unet_up_params(kp, in_channels, out_channels)

    # strip_rows=8 -> 2 row strips per image, exercising the H-halo tiling.
    fwd = jax.jit(functools.partial(unet_up_forward, params, strip_rows=8))
    out = jax.block_until_ready(fwd(inputs1, inputs2))

    ref = unet_up_reference(params, inputs1, inputs2)
    assert out.shape == (N, out_channels, H, W), out.shape
    err = float(jnp.max(jnp.abs(out - ref)))
    assert jnp.allclose(out, ref, atol=2e-2, rtol=2e-2), err

    print("KERNEL_OK")
</pallas_src>

<mosaic_0001>
module attributes {stable_mosaic.version = 11 : i64} {
  func.func @_fused_double_conv_kernel(%arg0: i32, %arg1: i32, %arg2: memref<1x14x32x128xbf16, #tpu.memory_space<vmem>>, %arg3: memref<1x14x32x128xbf16, #tpu.memory_space<vmem>>, %arg4: memref<1x352x1xf32, #tpu.memory_space<vmem>>, %arg5: memref<3x384x128xbf16, #tpu.memory_space<vmem>>, %arg6: memref<3x384x128xbf16, #tpu.memory_space<vmem>>, %arg7: memref<3x384x128xbf16, #tpu.memory_space<vmem>>, %arg8: memref<1x128xf32, #tpu.memory_space<vmem>>, %arg9: memref<1x128xf32, #tpu.memory_space<vmem>>, %arg10: memref<1x8x32x128xbf16, #tpu.memory_space<vmem>>) attributes {dimension_semantics = [#tpu.dimension_semantics<parallel>, #tpu.dimension_semantics<parallel>], iteration_bounds = array<i64: 2, 2>, scalar_prefetch = 0 : i64, scratch_operands = 0 : i64, tpu.core_type = #tpu.core_type<tc>, window_params = [{transform_indices = @transform_0, window_bounds = array<i64: 1, 14, 32, 128>}, {transform_indices = @transform_1, window_bounds = array<i64: 1, 14, 32, 128>}, {transform_indices = @transform_2, window_bounds = array<i64: 1, 352, 1>}, {pipeline_mode = #tpu.pipeline_mode<synchronous>, transform_indices = @transform_3, window_bounds = array<i64: 3, 384, 128>}, {pipeline_mode = #tpu.pipeline_mode<synchronous>, transform_indices = @transform_4, window_bounds = array<i64: 3, 384, 128>}, {pipeline_mode = #tpu.pipeline_mode<synchronous>, transform_indices = @transform_5, window_bounds = array<i64: 3, 384, 128>}, {pipeline_mode = #tpu.pipeline_mode<synchronous>, transform_indices = @transform_6, window_bounds = array<i64: 1, 128>}, {pipeline_mode = #tpu.pipeline_mode<synchronous>, transform_indices = @transform_7, window_bounds = array<i64: 1, 128>}, {transform_indices = @transform_8, window_bounds = array<i64: 1, 8, 32, 128>}]} {
    %c0 = arith.constant 0 : index
    %c0_0 = arith.constant 0 : index
    %c0_1 = arith.constant 0 : index
    %c0_2 = arith.constant 0 : index
    %0 = vector.load %arg2[%c0, %c0_0, %c0_1, %c0_2] : memref<1x14x32x128xbf16, #tpu.memory_space<vmem>>, vector<1x14x32x128xbf16>
    %1 = vector.shape_cast %0 : vector<1x14x32x128xbf16> to vector<14x32x128xbf16>
    %2 = vector.shape_cast %1 : vector<14x32x128xbf16> to vector<448x128xbf16>
    %c0_3 = arith.constant 0 : index
    %c0_4 = arith.constant 0 : index
    %c0_5 = arith.constant 0 : index
    %c0_6 = arith.constant 0 : index
    %3 = vector.load %arg3[%c0_3, %c0_4, %c0_5, %c0_6] : memref<1x14x32x128xbf16, #tpu.memory_space<vmem>>, vector<1x14x32x128xbf16>
    %4 = vector.shape_cast %3 : vector<1x14x32x128xbf16> to vector<14x32x128xbf16>
    %5 = vector.shape_cast %4 : vector<14x32x128xbf16> to vector<448x128xbf16>
    %6 = vector.extract_strided_slice %2 {offsets = [0, 0], sizes = [416, 128], strides = [1, 1]} : vector<448x128xbf16> to vector<416x128xbf16>
    %7 = vector.extract_strided_slice %2 {offsets = [1, 0], sizes = [416, 128], strides = [1, 1]} : vector<448x128xbf16> to vector<416x128xbf16>
    %8 = vector.extract_strided_slice %2 {offsets = [2, 0], sizes = [416, 128], strides = [1, 1]} : vector<448x128xbf16> to vector<416x128xbf16>
    %9 = tpu.concatenate %6, %7, %8 in 1 : vector<416x128xbf16>, vector<416x128xbf16>, vector<416x128xbf16> -> vector<416x384xbf16>
    %10 = vector.extract_strided_slice %9 {offsets = [0, 0], sizes = [352, 384], strides = [1, 1]} : vector<416x384xbf16> to vector<352x384xbf16>
    %c0_7 = arith.constant 0 : index
    %c0_8 = arith.constant 0 : index
    %c0_9 = arith.constant 0 : index
    %11 = vector.load %arg5[%c0_7, %c0_8, %c0_9] : memref<3x384x128xbf16, #tpu.memory_space<vmem>>, vector<1x384x128xbf16>
    %12 = vector.shape_cast %11 : vector<1x384x128xbf16> to vector<384x128xbf16>
    %cst = arith.constant dense<0.000000e+00> : vector<352x128xf32>
    %13 = tpu.matmul %10, %12, %cst {dimension_numbers = #tpu.dot_dimension_numbers<[1], [0], [0], [1], [0, 0, 1, 1], [], []>} : vector<352x384xbf16>, vector<384x128xbf16>, vector<352x128xf32> -> vector<352x128xf32>
    %14 = vector.extract_strided_slice %9 {offsets = [32, 0], sizes = [352, 384], strides = [1, 1]} : vector<416x384xbf16> to vector<352x384xbf16>
    %c1 = arith.constant 1 : index
    %c0_10 = arith.constant 0 : index
    %c0_11 = arith.constant 0 : index
    %15 = vector.load %arg5[%c1, %c0_10, %c0_11] : memref<3x384x128xbf16, #tpu.memory_space<vmem>>, vector<1x384x128xbf16>
    %16 = vector.shape_cast %15 : vector<1x384x128xbf16> to vector<384x128xbf16>
    %cst_12 = arith.constant dense<0.000000e+00> : vector<352x128xf32>
    %17 = tpu.matmul %14, %16, %cst_12 {dimension_numbers = #tpu.dot_dimension_numbers<[1], [0], [0], [1], [0, 0, 1, 1], [], []>} : vector<352x384xbf16>, vector<384x128xbf16>, vector<352x128xf32> -> vector<352x128xf32>
    %18 = arith.addf %13, %17 : vector<352x128xf32>
    %19 = vector.extract_strided_slice %9 {offsets = [64, 0], sizes = [352, 384], strides = [1, 1]} : vector<416x384xbf16> to vector<352x384xbf16>
    %c2 = arith.constant 2 : index
    %c0_13 = arith.constant 0 : index
    %c0_14 = arith.constant 0 : index
    %20 = vector.load %arg5[%c2, %c0_13, %c0_14] : memref<3x384x128xbf16, #tpu.memory_space<vmem>>, vector<1x384x128xbf16>
    %21 = vector.shape_cast %20 : vector<1x384x128xbf16> to vector<384x128xbf16>
    %cst_15 = arith.constant dense<0.000000e+00> : vector<352x128xf32>
    %22 = tpu.matmul %19, %21, %cst_15 {dimension_numbers = #tpu.dot_dimension_numbers<[1], [0], [0], [1], [0, 0, 1, 1], [], []>} : vector<352x384xbf16>, vector<384x128xbf16>, vector<352x128xf32> -> vector<352x128xf32>
    %23 = arith.addf %18, %22 : vector<352x128xf32>
    %24 = vector.extract_strided_slice %5 {offsets = [0, 0], sizes = [416, 128], strides = [1, 1]} : vector<448x128xbf16> to vector<416x128xbf16>
    %25 = vector.extract_strided_slice %5 {offsets = [1, 0], sizes = [416, 128], strides = [1, 1]} : vector<448x128xbf16> to vector<416x128xbf16>
    %26 = vector.extract_strided_slice %5 {offsets = [2, 0], sizes = [416, 128], strides = [1, 1]} : vector<448x128xbf16> to vector<416x128xbf16>
    %27 = tpu.concatenate %24, %25, %26 in 1 : vector<416x128xbf16>, vector<416x128xbf16>, vector<416x128xbf16> -> vector<416x384xbf16>
    %28 = vector.extract_strided_slice %27 {offsets = [0, 0], sizes = [352, 384], strides = [1, 1]} : vector<416x384xbf16> to vector<352x384xbf16>
    %c0_16 = arith.constant 0 : index
    %c0_17 = arith.constant 0 : index
    %c0_18 = arith.constant 0 : index
    %29 = vector.load %arg6[%c0_16, %c0_17, %c0_18] : memref<3x384x128xbf16, #tpu.memory_space<vmem>>, vector<1x384x128xbf16>
    %30 = vector.shape_cast %29 : vector<1x384x128xbf16> to vector<384x128xbf16>
    %cst_19 = arith.constant dense<0.000000e+00> : vector<352x128xf32>
    %31 = tpu.matmul %28, %30, %cst_19 {dimension_numbers = #tpu.dot_dimension_numbers<[1], [0], [0], [1], [0, 0, 1, 1], [], []>} : vector<352x384xbf16>, vector<384x128xbf16>, vector<352x128xf32> -> vector<352x128xf32>
    %32 = arith.addf %23, %31 : vector<352x128xf32>
    %33 = vector.extract_strided_slice %27 {offsets = [32, 0], sizes = [352, 384], strides = [1, 1]} : vector<416x384xbf16> to vector<352x384xbf16>
    %c1_20 = arith.constant 1 : index
    %c0_21 = arith.constant 0 : index
    %c0_22 = arith.constant 0 : index
    %34 = vector.load %arg6[%c1_20, %c0_21, %c0_22] : memref<3x384x128xbf16, #tpu.memory_space<vmem>>, vector<1x384x128xbf16>
    %35 = vector.shape_cast %34 : vector<1x384x128xbf16> to vector<384x128xbf16>
    %cst_23 = arith.constant dense<0.000000e+00> : vector<352x128xf32>
    %36 = tpu.matmul %33, %35, %cst_23 {dimension_numbers = #tpu.dot_dimension_numbers<[1], [0], [0], [1], [0, 0, 1, 1], [], []>} : vector<352x384xbf16>, vector<384x128xbf16>, vector<352x128xf32> -> vector<352x128xf32>
    %37 = arith.addf %32, %36 : vector<352x128xf32>
    %38 = vector.extract_strided_slice %27 {offsets = [64, 0], sizes = [352, 384], strides = [1, 1]} : vector<416x384xbf16> to vector<352x384xbf16>
    %c2_24 = arith.constant 2 : index
    %c0_25 = arith.constant 0 : index
    %c0_26 = arith.constant 0 : index
    %39 = vector.load %arg6[%c2_24, %c0_25, %c0_26] : memref<3x384x128xbf16, #tpu.memory_space<vmem>>, vector<1x384x128xbf16>
    %40 = vector.shape_cast %39 : vector<1x384x128xbf16> to vector<384x128xbf16>
    %cst_27 = arith.constant dense<0.000000e+00> : vector<352x128xf32>
    %41 = tpu.matmul %38, %40, %cst_27 {dimension_numbers = #tpu.dot_dimension_numbers<[1], [0], [0], [1], [0, 0, 1, 1], [], []>} : vector<352x384xbf16>, vector<384x128xbf16>, vector<352x128xf32> -> vector<352x128xf32>
    %42 = arith.addf %37, %41 : vector<352x128xf32>
    %c0_28 = arith.constant 0 : index
    %c0_29 = arith.constant 0 : index
    %43 = vector.load %arg8[%c0_28, %c0_29] : memref<1x128xf32, #tpu.memory_space<vmem>>, vector<1x128xf32>
    %44 = vector.broadcast %43 : vector<1x128xf32> to vector<352x128xf32>
    %45 = arith.addf %42, %44 : vector<352x128xf32>
    %cst_30 = arith.constant 0.000000e+00 : f32
    %46 = vector.broadcast %cst_30 : f32 to vector<352x128xf32>
    %47 = arith.maximumf %45, %46 : vector<352x128xf32>
    %c0_31 = arith.constant 0 : index
    %c0_32 = arith.constant 0 : index
    %c0_33 = arith.constant 0 : index
    %48 = vector.load %arg4[%c0_31, %c0_32, %c0_33] : memref<1x352x1xf32, #tpu.memory_space<vmem>>, vector<1x352x1xf32>
    %49 = vector.shape_cast %48 : vector<1x352x1xf32> to vector<352x1xf32>
    %50 = vector.broadcast %49 : vector<352x1xf32> to vector<352x128xf32>
    %51 = arith.mulf %47, %50 : vector<352x128xf32>
    %52 = arith.truncf %51 : vector<352x128xf32> to vector<352x128xbf16>
    %53 = vector.extract_strided_slice %52 {offsets = [0, 0], sizes = [320, 128], strides = [1, 1]} : vector<352x128xbf16> to vector<320x128xbf16>
    %54 = vector.extract_strided_slice %52 {offsets = [1, 0], sizes = [320, 128], strides = [1, 1]} : vector<352x128xbf16> to vector<320x128xbf16>
    %55 = vector.extract_strided_slice %52 {offsets = [2, 0], sizes = [320, 128], strides = [1, 1]} : vector<352x128xbf16> to vector<320x128xbf16>
    %56 = tpu.concatenate %53, %54, %55 in 1 : vector<320x128xbf16>, vector<320x128xbf16>, vector<320x128xbf16> -> vector<320x384xbf16>
    %57 = vector.extract_strided_slice %56 {offsets = [0, 0], sizes = [256, 384], strides = [1, 1]} : vector<320x384xbf16> to vector<256x384xbf16>
    %c0_34 = arith.constant 0 : index
    %c0_35 = arith.constant 0 : index
    %c0_36 = arith.constant 0 : index
    %58 = vector.load %arg7[%c0_34, %c0_35, %c0_36] : memref<3x384x128xbf16, #tpu.memory_space<vmem>>, vector<1x384x128xbf16>
    %59 = vector.shape_cast %58 : vector<1x384x128xbf16> to vector<384x128xbf16>
    %cst_37 = arith.constant dense<0.000000e+00> : vector<256x128xf32>
    %60 = tpu.matmul %57, %59, %cst_37 {dimension_numbers = #tpu.dot_dimension_numbers<[1], [0], [0], [1], [0, 0, 1, 1], [], []>} : vector<256x384xbf16>, vector<384x128xbf16>, vector<256x128xf32> -> vector<256x128xf32>
    %61 = vector.extract_strided_slice %56 {offsets = [32, 0], sizes = [256, 384], strides = [1, 1]} : vector<320x384xbf16> to vector<256x384xbf16>
    %c1_38 = arith.constant 1 : index
    %c0_39 = arith.constant 0 : index
    %c0_40 = arith.constant 0 : index
    %62 = vector.load %arg7[%c1_38, %c0_39, %c0_40] : memref<3x384x128xbf16, #tpu.memory_space<vmem>>, vector<1x384x128xbf16>
    %63 = vector.shape_cast %62 : vector<1x384x128xbf16> to vector<384x128xbf16>
    %cst_41 = arith.constant dense<0.000000e+00> : vector<256x128xf32>
    %64 = tpu.matmul %61, %63, %cst_41 {dimension_numbers = #tpu.dot_dimension_numbers<[1], [0], [0], [1], [0, 0, 1, 1], [], []>} : vector<256x384xbf16>, vector<384x128xbf16>, vector<256x128xf32> -> vector<256x128xf32>
    %65 = arith.addf %60, %64 : vector<256x128xf32>
    %66 = vector.extract_strided_slice %56 {offsets = [64, 0], sizes = [256, 384], strides = [1, 1]} : vector<320x384xbf16> to vector<256x384xbf16>
    %c2_42 = arith.constant 2 : index
    %c0_43 = arith.constant 0 : index
    %c0_44 = arith.constant 0 : index
    %67 = vector.load %arg7[%c2_42, %c0_43, %c0_44] : memref<3x384x128xbf16, #tpu.memory_space<vmem>>, vector<1x384x128xbf16>
    %68 = vector.shape_cast %67 : vector<1x384x128xbf16> to vector<384x128xbf16>
    %cst_45 = arith.constant dense<0.000000e+00> : vector<256x128xf32>
    %69 = tpu.matmul %66, %68, %cst_45 {dimension_numbers = #tpu.dot_dimension_numbers<[1], [0], [0], [1], [0, 0, 1, 1], [], []>} : vector<256x384xbf16>, vector<384x128xbf16>, vector<256x128xf32> -> vector<256x128xf32>
    %70 = arith.addf %65, %69 : vector<256x128xf32>
    %c0_46 = arith.constant 0 : index
    %c0_47 = arith.constant 0 : index
    %71 = vector.load %arg9[%c0_46, %c0_47] : memref<1x128xf32, #tpu.memory_space<vmem>>, vector<1x128xf32>
    %72 = vector.broadcast %71 : vector<1x128xf32> to vector<256x128xf32>
    %73 = arith.addf %70, %72 : vector<256x128xf32>
    %cst_48 = arith.constant 0.000000e+00 : f32
    %74 = vector.broadcast %cst_48 : f32 to vector<256x128xf32>
    %75 = arith.maximumf %73, %74 : vector<256x128xf32>
    %76 = vector.shape_cast %75 : vector<256x128xf32> to vector<1x8x32x128xf32>
    %77 = arith.truncf %76 : vector<1x8x32x128xf32> to vector<1x8x32x128xbf16>
    %c0_49 = arith.constant 0 : index
    %c0_50 = arith.constant 0 : index
    %c0_51 = arith.constant 0 : index
    %c0_52 = arith.constant 0 : index
    %78 = vector.load %arg10[%c0_49, %c0_50, %c0_51, %c0_52] : memref<1x8x32x128xbf16, #tpu.memory_space<vmem>>, vector<1x8x32x128xbf16>
    tpu.vector_store %arg10[%c0_49, %c0_50, %c0_51, %c0_52], %77 {strides = array<i32>} : memref<1x8x32x128xbf16, #tpu.memory_space<vmem>>, vector<1x8x32x128xbf16>,
    return
  }
  func.func @transform_0(%arg0: i32, %arg1: i32) -> (i32, i32, i32, i32) {
    %c2_i32 = arith.constant 2 : i32
    %0 = arith.muli %arg0, %c2_i32 : i32
    %1 = arith.addi %0, %arg1 : i32
    %c0_i32 = arith.constant 0 : i32
    %c0_i32_0 = arith.constant 0 : i32
    %c0_i32_1 = arith.constant 0 : i32
    %c0_i32_2 = arith.constant 0 : i32
    return %1, %c0_i32, %c0_i32_0, %c0_i32_1 : i32, i32, i32, i32
  }
  func.func @transform_1(%arg0: i32, %arg1: i32) -> (i32, i32, i32, i32) {
    %c2_i32 = arith.constant 2 : i32
    %0 = arith.muli %arg0, %c2_i32 : i32
    %1 = arith.addi %0, %arg1 : i32
    %c0_i32 = arith.constant 0 : i32
    %c0_i32_0 = arith.constant 0 : i32
    %c0_i32_1 = arith.constant 0 : i32
    %c0_i32_2 = arith.constant 0 : i32
    return %1, %c0_i32, %c0_i32_0, %c0_i32_1 : i32, i32, i32, i32
  }
  func.func @transform_2(%arg0: i32, %arg1: i32) -> (i32, i32, i32) {
    %c0_i32 = arith.constant 0 : i32
    %c0_i32_0 = arith.constant 0 : i32
    %c0_i32_1 = arith.constant 0 : i32
    return %arg1, %c0_i32, %c0_i32_0 : i32, i32, i32
  }
  func.func @transform_3(%arg0: i32, %arg1: i32) -> (i32, i32, i32) {
    %c0_i32 = arith.constant 0 : i32
    %c0_i32_0 = arith.constant 0 : i32
    %c0_i32_1 = arith.constant 0 : i32
    %c0_i32_2 = arith.constant 0 : i32
    return %c0_i32, %c0_i32_0, %c0_i32_1 : i32, i32, i32
  }
  func.func @transform_4(%arg0: i32, %arg1: i32) -> (i32, i32, i32) {
    %c0_i32 = arith.constant 0 : i32
    %c0_i32_0 = arith.constant 0 : i32
    %c0_i32_1 = arith.constant 0 : i32
    %c0_i32_2 = arith.constant 0 : i32
    return %c0_i32, %c0_i32_0, %c0_i32_1 : i32, i32, i32
  }
  func.func @transform_5(%arg0: i32, %arg1: i32) -> (i32, i32, i32) {
    %c0_i32 = arith.constant 0 : i32
    %c0_i32_0 = arith.constant 0 : i32
    %c0_i32_1 = arith.constant 0 : i32
    %c0_i32_2 = arith.constant 0 : i32
    return %c0_i32, %c0_i32_0, %c0_i32_1 : i32, i32, i32
  }
  func.func @transform_6(%arg0: i32, %arg1: i32) -> (i32, i32) {
    %c0_i32 = arith.constant 0 : i32
    %c0_i32_0 = arith.constant 0 : i32
    %c0_i32_1 = arith.constant 0 : i32
    return %c0_i32, %c0_i32_0 : i32, i32
  }
  func.func @transform_7(%arg0: i32, %arg1: i32) -> (i32, i32) {
    %c0_i32 = arith.constant 0 : i32
    %c0_i32_0 = arith.constant 0 : i32
    %c0_i32_1 = arith.constant 0 : i32
    return %c0_i32, %c0_i32_0 : i32, i32
  }
  func.func @transform_8(%arg0: i32, %arg1: i32) -> (i32, i32, i32, i32) {
    %c2_i32 = arith.constant 2 : i32
    %0 = arith.muli %arg0, %c2_i32 : i32
    %1 = arith.addi %0, %arg1 : i32
    %c0_i32 = arith.constant 0 : i32
    %c0_i32_0 = arith.constant 0 : i32
    %c0_i32_1 = arith.constant 0 : i32
    %c0_i32_2 = arith.constant 0 : i32
    return %1, %c0_i32, %c0_i32_0, %c0_i32_1 : i32, i32, i32, i32
  }
}

</mosaic_0001>

<llo_original>
// kernel: unet_up_forward.1
$region0: #{unet_up_forward.1}
  #allocation0 [shape = 'u32[]', space=smem, size = 0x4, offset = 0x4, fixed_abs, tag = 'smem constant byte address 0x4 - core index']
  #allocation1 [shape = 'u32[72,128]{1,0:T(1,128)}', space=vmem, size = 0x9000, scoped, tag = 'internal scratch']
  %s0 = inlined_call_operand.vmem [shape: bf16[4,14,32,128], index: 0, kind: input, shape index: {}]
  %s1 = inlined_call_operand.vmem [shape: bf16[4,14,32,128], index: 1, kind: input, shape index: {}]
  %s2 = inlined_call_operand.vmem [shape: f32[2,352,1], index: 2, kind: input, shape index: {}]
  %s3 = inlined_call_operand.vmem [shape: bf16[3,384,128], index: 3, kind: input, shape index: {}]
  %s4 = inlined_call_operand.vmem [shape: bf16[3,384,128], index: 4, kind: input, shape index: {}]
  %s5 = inlined_call_operand.vmem [shape: bf16[3,384,128], index: 5, kind: input, shape index: {}]
  %s6 = inlined_call_operand.vmem [shape: f32[1,128], index: 6, kind: input, shape index: {}]
  %s7 = inlined_call_operand.vmem [shape: f32[1,128], index: 7, kind: input, shape index: {}]
  %s8 = inlined_call_operand.vmem [shape: bf16[4,8,32,128], index: 8, kind: output, shape index: {}]
  %s9 = sld [smem:[#allocation0]]
  $region65: #{unet_up_forward.1} parent=0
    _
  %s11 = ssub.s32 1, %s9
  %s12 = scalar_select 0, %s11, %s9
  loop: start=0, step=1, limit=6
  $region2: #{unet_up_forward.1} parent=0 // loop_pre_header
    _
  $region3: #{unet_up_forward.1} parent=0 // loop_header
    %s14 = sphi 0, %s18
    %p15 = scmp.ge.s32.totalorder %s14, 6
    %s21 = sphi 0, %s33
    %s22 = sphi 0, %s29
    %s23 = sphi 0, %s21
    %s24 = sphi 0, %s22
    %s25 = sphi 0, %s23
    %s26 = sphi 0, %s24
    %s40 = sphi 0, %s42
    %s43 = sphi 0, %s40
    %s44 = sphi 0, %s43
    %s60 = sphi 0, %s44
    %s70 = sphi 0, %s72
    %s73 = sphi 0, %s70
    %s74 = sphi 0, %s73
    %s90 = sphi 0, %s74
    %s96 = sphi 0, %s98
    %s99 = sphi 0, %s96
    %s100 = sphi 0, %s99
    %s116 = sphi 0, %s100
    %s120 = sphi 0, %s120
    %s122 = sphi 0, %s120
    %s123 = sphi 0, %s122
    %s137 = sphi 0, %s123
    %s141 = sphi 0, %s141
    %s143 = sphi 0, %s141
    %s144 = sphi 0, %s143
    %s158 = sphi 0, %s144
    %s162 = sphi 0, %s162
    %s164 = sphi 0, %s162
    %s165 = sphi 0, %s164
    %s179 = sphi 0, %s165
    %s183 = sphi 0, %s183
    %s185 = sphi 0, %s183
    %s186 = sphi 0, %s185
    %s200 = sphi 0, %s186
    %s204 = sphi 0, %s204
    %s206 = sphi 0, %s204
    %s207 = sphi 0, %s206
    %s221 = sphi 0, %s207
    %s231 = sphi 0, %s233
    %s234 = sphi 0, %s231
    %s235 = sphi 0, %s234
    %s251 = sphi 0, %s235
  $region4: #{unet_up_forward.1} parent=0 // loop_header_branch
    %17 = sbr.rel (%p15) target = $region8
  $region5: #{unet_up_forward.1} parent=0 // loop_body
    %s19 = ssub.s32 %s14, 1
    %s20 = ssub.s32 %s14, 2
    %s27 = sadd.s32 1, %s22
    %p28 = scmp.ge.s32.totalorder %s27, 2
    %s29 = scalar_select %p28, 0, %s27
    %s30 = sadd.s32 1, %s21
    %s31 = scalar_select %p28, %s30, %s21
    %p32 = scmp.ge.s32.totalorder %s31, 2
    %s33 = scalar_select %p32, 0, %s31
    %s34 = smul.u32 %s21, 2
    %s35 = sadd.s32 %s34, %s22
    %s36 = smul.u32 %s33, 2
    %s37 = sadd.s32 %s36, %s29
    %s38 = ssub.s32 %s35, %s37
    %p39 = scmp.eq.s32.totalorder %s38, 0
    %s41 = sadd.s32 %s40, 1
    %s42 = scalar_select %p39, %s40, %s41
    %p45 = pneg %p39
    %p46 = scmp.eq.s32.totalorder %s14, 3
    %p47 = por %p45, %p46
    %p48 = scmp.ne.s32.totalorder %s40, %s43
    %p49 = scmp.eq.s32.totalorder %s14, 0
    %p50 = por %p48, %p49
    %p51 = scmp.ne.s32.totalorder %s40, %s43
    %p52 = scmp.eq.s32.totalorder %s19, 3
    %p53 = por %p51, %p52
    %p54 = scmp.ne.s32.totalorder %s43, %s44
    %p55 = scmp.eq.s32.totalorder %s19, 0
    %p56 = por %p54, %p55
    %p57 = scmp.ne.s32.totalorder %s43, %s44
    %p58 = scmp.eq.s32.totalorder %s20, 3
    %p59 = por %p57, %p58
    %p61 = scmp.ne.s32.totalorder %s44, %s60
    %p62 = scmp.eq.s32.totalorder %s20, 0
    %p63 = por %p61, %p62
    %s64 = smul.u32 %s21, 2
    %s65 = sadd.s32 %s64, %s22
    %s66 = smul.u32 %s33, 2
    %s67 = sadd.s32 %s66, %s29
    %s68 = ssub.s32 %s65, %s67
    %p69 = scmp.eq.s32.totalorder %s68, 0
    %s71 = sadd.s32 %s70, 1
    %s72 = scalar_select %p69, %s70, %s71
    %p75 = pneg %p69
    %p76 = scmp.eq.s32.totalorder %s14, 3
    %p77 = por %p75, %p76
    %p78 = scmp.ne.s32.totalorder %s70, %s73
    %p79 = scmp.eq.s32.totalorder %s14, 0
    %p80 = por %p78, %p79
    %p81 = scmp.ne.s32.totalorder %s70, %s73
    %p82 = scmp.eq.s32.totalorder %s19, 3
    %p83 = por %p81, %p82
    %p84 = scmp.ne.s32.totalorder %s73, %s74
    %p85 = scmp.eq.s32.totalorder %s19, 0
    %p86 = por %p84, %p85
    %p87 = scmp.ne.s32.totalorder %s73, %s74
    %p88 = scmp.eq.s32.totalorder %s20, 3
    %p89 = por %p87, %p88
    %p91 = scmp.ne.s32.totalorder %s74, %s90
    %p92 = scmp.eq.s32.totalorder %s20, 0
    %p93 = por %p91, %p92
    %s94 = ssub.s32 %s22, %s29
    %p95 = scmp.eq.s32.totalorder %s94, 0
    %s97 = sadd.s32 %s96, 1
    %s98 = scalar_select %p95, %s96, %s97
    %p101 = pneg %p95
    %p102 = scmp.eq.s32.totalorder %s14, 3
    %p103 = por %p101, %p102
    %p104 = scmp.ne.s32.totalorder %s96, %s99
    %p105 = scmp.eq.s32.totalorder %s14, 0
    %p106 = por %p104, %p105
    %p107 = scmp.ne.s32.totalorder %s96, %s99
    %p108 = scmp.eq.s32.totalorder %s19, 3
    %p109 = por %p107, %p108
    %p110 = scmp.ne.s32.totalorder %s99, %s100
    %p111 = scmp.eq.s32.totalorder %s19, 0
    %p112 = por %p110, %p111
    %p113 = scmp.ne.s32.totalorder %s99, %s100
    %p114 = scmp.eq.s32.totalorder %s20, 3
    %p115 = por %p113, %p114
    %p117 = scmp.ne.s32.totalorder %s100, %s116
    %p118 = scmp.eq.s32.totalorder %s20, 0
    %p119 = por %p117, %p118
    %s121 = sadd.s32 %s120, 1
    %p124 = scmp.eq.s32.totalorder %s14, 3
    %p125 = scmp.ne.s32.totalorder %s120, %s122
    %p126 = scmp.eq.s32.totalorder %s14, 0
    %p127 = por %p125, %p126
    %p128 = scmp.ne.s32.totalorder %s120, %s122
    %p129 = scmp.eq.s32.totalorder %s19, 3
    %p130 = por %p128, %p129
    %p131 = scmp.ne.s32.totalorder %s122, %s123
    %p132 = scmp.eq.s32.totalorder %s19, 0
    %p133 = por %p131, %p132
    %p134 = scmp.ne.s32.totalorder %s122, %s123
    %p135 = scmp.eq.s32.totalorder %s20, 3
    %p136 = por %p134, %p135
    %p138 = scmp.ne.s32.totalorder %s123, %s137
    %p139 = scmp.eq.s32.totalorder %s20, 0
    %p140 = por %p138, %p139
    %s142 = sadd.s32 %s141, 1
    %p145 = scmp.eq.s32.totalorder %s14, 3
    %p146 = scmp.ne.s32.totalorder %s141, %s143
    %p147 = scmp.eq.s32.totalorder %s14, 0
    %p148 = por %p146, %p147
    %p149 = scmp.ne.s32.totalorder %s141, %s143
    %p150 = scmp.eq.s32.totalorder %s19, 3
    %p151 = por %p149, %p150
    %p152 = scmp.ne.s32.totalorder %s143, %s144
    %p153 = scmp.eq.s32.totalorder %s19, 0
    %p154 = por %p152, %p153
    %p155 = scmp.ne.s32.totalorder %s143, %s144
    %p156 = scmp.eq.s32.totalorder %s20, 3
    %p157 = por %p155, %p156
    %p159 = scmp.ne.s32.totalorder %s144, %s158
    %p160 = scmp.eq.s32.totalorder %s20, 0
    %p161 = por %p159, %p160
    %s163 = sadd.s32 %s162, 1
    %p166 = scmp.eq.s32.totalorder %s14, 3
    %p167 = scmp.ne.s32.totalorder %s162, %s164
    %p168 = scmp.eq.s32.totalorder %s14, 0
    %p169 = por %p167, %p168
    %p170 = scmp.ne.s32.totalorder %s162, %s164
    %p171 = scmp.eq.s32.totalorder %s19, 3
    %p172 = por %p170, %p171
    %p173 = scmp.ne.s32.totalorder %s164, %s165
    %p174 = scmp.eq.s32.totalorder %s19, 0
    %p175 = por %p173, %p174
    %p176 = scmp.ne.s32.totalorder %s164, %s165
    %p177 = scmp.eq.s32.totalorder %s20, 3
    %p178 = por %p176, %p177
    %p180 = scmp.ne.s32.totalorder %s165, %s179
    %p181 = scmp.eq.s32.totalorder %s20, 0
    %p182 = por %p180, %p181
    %s184 = sadd.s32 %s183, 1
    %p187 = scmp.eq.s32.totalorder %s14, 3
    %p188 = scmp.ne.s32.totalorder %s183, %s185
    %p189 = scmp.eq.s32.totalorder %s14, 0
    %p190 = por %p188, %p189
    %p191 = scmp.ne.s32.totalorder %s183, %s185
    %p192 = scmp.eq.s32.totalorder %s19, 3
    %p193 = por %p191, %p192
    %p194 = scmp.ne.s32.totalorder %s185, %s186
    %p195 = scmp.eq.s32.totalorder %s19, 0
    %p196 = por %p194, %p195
    %p197 = scmp.ne.s32.totalorder %s185, %s186
    %p198 = scmp.eq.s32.totalorder %s20, 3
    %p199 = por %p197, %p198
    %p201 = scmp.ne.s32.totalorder %s186, %s200
    %p202 = scmp.eq.s32.totalorder %s20, 0
    %p203 = por %p201, %p202
    %s205 = sadd.s32 %s204, 1
    %p208 = scmp.eq.s32.totalorder %s14, 3
    %p209 = scmp.ne.s32.totalorder %s204, %s206
    %p210 = scmp.eq.s32.totalorder %s14, 0
    %p211 = por %p209, %p210
    %p212 = scmp.ne.s32.totalorder %s204, %s206
    %p213 = scmp.eq.s32.totalorder %s19, 3
    %p214 = por %p212, %p213
    %p215 = scmp.ne.s32.totalorder %s206, %s207
    %p216 = scmp.eq.s32.totalorder %s19, 0
    %p217 = por %p215, %p216
    %p218 = scmp.ne.s32.totalorder %s206, %s207
    %p219 = scmp.eq.s32.totalorder %s20, 3
    %p220 = por %p218, %p219
    %p222 = scmp.ne.s32.totalorder %s207, %s221
    %p223 = scmp.eq.s32.totalorder %s20, 0
    %p224 = por %p222, %p223
    %s225 = smul.u32 %s21, 2
    %s226 = sadd.s32 %s225, %s22
    %s227 = smul.u32 %s33, 2
    %s228 = sadd.s32 %s227, %s29
    %s229 = ssub.s32 %s226, %s228
    %p230 = scmp.eq.s32.totalorder %s229, 0
    %s232 = sadd.s32 %s231, 1
    %s233 = scalar_select %p230, %s231, %s232
    %p236 = pneg %p230
    %p237 = scmp.eq.s32.totalorder %s14, 3
    %p238 = por %p236, %p237
    %p239 = scmp.ne.s32.totalorder %s231, %s234
    %p240 = scmp.eq.s32.totalorder %s14, 0
    %p241 = por %p239, %p240
    %p242 = scmp.ne.s32.totalorder %s231, %s234
    %p243 = scmp.eq.s32.totalorder %s19, 3
    %p244 = por %p242, %p243
    %p245 = scmp.ne.s32.totalorder %s234, %s235
    %p246 = scmp.eq.s32.totalorder %s19, 0
    %p247 = por %p245, %p246
    %p248 = scmp.ne.s32.totalorder %s234, %s235
    %p249 = scmp.eq.s32.totalorder %s20, 3
    %p250 = por %p248, %p249
    %p252 = scmp.ne.s32.totalorder %s235, %s251
    %p253 = scmp.eq.s32.totalorder %s20, 0
    %p254 = por %p252, %p253
    %p255 = scmp.le.s32.totalorder 1, %s14
    %p256 = scmp.lt.s32.totalorder %s14, 5
    %p257 = pnand %p255, %p256
    %p258 = pneg %p257
    // Predicated region
    $region9: #{unet_up_forward.1} parent=5 // pred_check
      _
    $region10: #{unet_up_forward.1} parent=5 // pred_check_branch
      %260 = sbr.rel (%p257) target = $region12
    $region11: #{unet_up_forward.1} parent=5 // pred_region
      %s261 = ssub.s32 %s14, 1
      // Predicated region
      $region13: #{unet_up_forward.1} parent=11 // pred_check
        %p262 = pneg %p133
      $region14: #{unet_up_forward.1} parent=11 // pred_check_branch
        %264 = sbr.rel (%p262) target = $region16
      $region15: #{unet_up_forward.1} parent=11 // pred_region
        _
      $region16: #{unet_up_forward.1} parent=11 // pred_fallthru
        _
      // Predicated region
      $region17: #{unet_up_forward.1} parent=11 // pred_check
        %p265 = pneg %p154
      $region18: #{unet_up_forward.1} parent=11 // pred_check_branch
        %267 = sbr.rel (%p265) target = $region20
      $region19: #{unet_up_forward.1} parent=11 // pred_region
        _
      $region20: #{unet_up_forward.1} parent=11 // pred_fallthru
        _
      // Predicated region
      $region21: #{unet_up_forward.1} parent=11 // pred_check
        %p268 = pneg %p175
      $region22: #{unet_up_forward.1} parent=11 // pred_check_branch
        %270 = sbr.rel (%p268) target = $region24
      $region23: #{unet_up_forward.1} parent=11 // pred_region
        _
      $region24: #{unet_up_forward.1} parent=11 // pred_fallthru
        _
      // Predicated region
      $region25: #{unet_up_forward.1} parent=11 // pred_check
        %p271 = pneg %p196
      $region26: #{unet_up_forward.1} parent=11 // pred_check_branch
        %273 = sbr.rel (%p271) target = $region28
      $region27: #{unet_up_forward.1} parent=11 // pred_region
        _
      $region28: #{unet_up_forward.1} parent=11 // pred_fallthru
        _
      // Predicated region
      $region29: #{unet_up_forward.1} parent=11 // pred_check
        %p274 = pneg %p217
      $region30: #{unet_up_forward.1} parent=11 // pred_check_branch
        %276 = sbr.rel (%p274) target = $region32
      $region31: #{unet_up_forward.1} parent=11 // pred_region
        _
      $region32: #{unet_up_forward.1} parent=11 // pred_fallthru
        _
    $region12: #{unet_up_forward.1} parent=5 // pred_fallthru
      _
    %p277 = scmp.lt.s32.totalorder %s14, 4
    // Predicated region
    $region33: #{unet_up_forward.1} parent=5 // pred_check
      %p278 = pneg %p277
    $region34: #{unet_up_forward.1} parent=5 // pred_check_branch
      %280 = sbr.rel (%p278) target = $region36
    $region35: #{unet_up_forward.1} parent=5 // pred_region
      // Predicated region
      $region37: #{unet_up_forward.1} parent=35 // pred_check
        %p281 = pneg %p50
      $region38: #{unet_up_forward.1} parent=35 // pred_check_branch
        %283 = sbr.rel (%p281) target = $region40
      $region39: #{unet_up_forward.1} parent=35 // pred_region
        %s284 = smul.u32 %s21, 2
        %s285 = sadd.s32 %s284, %s22
        %p286 = scmp.lt.s32.totalorder %s285, 3
        %s287 = scalar_select %p286, %s285, 3
        %s288 = smul.addr %s287, 56
        %s289 = smul.addr %s288, 4
        %s290 = scalar_lea.vmem %s0, %s289
        %s291 = smul.u32 %s21, 2
        %s292 = sadd.s32 %s291, %s22
      $region40: #{unet_up_forward.1} parent=35 // pred_fallthru
        _
      // Predicated region
      $region41: #{unet_up_forward.1} parent=35 // pred_check
        %p293 = pneg %p80
      $region42: #{unet_up_forward.1} parent=35 // pred_check_branch
        %295 = sbr.rel (%p293) target = $region44
      $region43: #{unet_up_forward.1} parent=35 // pred_region
        %s296 = smul.u32 %s21, 2
        %s297 = sadd.s32 %s296, %s22
        %p298 = scmp.lt.s32.totalorder %s297, 3
        %s299 = scalar_select %p298, %s297, 3
        %s300 = smul.addr %s299, 56
        %s301 = smul.addr %s300, 4
        %s302 = scalar_lea.vmem %s1, %s301
        %s303 = smul.u32 %s21, 2
        %s304 = sadd.s32 %s303, %s22
      $region44: #{unet_up_forward.1} parent=35 // pred_fallthru
        _
      // Predicated region
      $region45: #{unet_up_forward.1} parent=35 // pred_check
        %p305 = pneg %p106
      $region46: #{unet_up_forward.1} parent=35 // pred_check_branch
        %307 = sbr.rel (%p305) target = $region48
      $region47: #{unet_up_forward.1} parent=35 // pred_region
        %p308 = scmp.lt.s32.totalorder %s22, 1
        %s309 = scalar_select %p308, %s22, 1
        %s310 = smul.addr %s309, 44
        %s311 = smul.addr %s310, 8
        %s312 = scalar_lea.vmem %s2, %s311
      $region48: #{unet_up_forward.1} parent=35 // pred_fallthru
        _
    $region36: #{unet_up_forward.1} parent=5 // pred_fallthru
      _
    %p313 = scmp.le.s32.totalorder 1, %s14
    %p314 = scmp.lt.s32.totalorder %s14, 5
    %p315 = pnand %p313, %p314
    %p316 = pneg %p315
    // Predicated region
    $region49: #{unet_up_forward.1} parent=5 // pred_check
      _
    $region50: #{unet_up_forward.1} parent=5 // pred_check_branch
      %318 = sbr.rel (%p315) target = $region52
    $region51: #{unet_up_forward.1} parent=5 // pred_region
      %s319 = ssub.s32 %s14, 1
      %s320 = smul.u32 %s23, 2
      %s321 = sadd.s32 %s320, %s24
      %p322 = scmp.lt.s32.totalorder %s321, 3
      %s323 = scalar_select %p322, %s321, 3
      %s324 = smul.addr %s323, 56
      %s325 = smul.addr %s324, 4
      %s326 = scalar_lea.vmem %s0, %s325
      %p327 = pneg %p56
      %p328 = pneg %p53
      %s329 = smul.u32 %s23, 2
      %s330 = sadd.s32 %s329, %s24
      %p331 = scmp.lt.s32.totalorder %s330, 3
      %s332 = scalar_select %p331, %s330, 3
      %s333 = smul.addr %s332, 56
      %s334 = smul.addr %s333, 4
      %s335 = scalar_lea.vmem %s1, %s334
      %p336 = pneg %p86
      %p337 = pneg %p83
      %p338 = scmp.lt.s32.totalorder %s24, 1
      %s339 = scalar_select %p338, %s24, 1
      %s340 = smul.addr %s339, 44
      %s341 = smul.addr %s340, 8
      %s342 = scalar_lea.vmem %s2, %s341
      %p343 = pneg %p112
      %p344 = pneg %p109
      %p345 = pneg %p133
      %p346 = pneg %p130
      %p347 = pneg %p154
      %p348 = pneg %p151
      %p349 = pneg %p175
      %p350 = pneg %p172
      %p351 = pneg %p196
      %p352 = pneg %p193
      %p353 = pneg %p217
      %p354 = pneg %p214
      %p355 = pneg %p247
      %p356 = pneg %p244
      %s357 = smul.u32 %s23, 2
      %s358 = sadd.s32 %s357, %s24
      %p359 = scmp.lt.s32.totalorder %s358, 3
      %s360 = scalar_select %p359, %s358, 3
      %s361 = smul.addr %s360, 32
      %s362 = smul.addr %s361, 4
      %s363 = scalar_lea.vmem %s8, %s362
      %s364 = smul.u32 %s23, 2
      %s365 = sadd.s32 %s364, %s24
      %p366 = scmp.lt.s32.totalorder %s365, 3
      %s367 = scalar_select %p366, %s365, 3
      %s368 = smul.addr %s367, 56
      %s369 = smul.addr %s368, 4
      %s370 = scalar_lea.vmem %s0, %s369
      %s371 = smul.u32 %s23, 2
      %s372 = sadd.s32 %s371, %s24
      %s373 = smul.u32 %s23, 2
      %s374 = sadd.s32 %s373, %s24
      %p375 = scmp.lt.s32.totalorder %s374, 3
      %s376 = scalar_select %p375, %s374, 3
      %s377 = smul.addr %s376, 56
      %s378 = smul.addr %s377, 4
      %s379 = scalar_lea.vmem %s1, %s378
      %s380 = smul.u32 %s23, 2
      %s381 = sadd.s32 %s380, %s24
      %p382 = scmp.lt.s32.totalorder %s24, 1
      %s383 = scalar_select %p382, %s24, 1
      %s384 = smul.addr %s383, 44
      %s385 = smul.addr %s384, 8
      %s386 = scalar_lea.vmem %s2, %s385
      %s387 = smul.u32 %s23, 2
      %s388 = sadd.s32 %s387, %s24
      %p389 = scmp.lt.s32.totalorder %s388, 3
      %s390 = scalar_select %p389, %s388, 3
      %s391 = smul.addr %s390, 32
      %s392 = smul.addr %s391, 4
      %s393 = scalar_lea.vmem %s8, %s392
      %s394 = smul.u32 %s23, 2
      %s395 = sadd.s32 %s394, %s24
      %v396 = vld [vmem:[%s370] sm:$0xf]
      %v397 = vld [vmem:[%s370 + $0x4] sm:$0xf]
      %v398 = vld [vmem:[%s370 + $0x8] sm:$0xf]
      %v399 = vld [vmem:[%s370 + $0xc] sm:$0xf]
      %v400 = vld [vmem:[%s370 + $0x10] sm:$0xf]
      %v401 = vld [vmem:[%s370 + $0x14] sm:$0xf]
      %v402 = vld [vmem:[%s370 + $0x18] sm:$0xf]
      %v403 = vld [vmem:[%s370 + $0x1c] sm:$0xf]
      %v404 = vld [vmem:[%s370 + $0x20] sm:$0xf]
      %v405 = vld [vmem:[%s370 + $0x24] sm:$0xf]
      %v406 = vld [vmem:[%s370 + $0x28] sm:$0xf]
      %v407 = vld [vmem:[%s370 + $0x2c] sm:$0xf]
      %v408 = vld [vmem:[%s370 + $0x30] sm:$0xf]
      %v409 = vld [vmem:[%s370 + $0x34] sm:$0xf]
      %v410 = vld [vmem:[%s370 + $0x38] sm:$0xf]
      %v411 = vld [vmem:[%s370 + $0x3c] sm:$0xf]
      %v412 = vld [vmem:[%s370 + $0x40] sm:$0xf]
      %v413 = vld [vmem:[%s370 + $0x44] sm:$0xf]
      %v414 = vld [vmem:[%s370 + $0x48] sm:$0xf]
      %v415 = vld [vmem:[%s370 + $0x4c] sm:$0xf]
      %v416 = vld [vmem:[%s370 + $0x50] sm:$0xf]
      %v417 = vld [vmem:[%s370 + $0x54] sm:$0xf]
      %v418 = vld [vmem:[%s370 + $0x58] sm:$0xf]
      %v419 = vld [vmem:[%s370 + $0x5c] sm:$0xf]
      %v420 = vld [vmem:[%s370 + $0x60] sm:$0xf]
      %v421 = vld [vmem:[%s370 + $0x64] sm:$0xf]
      %v422 = vld [vmem:[%s370 + $0x68] sm:$0xf]
      %v423 = vld [vmem:[%s370 + $0x6c] sm:$0xf]
      %v424 = vld [vmem:[%s370 + $0x70] sm:$0xf]
      %v425 = vld [vmem:[%s370 + $0x74] sm:$0xf]
      %v426 = vld [vmem:[%s370 + $0x78] sm:$0xf]
      %v427 = vld [vmem:[%s370 + $0x7c] sm:$0xf]
      %v428 = vld [vmem:[%s370 + $0x80] sm:$0xf]
      %v429 = vld [vmem:[%s370 + $0x84] sm:$0xf]
      %v430 = vld [vmem:[%s370 + $0x88] sm:$0xf]
      %v431 = vld [vmem:[%s370 + $0x8c] sm:$0xf]
      %v432 = vld [vmem:[%s370 + $0x90] sm:$0xf]
      %v433 = vld [vmem:[%s370 + $0x94] sm:$0xf]
      %v434 = vld [vmem:[%s370 + $0x98] sm:$0xf]
      %v435 = vld [vmem:[%s370 + $0x9c] sm:$0xf]
      %v436 = vld [vmem:[%s370 + $0xa0] sm:$0xf]
      %v437 = vld [vmem:[%s370 + $0xa4] sm:$0xf]
      %v438 = vld [vmem:[%s370 + $0xa8] sm:$0xf]
      %v439 = vld [vmem:[%s370 + $0xac] sm:$0xf]
      %v440 = vld [vmem:[%s370 + $0xb0] sm:$0xf]
      %v441 = vld [vmem:[%s370 + $0xb4] sm:$0xf]
      %v442 = vld [vmem:[%s370 + $0xb8] sm:$0xf]
      %v443 = vld [vmem:[%s370 + $0xbc] sm:$0xf]
      %v444 = vld [vmem:[%s370 + $0xc0] sm:$0xf]
      %v445 = vld [vmem:[%s370 + $0xc4] sm:$0xf]
      %v446 = vld [vmem:[%s370 + $0xc8] sm:$0xf]
      %v447 = vld [vmem:[%s370 + $0xcc] sm:$0xf]
      %v448 = vld [vmem:[%s370 + $0xd0] sm:$0xf]
      %v449 = vld [vmem:[%s379] sm:$0xf]
      %v450 = vld [vmem:[%s379 + $0x4] sm:$0xf]
      %v451 = vld [vmem:[%s379 + $0x8] sm:$0xf]
      %v452 = vld [vmem:[%s379 + $0xc] sm:$0xf]
      %v453 = vld [vmem:[%s379 + $0x10] sm:$0xf]
      %v454 = vld [vmem:[%s379 + $0x14] sm:$0xf]
      %v455 = vld [vmem:[%s379 + $0x18] sm:$0xf]
      %v456 = vld [vmem:[%s379 + $0x1c] sm:$0xf]
      %v457 = vld [vmem:[%s379 + $0x20] sm:$0xf]
      %v458 = vld [vmem:[%s379 + $0x24] sm:$0xf]
      %v459 = vld [vmem:[%s379 + $0x28] sm:$0xf]
      %v460 = vld [vmem:[%s379 + $0x2c] sm:$0xf]
      %v461 = vld [vmem:[%s379 + $0x30] sm:$0xf]
      %v462 = vld [vmem:[%s379 + $0x34] sm:$0xf]
      %v463 = vld [vmem:[%s379 + $0x38] sm:$0xf]
      %v464 = vld [vmem:[%s379 + $0x3c] sm:$0xf]
      %v465 = vld [vmem:[%s379 + $0x40] sm:$0xf]
      %v466 = vld [vmem:[%s379 + $0x44] sm:$0xf]
      %v467 = vld [vmem:[%s379 + $0x48] sm:$0xf]
      %v468 = vld [vmem:[%s379 + $0x4c] sm:$0xf]
      %v469 = vld [vmem:[%s379 + $0x50] sm:$0xf]
      %v470 = vld [vmem:[%s379 + $0x54] sm:$0xf]
      %v471 = vld [vmem:[%s379 + $0x58] sm:$0xf]
      %v472 = vld [vmem:[%s379 + $0x5c] sm:$0xf]
      %v473 = vld [vmem:[%s379 + $0x60] sm:$0xf]
      %v474 = vld [vmem:[%s379 + $0x64] sm:$0xf]
      %v475 = vld [vmem:[%s379 + $0x68] sm:$0xf]
      %v476 = vld [vmem:[%s379 + $0x6c] sm:$0xf]
      %v477 = vld [vmem:[%s379 + $0x70] sm:$0xf]
      %v478 = vld [vmem:[%s379 + $0x74] sm:$0xf]
      %v479 = vld [vmem:[%s379 + $0x78] sm:$0xf]
      %v480 = vld [vmem:[%s379 + $0x7c] sm:$0xf]
      %v481 = vld [vmem:[%s379 + $0x80] sm:$0xf]
      %v482 = vld [vmem:[%s379 + $0x84] sm:$0xf]
      %v483 = vld [vmem:[%s379 + $0x88] sm:$0xf]
      %v484 = vld [vmem:[%s379 + $0x8c] sm:$0xf]
      %v485 = vld [vmem:[%s379 + $0x90] sm:$0xf]
      %v486 = vld [vmem:[%s379 + $0x94] sm:$0xf]
      %v487 = vld [vmem:[%s379 + $0x98] sm:$0xf]
      %v488 = vld [vmem:[%s379 + $0x9c] sm:$0xf]
      %v489 = vld [vmem:[%s379 + $0xa0] sm:$0xf]
      %v490 = vld [vmem:[%s379 + $0xa4] sm:$0xf]
      %v491 = vld [vmem:[%s379 + $0xa8] sm:$0xf]
      %v492 = vld [vmem:[%s379 + $0xac] sm:$0xf]
      %v493 = vld [vmem:[%s379 + $0xb0] sm:$0xf]
      %v494 = vld [vmem:[%s379 + $0xb4] sm:$0xf]
      %v495 = vld [vmem:[%s379 + $0xb8] sm:$0xf]
      %v496 = vld [vmem:[%s379 + $0xbc] sm:$0xf]
      %v497 = vld [vmem:[%s379 + $0xc0] sm:$0xf]
      %v498 = vld [vmem:[%s379 + $0xc4] sm:$0xf]
      %v499 = vld [vmem:[%s379 + $0xc8] sm:$0xf]
      %v500 = vld [vmem:[%s379 + $0xcc] sm:$0xf]
      %v501 = vld [vmem:[%s379 + $0xd0] sm:$0xf]
      %v554 = vunpack.c.l.b16 %v396
      %v555 = vunpack.c.l.b16 %v397
      %v556 = vunpack.c.l.b16 %v398
      %v557 = vunpack.c.l.b16 %v399
      %v558 = vunpack.c.l.b16 %v400
      %v559 = vunpack.c.l.b16 %v401
      %v560 = vunpack.c.l.b16 %v402
      %v561 = vunpack.c.l.b16 %v403
      %v562 = vunpack.c.l.b16 %v404
      %v563 = vunpack.c.l.b16 %v405
      %v564 = vunpack.c.l.b16 %v406
      %v565 = vunpack.c.l.b16 %v407
      %v566 = vunpack.c.l.b16 %v408
      %v567 = vunpack.c.l.b16 %v409
      %v568 = vunpack.c.l.b16 %v410
      %v569 = vunpack.c.l.b16 %v411
      %v570 = vunpack.c.l.b16 %v412
      %v571 = vunpack.c.l.b16 %v413
      %v572 = vunpack.c.l.b16 %v414
      %v573 = vunpack.c.l.b16 %v415
      %v574 = vunpack.c.l.b16 %v416
      %v575 = vunpack.c.l.b16 %v417
      %v576 = vunpack.c.l.b16 %v418
      %v577 = vunpack.c.l.b16 %v419
      %v578 = vunpack.c.l.b16 %v420
      %v579 = vunpack.c.l.b16 %v421
      %v580 = vunpack.c.l.b16 %v422
      %v581 = vunpack.c.l.b16 %v423
      %v582 = vunpack.c.l.b16 %v424
      %v583 = vunpack.c.l.b16 %v425
      %v584 = vunpack.c.l.b16 %v426
      %v585 = vunpack.c.l.b16 %v427
      %v586 = vunpack.c.l.b16 %v428
      %v587 = vunpack.c.l.b16 %v429
      %v588 = vunpack.c.l.b16 %v430
      %v589 = vunpack.c.l.b16 %v431
      %v590 = vunpack.c.l.b16 %v432
      %v591 = vunpack.c.l.b16 %v433
      %v592 = vunpack.c.l.b16 %v434
      %v593 = vunpack.c.l.b16 %v435
      %v594 = vunpack.c.l.b16 %v436
      %v595 = vunpack.c.l.b16 %v437
      %v596 = vunpack.c.l.b16 %v438
      %v597 = vunpack.c.l.b16 %v439
      %v598 = vunpack.c.l.b16 %v440
      %v599 = vunpack.c.l.b16 %v441
      %v600 = vunpack.c.l.b16 %v442
      %v601 = vunpack.c.l.b16 %v443
      %v602 = vunpack.c.l.b16 %v444
      %v603 = vunpack.c.l.b16 %v445
      %v604 = vunpack.c.l.b16 %v446
      %v605 = vunpack.c.l.b16 %v447
      %v606 = vpack.c.b16 %v555, %v554
      %v607 = vpack.c.b16 %v557, %v556
      %v608 = vpack.c.b16 %v559, %v558
      %v609 = vpack.c.b16 %v561, %v560
      %v610 = vpack.c.b16 %v563, %v562
      %v611 = vpack.c.b16 %v565, %v564
      %v612 = vpack.c.b16 %v567, %v566
      %v613 = vpack.c.b16 %v569, %v568
      %v614 = vpack.c.b16 %v571, %v570
      %v615 = vpack.c.b16 %v573, %v572
      %v616 = vpack.c.b16 %v575, %v574
      %v617 = vpack.c.b16 %v577, %v576
      %v618 = vpack.c.b16 %v579, %v578
      %v619 = vpack.c.b16 %v581, %v580
      %v620 = vpack.c.b16 %v583, %v582
      %v621 = vpack.c.b16 %v585, %v584
      %v622 = vpack.c.b16 %v587, %v586
      %v623 = vpack.c.b16 %v589, %v588
      %v624 = vpack.c.b16 %v591, %v590
      %v625 = vpack.c.b16 %v593, %v592
      %v626 = vpack.c.b16 %v595, %v594
      %v627 = vpack.c.b16 %v597, %v596
      %v628 = vpack.c.b16 %v599, %v598
      %v629 = vpack.c.b16 %v601, %v600
      %v630 = vpack.c.b16 %v603, %v602
      %v631 = vpack.c.b16 %v605, %v604
      %v659 = vunpack.c.l.b16 %v448
      %v660 = vpack.c.b16 %v659, %v659
      %vm661 = vsmask.f32 7424
      %v663 = vshrl.u32 %v606, 16
      %v665 = vshll.u32 %v606, 16
      %v667 = vrot.slane %v665, 1
      %v668 = vor.u32 %v663, %v667
      %v670 = vshll.u32 %v607, 16
      %v672 = vrot.slane %v670, 1
      %v673 = vsel %vm661, %v668, %v672
      %v674 = vshrl.u32 %v607, 16
      %v676 = vor.u32 %v674, %v672
      %v678 = vshll.u32 %v608, 16
      %v680 = vrot.slane %v678, 1
      %v681 = vsel %vm661, %v676, %v680
      %v682 = vshrl.u32 %v608, 16
      %v684 = vor.u32 %v682, %v680
      %v686 = vshll.u32 %v609, 16
      %v688 = vrot.slane %v686, 1
      %v689 = vsel %vm661, %v684, %v688
      %v690 = vshrl.u32 %v609, 16
      %v692 = vor.u32 %v690, %v688
      %v694 = vshll.u32 %v610, 16
      %v696 = vrot.slane %v694, 1
      %v697 = vsel %vm661, %v692, %v696
      %v698 = vshrl.u32 %v610, 16
      %v700 = vor.u32 %v698, %v696
      %v702 = vshll.u32 %v611, 16
      %v704 = vrot.slane %v702, 1
      %v705 = vsel %vm661, %v700, %v704
      %v706 = vshrl.u32 %v611, 16
      %v708 = vor.u32 %v706, %v704
      %v710 = vshll.u32 %v612, 16
      %v712 = vrot.slane %v710, 1
      %v713 = vsel %vm661, %v708, %v712
      %v714 = vshrl.u32 %v612, 16
      %v716 = vor.u32 %v714, %v712
      %v718 = vshll.u32 %v613, 16
      %v720 = vrot.slane %v718, 1
      %v721 = vsel %vm661, %v716, %v720
      %v722 = vshrl.u32 %v613, 16
      %v724 = vor.u32 %v722, %v720
      %v726 = vshll.u32 %v614, 16
      %v728 = vrot.slane %v726, 1
      %v729 = vsel %vm661, %v724, %v728
      %v730 = vshrl.u32 %v614, 16
      %v732 = vor.u32 %v730, %v728
      %v734 = vshll.u32 %v615, 16
      %v736 = vrot.slane %v734, 1
      %v737 = vsel %vm661, %v732, %v736
      %v738 = vshrl.u32 %v615, 16
      %v740 = vor.u32 %v738, %v736
      %v742 = vshll.u32 %v616, 16
      %v744 = vrot.slane %v742, 1
      %v745 = vsel %vm661, %v740, %v744
      %v746 = vshrl.u32 %v616, 16
      %v748 = vor.u32 %v746, %v744
      %v750 = vshll.u32 %v617, 16
      %v752 = vrot.slane %v750, 1
      %v753 = vsel %vm661, %v748, %v752
      %v754 = vshrl.u32 %v617, 16
      %v756 = vor.u32 %v754, %v752
      %v758 = vshll.u32 %v618, 16
      %v760 = vrot.slane %v758, 1
      %v761 = vsel %vm661, %v756, %v760
      %v762 = vshrl.u32 %v618, 16
      %v764 = vor.u32 %v762, %v760
      %v766 = vshll.u32 %v619, 16
      %v768 = vrot.slane %v766, 1
      %v769 = vsel %vm661, %v764, %v768
      %v770 = vshrl.u32 %v619, 16
      %v772 = vor.u32 %v770, %v768
      %v774 = vshll.u32 %v620, 16
      %v776 = vrot.slane %v774, 1
      %v777 = vsel %vm661, %v772, %v776
      %v778 = vshrl.u32 %v620, 16
      %v780 = vor.u32 %v778, %v776
      %v782 = vshll.u32 %v621, 16
      %v784 = vrot.slane %v782, 1
      %v785 = vsel %vm661, %v780, %v784
      %v786 = vshrl.u32 %v621, 16
      %v788 = vor.u32 %v786, %v784
      %v790 = vshll.u32 %v622, 16
      %v792 = vrot.slane %v790, 1
      %v793 = vsel %vm661, %v788, %v792
      %v794 = vshrl.u32 %v622, 16
      %v796 = vor.u32 %v794, %v792
      %v798 = vshll.u32 %v623, 16
      %v800 = vrot.slane %v798, 1
      %v801 = vsel %vm661, %v796, %v800
      %v802 = vshrl.u32 %v623, 16
      %v804 = vor.u32 %v802, %v800
      %v806 = vshll.u32 %v624, 16
      %v808 = vrot.slane %v806, 1
      %v809 = vsel %vm661, %v804, %v808
      %v810 = vshrl.u32 %v624, 16
      %v812 = vor.u32 %v810, %v808
      %v814 = vshll.u32 %v625, 16
      %v816 = vrot.slane %v814, 1
      %v817 = vsel %vm661, %v812, %v816
      %v818 = vshrl.u32 %v625, 16
      %v820 = vor.u32 %v818, %v816
      %v822 = vshll.u32 %v626, 16
      %v824 = vrot.slane %v822, 1
      %v825 = vsel %vm661, %v820, %v824
      %v826 = vshrl.u32 %v626, 16
      %v828 = vor.u32 %v826, %v824
      %v830 = vshll.u32 %v627, 16
      %v832 = vrot.slane %v830, 1
      %v833 = vsel %vm661, %v828, %v832
      %v834 = vshrl.u32 %v627, 16
      %v836 = vor.u32 %v834, %v832
      %v838 = vshll.u32 %v628, 16
      %v840 = vrot.slane %v838, 1
      %v841 = vsel %vm661, %v836, %v840
      %v842 = vshrl.u32 %v628, 16
      %v844 = vor.u32 %v842, %v840
      %v846 = vshll.u32 %v629, 16
      %v848 = vrot.slane %v846, 1
      %v849 = vsel %vm661, %v844, %v848
      %v850 = vshrl.u32 %v629, 16
      %v852 = vor.u32 %v850, %v848
      %v854 = vshll.u32 %v630, 16
      %v856 = vrot.slane %v854, 1
      %v857 = vsel %vm661, %v852, %v856
      %v858 = vshrl.u32 %v630, 16
      %v860 = vor.u32 %v858, %v856
      %v862 = vshll.u32 %v631, 16
      %v864 = vrot.slane %v862, 1
      %v865 = vsel %vm661, %v860, %v864
      %v866 = vshrl.u32 %v631, 16
      %v868 = vor.u32 %v866, %v864
      %v870 = vshll.u32 %v660, 16
      %v872 = vrot.slane %v870, 1
      %v873 = vsel %vm661, %v868, %v872
      %vm900 = vcmask 1046528
      %v901 = vrot.slane %v606, 1
      %v902 = vrot.slane %v607, 1
      %v903 = vsel %vm900, %v901, %v902
      %v904 = vrot.slane %v608, 1
      %v905 = vsel %vm900, %v902, %v904
      %v906 = vrot.slane %v609, 1
      %v907 = vsel %vm900, %v904, %v906
      %v908 = vrot.slane %v610, 1
      %v909 = vsel %vm900, %v906, %v908
      %v910 = vrot.slane %v611, 1
      %v911 = vsel %vm900, %v908, %v910
      %v912 = vrot.slane %v612, 1
      %v913 = vsel %vm900, %v910, %v912
      %v914 = vrot.slane %v613, 1
      %v915 = vsel %vm900, %v912, %v914
      %v916 = vrot.slane %v614, 1
      %v917 = vsel %vm900, %v914, %v916
      %v918 = vrot.slane %v615, 1
      %v919 = vsel %vm900, %v916, %v918
      %v920 = vrot.slane %v616, 1
      %v921 = vsel %vm900, %v918, %v920
      %v922 = vrot.slane %v617, 1
      %v923 = vsel %vm900, %v920, %v922
      %v924 = vrot.slane %v618, 1
      %v925 = vsel %vm900, %v922, %v924
      %v926 = vrot.slane %v619, 1
      %v927 = vsel %vm900, %v924, %v926
      %v928 = vrot.slane %v620, 1
      %v929 = vsel %vm900, %v926, %v928
      %v930 = vrot.slane %v621, 1
      %v931 = vsel %vm900, %v928, %v930
      %v932 = vrot.slane %v622, 1
      %v933 = vsel %vm900, %v930, %v932
      %v934 = vrot.slane %v623, 1
      %v935 = vsel %vm900, %v932, %v934
      %v936 = vrot.slane %v624, 1
      %v937 = vsel %vm900, %v934, %v936
      %v938 = vrot.slane %v625, 1
      %v939 = vsel %vm900, %v936, %v938
      %v940 = vrot.slane %v626, 1
      %v941 = vsel %vm900, %v938, %v940
      %v942 = vrot.slane %v627, 1
      %v943 = vsel %vm900, %v940, %v942
      %v944 = vrot.slane %v628, 1
      %v945 = vsel %vm900, %v942, %v944
      %v946 = vrot.slane %v629, 1
      %v947 = vsel %vm900, %v944, %v946
      %v948 = vrot.slane %v630, 1
      %v949 = vsel %vm900, %v946, %v948
      %v950 = vrot.slane %v631, 1
      %v951 = vsel %vm900, %v948, %v950
      %v952 = vrot.slane %v660, 1
      %v953 = vsel %vm900, %v950, %v952
      %v980 = vld [vmem:[%s3] sm:$0xf]
      %v981 = vld [vmem:[%s3 + $0x4] sm:$0xf]
      %v982 = vld [vmem:[%s3 + $0x8] sm:$0xf]
      %v983 = vld [vmem:[%s3 + $0xc] sm:$0xf]
      %v984 = vld [vmem:[%s3 + $0x10] sm:$0xf]
      %v985 = vld [vmem:[%s3 + $0x14] sm:$0xf]
      %v986 = vld [vmem:[%s3 + $0x18] sm:$0xf]
      %v987 = vld [vmem:[%s3 + $0x1c] sm:$0xf]
      %v988 = vld [vmem:[%s3 + $0x20] sm:$0xf]
      %v989 = vld [vmem:[%s3 + $0x24] sm:$0xf]
      %v990 = vld [vmem:[%s3 + $0x28] sm:$0xf]
      %v991 = vld [vmem:[%s3 + $0x2c] sm:$0xf]
      %v992 = vld [vmem:[%s3 + $0x30] sm:$0xf]
      %v993 = vld [vmem:[%s3 + $0x34] sm:$0xf]
      %v994 = vld [vmem:[%s3 + $0x38] sm:$0xf]
      %v995 = vld [vmem:[%s3 + $0x3c] sm:$0xf]
      %v996 = vld [vmem:[%s3 + $0x40] sm:$0xf]
      %v997 = vld [vmem:[%s3 + $0x44] sm:$0xf]
      %v998 = vld [vmem:[%s3 + $0x48] sm:$0xf]
      %v999 = vld [vmem:[%s3 + $0x4c] sm:$0xf]
      %v1000 = vld [vmem:[%s3 + $0x50] sm:$0xf]
      %v1001 = vld [vmem:[%s3 + $0x54] sm:$0xf]
      %v1002 = vld [vmem:[%s3 + $0x58] sm:$0xf]
      %v1003 = vld [vmem:[%s3 + $0x5c] sm:$0xf]
      %v1004 = vld [vmem:[%s3 + $0x60] sm:$0xf]
      %v1005 = vld [vmem:[%s3 + $0x64] sm:$0xf]
      %v1006 = vld [vmem:[%s3 + $0x68] sm:$0xf]
      %v1007 = vld [vmem:[%s3 + $0x6c] sm:$0xf]
      %v1008 = vld [vmem:[%s3 + $0x70] sm:$0xf]
      %v1009 = vld [vmem:[%s3 + $0x74] sm:$0xf]
      %v1010 = vld [vmem:[%s3 + $0x78] sm:$0xf]
      %v1011 = vld [vmem:[%s3 + $0x7c] sm:$0xf]
      %v1012 = vld [vmem:[%s3 + $0x80] sm:$0xf]
      %v1013 = vld [vmem:[%s3 + $0x84] sm:$0xf]
      %v1014 = vld [vmem:[%s3 + $0x88] sm:$0xf]
      %v1015 = vld [vmem:[%s3 + $0x8c] sm:$0xf]
      %v1016 = vld [vmem:[%s3 + $0x90] sm:$0xf]
      %v1017 = vld [vmem:[%s3 + $0x94] sm:$0xf]
      %v1018 = vld [vmem:[%s3 + $0x98] sm:$0xf]
      %v1019 = vld [vmem:[%s3 + $0x9c] sm:$0xf]
      %v1020 = vld [vmem:[%s3 + $0xa0] sm:$0xf]
      %v1021 = vld [vmem:[%s3 + $0xa4] sm:$0xf]
      %v1022 = vld [vmem:[%s3 + $0xa8] sm:$0xf]
      %v1023 = vld [vmem:[%s3 + $0xac] sm:$0xf]
      %v1024 = vld [vmem:[%s3 + $0xb0] sm:$0xf]
      %v1025 = vld [vmem:[%s3 + $0xb4] sm:$0xf]
      %v1026 = vld [vmem:[%s3 + $0xb8] sm:$0xf]
      %v1027 = vld [vmem:[%s3 + $0xbc] sm:$0xf]
      %s1028 = scalar_lea.vmem %s3, 192
      %v1029 = vld [vmem:[%s1028] sm:$0xf]
      %v1030 = vld [vmem:[%s1028 + $0x4] sm:$0xf]
      %v1031 = vld [vmem:[%s1028 + $0x8] sm:$0xf]
      %v1032 = vld [vmem:[%s1028 + $0xc] sm:$0xf]
      %v1033 = vld [vmem:[%s1028 + $0x10] sm:$0xf]
      %v1034 = vld [vmem:[%s1028 + $0x14] sm:$0xf]
      %v1035 = vld [vmem:[%s1028 + $0x18] sm:$0xf]
      %v1036 = vld [vmem:[%s1028 + $0x1c] sm:$0xf]
      %v1037 = vld [vmem:[%s1028 + $0x20] sm:$0xf]
      %v1038 = vld [vmem:[%s1028 + $0x24] sm:$0xf]
      %v1039 = vld [vmem:[%s1028 + $0x28] sm:$0xf]
      %v1040 = vld [vmem:[%s1028 + $0x2c] sm:$0xf]
      %v1041 = vld [vmem:[%s1028 + $0x30] sm:$0xf]
      %v1042 = vld [vmem:[%s1028 + $0x34] sm:$0xf]
      %v1043 = vld [vmem:[%s1028 + $0x38] sm:$0xf]
      %v1044 = vld [vmem:[%s1028 + $0x3c] sm:$0xf]
      %v1045 = vld [vmem:[%s1028 + $0x40] sm:$0xf]
      %v1046 = vld [vmem:[%s1028 + $0x44] sm:$0xf]
      %v1047 = vld [vmem:[%s1028 + $0x48] sm:$0xf]
      %v1048 = vld [vmem:[%s1028 + $0x4c] sm:$0xf]
      %v1049 = vld [vmem:[%s1028 + $0x50] sm:$0xf]
      %v1050 = vld [vmem:[%s1028 + $0x54] sm:$0xf]
      %v1051 = vld [vmem:[%s1028 + $0x58] sm:$0xf]
      %v1052 = vld [vmem:[%s1028 + $0x5c] sm:$0xf]
      %v1053 = vld [vmem:[%s1028 + $0x60] sm:$0xf]
      %v1054 = vld [vmem:[%s1028 + $0x64] sm:$0xf]
      %v1055 = vld [vmem:[%s1028 + $0x68] sm:$0xf]
      %v1056 = vld [vmem:[%s1028 + $0x6c] sm:$0xf]
      %v1057 = vld [vmem:[%s1028 + $0x70] sm:$0xf]
      %v1058 = vld [vmem:[%s1028 + $0x74] sm:$0xf]
      %v1059 = vld [vmem:[%s1028 + $0x78] sm:$0xf]
      %v1060 = vld [vmem:[%s1028 + $0x7c] sm:$0xf]
      %v1061 = vld [vmem:[%s1028 + $0x80] sm:$0xf]
      %v1062 = vld [vmem:[%s1028 + $0x84] sm:$0xf]
      %v1063 = vld [vmem:[%s1028 + $0x88] sm:$0xf]
      %v1064 = vld [vmem:[%s1028 + $0x8c] sm:$0xf]
      %v1065 = vld [vmem:[%s1028 + $0x90] sm:$0xf]
      %v1066 = vld [vmem:[%s1028 + $0x94] sm:$0xf]
      %v1067 = vld [vmem:[%s1028 + $0x98] sm:$0xf]
      %v1068 = vld [vmem:[%s1028 + $0x9c] sm:$0xf]
      %v1069 = vld [vmem:[%s1028 + $0xa0] sm:$0xf]
      %v1070 = vld [vmem:[%s1028 + $0xa4] sm:$0xf]
      %v1071 = vld [vmem:[%s1028 + $0xa8] sm:$0xf]
      %v1072 = vld [vmem:[%s1028 + $0xac] sm:$0xf]
      %v1073 = vld [vmem:[%s1028 + $0xb0] sm:$0xf]
      %v1074 = vld [vmem:[%s1028 + $0xb4] sm:$0xf]
      %v1075 = vld [vmem:[%s1028 + $0xb8] sm:$0xf]
      %v1076 = vld [vmem:[%s1028 + $0xbc] sm:$0xf]
      %v1125 = vunpack.c.l.b16 %v1029
      %v1126 = vunpack.c.l.b16 %v1030
      %v1127 = vunpack.c.l.b16 %v1031
      %v1128 = vunpack.c.l.b16 %v1032
      %v1129 = vunpack.c.l.b16 %v1033
      %v1130 = vunpack.c.l.b16 %v1034
      %v1131 = vunpack.c.l.b16 %v1035
      %v1132 = vunpack.c.l.b16 %v1036
      %v1133 = vunpack.c.l.b16 %v1037
      %v1134 = vunpack.c.l.b16 %v1038
      %v1135 = vunpack.c.l.b16 %v1039
      %v1136 = vunpack.c.l.b16 %v1040
      %v1137 = vunpack.c.l.b16 %v1041
      %v1138 = vunpack.c.l.b16 %v1042
      %v1139 = vunpack.c.l.b16 %v1043
      %v1140 = vunpack.c.l.b16 %v1044
      %v1141 = vunpack.c.l.b16 %v1045
      %v1142 = vunpack.c.l.b16 %v1046
      %v1143 = vunpack.c.l.b16 %v1047
      %v1144 = vunpack.c.l.b16 %v1048
      %v1145 = vunpack.c.l.b16 %v1049
      %v1146 = vunpack.c.l.b16 %v1050
      %v1147 = vunpack.c.l.b16 %v1051
      %v1148 = vunpack.c.l.b16 %v1052
      %v1149 = vunpack.c.l.b16 %v1053
      %v1150 = vunpack.c.l.b16 %v1054
      %v1151 = vunpack.c.l.b16 %v1055
      %v1152 = vunpack.c.l.b16 %v1056
      %v1153 = vunpack.c.l.b16 %v1057
      %v1154 = vunpack.c.l.b16 %v1058
      %v1155 = vunpack.c.l.b16 %v1059
      %v1156 = vunpack.c.l.b16 %v1060
      %v1157 = vunpack.c.l.b16 %v1061
      %v1158 = vunpack.c.l.b16 %v1062
      %v1159 = vunpack.c.l.b16 %v1063
      %v1160 = vunpack.c.l.b16 %v1064
      %v1161 = vunpack.c.l.b16 %v1065
      %v1162 = vunpack.c.l.b16 %v1066
      %v1163 = vunpack.c.l.b16 %v1067
      %v1164 = vunpack.c.l.b16 %v1068
      %v1165 = vunpack.c.l.b16 %v1069
      %v1166 = vunpack.c.l.b16 %v1070
      %v1167 = vunpack.c.l.b16 %v1071
      %v1168 = vunpack.c.l.b16 %v1072
      %v1169 = vunpack.c.l.b16 %v1073
      %v1170 = vunpack.c.l.b16 %v1074
      %v1171 = vunpack.c.l.b16 %v1075
      %v1172 = vunpack.c.l.b16 %v1076
      %v1173 = vpack.c.b16 %v1126, %v1125
      %v1174 = vpack.c.b16 %v1128, %v1127
      %v1175 = vpack.c.b16 %v1130, %v1129
      %v1176 = vpack.c.b16 %v1132, %v1131
      %v1177 = vpack.c.b16 %v1134, %v1133
      %v1178 = vpack.c.b16 %v1136, %v1135
      %v1179 = vpack.c.b16 %v1138, %v1137
      %v1180 = vpack.c.b16 %v1140, %v1139
      %v1181 = vpack.c.b16 %v1142, %v1141
      %v1182 = vpack.c.b16 %v1144, %v1143
      %v1183 = vpack.c.b16 %v1146, %v1145
      %v1184 = vpack.c.b16 %v1148, %v1147
      %v1185 = vpack.c.b16 %v1150, %v1149
      %v1186 = vpack.c.b16 %v1152, %v1151
      %v1187 = vpack.c.b16 %v1154, %v1153
      %v1188 = vpack.c.b16 %v1156, %v1155
      %v1189 = vpack.c.b16 %v1158, %v1157
      %v1190 = vpack.c.b16 %v1160, %v1159
      %v1191 = vpack.c.b16 %v1162, %v1161
      %v1192 = vpack.c.b16 %v1164, %v1163
      %v1193 = vpack.c.b16 %v1166, %v1165
      %v1194 = vpack.c.b16 %v1168, %v1167
      %v1195 = vpack.c.b16 %v1170, %v1169
      %v1196 = vpack.c.b16 %v1172, %v1171
      %1221 = vmatpush.bf16.msra.mxu0 %v1180
      %1222 = vmatpush.bf16.msra.mxu0 %v1179
      %1223 = vmatpush.bf16.msra.mxu0 %v1178
      %1224 = vmatpush.bf16.msra.mxu0 %v1177
      %1225 = vmatpush.bf16.msra.mxu0 %v1176
      %1226 = vmatpush.bf16.msra.mxu0 %v1175
      %1227 = vmatpush.bf16.msra.mxu0 %v1174
      %1228 = vmatpush.bf16.msra.mxu0 %v1173
      %1229 = vmatmul.bf16.gmra.mxu0 %v608
      %v1230 = vpop.f32.mrf.mxu0
      %v1231 = vadd.f32 0.0, %v1230
      %v1232 = vpop.f32.mrf.mxu0
      %v1233 = vadd.f32 0.0, %v1232
      %1234 = vmatmul.bf16.gmra.mxu0 %v609
      %v1235 = vpop.f32.mrf.mxu0
      %v1236 = vadd.f32 0.0, %v1235
      %v1237 = vpop.f32.mrf.mxu0
      %v1238 = vadd.f32 0.0, %v1237
      %1239 = vmatmul.bf16.gmra.mxu0 %v610
      %v1240 = vpop.f32.mrf.mxu0
      %v1241 = vadd.f32 0.0, %v1240
      %v1242 = vpop.f32.mrf.mxu0
      %v1243 = vadd.f32 0.0, %v1242
      %1244 = vmatmul.bf16.gmra.mxu0 %v611
      %v1245 = vpop.f32.mrf.mxu0
      %v1246 = vadd.f32 0.0, %v1245
      %v1247 = vpop.f32.mrf.mxu0
      %v1248 = vadd.f32 0.0, %v1247
      %1249 = vmatmul.bf16.gmra.mxu0 %v612
      %v1250 = vpop.f32.mrf.mxu0
      %v1251 = vadd.f32 0.0, %v1250
      %v1252 = vpop.f32.mrf.mxu0
      %v1253 = vadd.f32 0.0, %v1252
      %1254 = vmatmul.bf16.gmra.mxu0 %v613
      %v1255 = vpop.f32.mrf.mxu0
      %v1256 = vadd.f32 0.0, %v1255
      %v1257 = vpop.f32.mrf.mxu0
      %v1258 = vadd.f32 0.0, %v1257
      %1259 = vmatmul.bf16.gmra.mxu0 %v614
      %v1260 = vpop.f32.mrf.mxu0
      %v1261 = vadd.f32 0.0, %v1260
      %v1262 = vpop.f32.mrf.mxu0
      %v1263 = vadd.f32 0.0, %v1262
      %1264 = vmatmul.bf16.gmra.mxu0 %v615
      %v1265 = vpop.f32.mrf.mxu0
      %v1266 = vadd.f32 0.0, %v1265
      %v1267 = vpop.f32.mrf.mxu0
      %v1268 = vadd.f32 0.0, %v1267
      %1269 = vmatmul.bf16.gmra.mxu0 %v616
      %v1270 = vpop.f32.mrf.mxu0
      %v1271 = vadd.f32 0.0, %v1270
      %v1272 = vpop.f32.mrf.mxu0
      %v1273 = vadd.f32 0.0, %v1272
      %1274 = vmatmul.bf16.gmra.mxu0 %v617
      %v1275 = vpop.f32.mrf.mxu0
      %v1276 = vadd.f32 0.0, %v1275
      %v1277 = vpop.f32.mrf.mxu0
      %v1278 = vadd.f32 0.0, %v1277
      %1279 = vmatmul.bf16.gmra.mxu0 %v618
      %v1280 = vpop.f32.mrf.mxu0
      %v1281 = vadd.f32 0.0, %v1280
      %v1282 = vpop.f32.mrf.mxu0
      %v1283 = vadd.f32 0.0, %v1282
      %1284 = vmatmul.bf16.gmra.mxu0 %v619
      %v1285 = vpop.f32.mrf.mxu0
      %v1286 = vadd.f32 0.0, %v1285
      %v1287 = vpop.f32.mrf.mxu0
      %v1288 = vadd.f32 0.0, %v1287
      %1289 = vmatmul.bf16.gmra.mxu0 %v620
      %v1290 = vpop.f32.mrf.mxu0
      %v1291 = vadd.f32 0.0, %v1290
      %v1292 = vpop.f32.mrf.mxu0
      %v1293 = vadd.f32 0.0, %v1292
      %1294 = vmatmul.bf16.gmra.mxu0 %v621
      %v1295 = vpop.f32.mrf.mxu0
      %v1296 = vadd.f32 0.0, %v1295
      %v1297 = vpop.f32.mrf.mxu0
      %v1298 = vadd.f32 0.0, %v1297
      %1299 = vmatmul.bf16.gmra.mxu0 %v622
      %v1300 = vpop.f32.mrf.mxu0
      %v1301 = vadd.f32 0.0, %v1300
      %v1302 = vpop.f32.mrf.mxu0
      %v1303 = vadd.f32 0.0, %v1302
      %1304 = vmatmul.bf16.gmra.mxu0 %v623
      %v1305 = vpop.f32.mrf.mxu0
      %v1306 = vadd.f32 0.0, %v1305
      %v1307 = vpop.f32.mrf.mxu0
      %v1308 = vadd.f32 0.0, %v1307
      %1309 = vmatmul.bf16.gmra.mxu0 %v624
      %v1310 = vpop.f32.mrf.mxu0
      %v1311 = vadd.f32 0.0, %v1310
      %v1312 = vpop.f32.mrf.mxu0
      %v1313 = vadd.f32 0.0, %v1312
      %1314 = vmatmul.bf16.gmra.mxu0 %v625
      %v1315 = vpop.f32.mrf.mxu0
      %v1316 = vadd.f32 0.0, %v1315
      %v1317 = vpop.f32.mrf.mxu0
      %v1318 = vadd.f32 0.0, %v1317
      %1319 = vmatmul.bf16.gmra.mxu0 %v626
      %v1320 = vpop.f32.mrf.mxu0
      %v1321 = vadd.f32 0.0, %v1320
      %v1322 = vpop.f32.mrf.mxu0
      %v1323 = vadd.f32 0.0, %v1322
      %1324 = vmatmul.bf16.gmra.mxu0 %v627
      %v1325 = vpop.f32.mrf.mxu0
      %v1326 = vadd.f32 0.0, %v1325
      %v1327 = vpop.f32.mrf.mxu0
      %v1328 = vadd.f32 0.0, %v1327
      %1329 = vmatmul.bf16.gmra.mxu0 %v628
      %v1330 = vpop.f32.mrf.mxu0
      %v1331 = vadd.f32 0.0, %v1330
      %v1332 = vpop.f32.mrf.mxu0
      %1333 = vmatmul.bf16.gmra.mxu0 %v629
      %v1334 = vpop.f32.mrf.mxu0
      %v1335 = vpop.f32.mrf.mxu0
      %1336 = vdwg.mxu0
      %1337 = vmatpush.bf16.msra.mxu0 %v1188
      %1338 = vmatpush.bf16.msra.mxu0 %v1187
      %1339 = vmatpush.bf16.msra.mxu0 %v1186
      %1340 = vmatpush.bf16.msra.mxu0 %v1185
      %1341 = vmatpush.bf16.msra.mxu0 %v1184
      %1342 = vmatpush.bf16.msra.mxu0 %v1183
      %1343 = vmatpush.bf16.msra.mxu0 %v1182
      %1344 = vmatpush.bf16.msra.mxu0 %v1181
      %1345 = vmatmul.bf16.gmra.mxu0 %v689
      %v1346 = vpop.f32.mrf.mxu0
      %v1347 = vadd.f32 %v1231, %v1346
      %v1348 = vpop.f32.mrf.mxu0
      %v1349 = vadd.f32 %v1233, %v1348
      %1350 = vmatmul.bf16.gmra.mxu0 %v697
      %v1351 = vpop.f32.mrf.mxu0
      %v1352 = vadd.f32 %v1236, %v1351
      %v1353 = vpop.f32.mrf.mxu0
      %v1354 = vadd.f32 %v1238, %v1353
      %1355 = vmatmul.bf16.gmra.mxu0 %v705
      %v1356 = vpop.f32.mrf.mxu0
      %v1357 = vadd.f32 %v1241, %v1356
      %v1358 = vpop.f32.mrf.mxu0
      %v1359 = vadd.f32 %v1243, %v1358
      %1360 = vmatmul.bf16.gmra.mxu0 %v713
      %v1361 = vpop.f32.mrf.mxu0
      %v1362 = vadd.f32 %v1246, %v1361
      %v1363 = vpop.f32.mrf.mxu0
      %v1364 = vadd.f32 %v1248, %v1363
      %1365 = vmatmul.bf16.gmra.mxu0 %v721
      %v1366 = vpop.f32.mrf.mxu0
      %v1367 = vadd.f32 %v1251, %v1366
      %v1368 = vpop.f32.mrf.mxu0
      %v1369 = vadd.f32 %v1253, %v1368
      %1370 = vmatmul.bf16.gmra.mxu0 %v729
      %v1371 = vpop.f32.mrf.mxu0
      %v1372 = vadd.f32 %v1256, %v1371
      %v1373 = vpop.f32.mrf.mxu0
      %v1374 = vadd.f32 %v1258, %v1373
      %1375 = vmatmul.bf16.gmra.mxu0 %v737
      %v1376 = vpop.f32.mrf.mxu0
      %v1377 = vadd.f32 %v1261, %v1376
      %v1378 = vpop.f32.mrf.mxu0
      %v1379 = vadd.f32 %v1263, %v1378
      %1380 = vmatmul.bf16.gmra.mxu0 %v745
      %v1381 = vpop.f32.mrf.mxu0
      %v1382 = vadd.f32 %v1266, %v1381
      %v1383 = vpop.f32.mrf.mxu0
      %v1384 = vadd.f32 %v1268, %v1383
      %1385 = vmatmul.bf16.gmra.mxu0 %v753
      %v1386 = vpop.f32.mrf.mxu0
      %v1387 = vadd.f32 %v1271, %v1386
      %v1388 = vpop.f32.mrf.mxu0
      %v1389 = vadd.f32 %v1273, %v1388
      %1390 = vmatmul.bf16.gmra.mxu0 %v761
      %v1391 = vpop.f32.mrf.mxu0
      %v1392 = vadd.f32 %v1276, %v1391
      %v1393 = vpop.f32.mrf.mxu0
      %v1394 = vadd.f32 %v1278, %v1393
      %1395 = vmatmul.bf16.gmra.mxu0 %v769
      %v1396 = vpop.f32.mrf.mxu0
      %v1397 = vadd.f32 %v1281, %v1396
      %v1398 = vpop.f32.mrf.mxu0
      %v1399 = vadd.f32 %v1283, %v1398
      %1400 = vmatmul.bf16.gmra.mxu0 %v777
      %v1401 = vpop.f32.mrf.mxu0
      %v1402 = vadd.f32 %v1286, %v1401
      %v1403 = vpop.f32.mrf.mxu0
      %v1404 = vadd.f32 %v1288, %v1403
      %1405 = vmatmul.bf16.gmra.mxu0 %v785
      %v1406 = vpop.f32.mrf.mxu0
      %v1407 = vadd.f32 %v1291, %v1406
      %v1408 = vpop.f32.mrf.mxu0
      %v1409 = vadd.f32 %v1293, %v1408
      %1410 = vmatmul.bf16.gmra.mxu0 %v793
      %v1411 = vpop.f32.mrf.mxu0
      %v1412 = vadd.f32 %v1296, %v1411
      %v1413 = vpop.f32.mrf.mxu0
      %v1414 = vadd.f32 %v1298, %v1413
      %1415 = vmatmul.bf16.gmra.mxu0 %v801
      %v1416 = vpop.f32.mrf.mxu0
      %v1417 = vadd.f32 %v1301, %v1416
      %v1418 = vpop.f32.mrf.mxu0
      %v1419 = vadd.f32 %v1303, %v1418
      %1420 = vmatmul.bf16.gmra.mxu0 %v809
      %v1421 = vpop.f32.mrf.mxu0
      %v1422 = vadd.f32 %v1306, %v1421
      %v1423 = vpop.f32.mrf.mxu0
      %v1424 = vadd.f32 %v1308, %v1423
      %1425 = vmatmul.bf16.gmra.mxu0 %v817
      %v1426 = vpop.f32.mrf.mxu0
      %v1427 = vadd.f32 %v1311, %v1426
      %v1428 = vpop.f32.mrf.mxu0
      %v1429 = vadd.f32 %v1313, %v1428
      %1430 = vmatmul.bf16.gmra.mxu0 %v825
      %v1431 = vpop.f32.mrf.mxu0
      %v1432 = vadd.f32 %v1316, %v1431
      %v1433 = vpop.f32.mrf.mxu0
      %v1434 = vadd.f32 %v1318, %v1433
      %1435 = vmatmul.bf16.gmra.mxu0 %v833
      %v1436 = vpop.f32.mrf.mxu0
      %v1437 = vadd.f32 %v1321, %v1436
      %v1438 = vpop.f32.mrf.mxu0
      %v1439 = vadd.f32 %v1323, %v1438
      %1440 = vmatmul.bf16.gmra.mxu0 %v841
      %v1441 = vpop.f32.mrf.mxu0
      %v1442 = vadd.f32 %v1326, %v1441
      %v1443 = vpop.f32.mrf.mxu0
      %v1444 = vadd.f32 %v1328, %v1443
      %1445 = vmatmul.bf16.gmra.mxu0 %v849
      %v1446 = vpop.f32.mrf.mxu0
      %v1447 = vadd.f32 %v1331, %v1446
      %v1448 = vpop.f32.mrf.mxu0
      %1449 = vmatmul.bf16.gmra.mxu0 %v857
      %v1450 = vpop.f32.mrf.mxu0
      %v1451 = vpop.f32.mrf.mxu0
      %1452 = vdwg.mxu0
      %1453 = vmatpush.bf16.msra.mxu0 %v1196
      %1454 = vmatpush.bf16.msra.mxu0 %v1195
      %1455 = vmatpush.bf16.msra.mxu0 %v1194
      %1456 = vmatpush.bf16.msra.mxu0 %v1193
      %1457 = vmatpush.bf16.msra.mxu0 %v1192
      %1458 = vmatpush.bf16.msra.mxu0 %v1191
      %1459 = vmatpush.bf16.msra.mxu0 %v1190
      %1460 = vmatpush.bf16.msra.mxu0 %v1189
      %1461 = vmatmul.bf16.gmra.mxu0 %v907
      %v1462 = vpop.f32.mrf.mxu0
      %v1463 = vadd.f32 %v1347, %v1462
      %v1464 = vpop.f32.mrf.mxu0
      %v1465 = vadd.f32 %v1349, %v1464
      %1466 = vmatmul.bf16.gmra.mxu0 %v909
      %v1467 = vpop.f32.mrf.mxu0
      %v1468 = vadd.f32 %v1352, %v1467
      %v1469 = vpop.f32.mrf.mxu0
      %v1470 = vadd.f32 %v1354, %v1469
      %1471 = vmatmul.bf16.gmra.mxu0 %v911
      %v1472 = vpop.f32.mrf.mxu0
      %v1473 = vadd.f32 %v1357, %v1472
      %v1474 = vpop.f32.mrf.mxu0
      %v1475 = vadd.f32 %v1359, %v1474
      %1476 = vmatmul.bf16.gmra.mxu0 %v913
      %v1477 = vpop.f32.mrf.mxu0
      %v1478 = vadd.f32 %v1362, %v1477
      %v1479 = vpop.f32.mrf.mxu0
      %v1480 = vadd.f32 %v1364, %v1479
      %1481 = vmatmul.bf16.gmra.mxu0 %v915
      %v1482 = vpop.f32.mrf.mxu0
      %v1483 = vadd.f32 %v1367, %v1482
      %v1484 = vpop.f32.mrf.mxu0
      %v1485 = vadd.f32 %v1369, %v1484
      %1486 = vmatmul.bf16.gmra.mxu0 %v917
      %v1487 = vpop.f32.mrf.mxu0
      %v1488 = vadd.f32 %v1372, %v1487
      %v1489 = vpop.f32.mrf.mxu0
      %v1490 = vadd.f32 %v1374, %v1489
      %1491 = vmatmul.bf16.gmra.mxu0 %v919
      %v1492 = vpop.f32.mrf.mxu0
      %v1493 = vadd.f32 %v1377, %v1492
      %v1494 = vpop.f32.mrf.mxu0
      %v1495 = vadd.f32 %v1379, %v1494
      %1496 = vmatmul.bf16.gmra.mxu0 %v921
      %v1497 = vpop.f32.mrf.mxu0
      %v1498 = vadd.f32 %v1382, %v1497
      %v1499 = vpop.f32.mrf.mxu0
      %v1500 = vadd.f32 %v1384, %v1499
      %1501 = vmatmul.bf16.gmra.mxu0 %v923
      %v1502 = vpop.f32.mrf.mxu0
      %v1503 = vadd.f32 %v1387, %v1502
      %v1504 = vpop.f32.mrf.mxu0
      %v1505 = vadd.f32 %v1389, %v1504
      %1506 = vmatmul.bf16.gmra.mxu0 %v925
      %v1507 = vpop.f32.mrf.mxu0
      %v1508 = vadd.f32 %v1392, %v1507
      %v1509 = vpop.f32.mrf.mxu0
      %v1510 = vadd.f32 %v1394, %v1509
      %1511 = vmatmul.bf16.gmra.mxu0 %v927
      %v1512 = vpop.f32.mrf.mxu0
      %v1513 = vadd.f32 %v1397, %v1512
      %v1514 = vpop.f32.mrf.mxu0
      %v1515 = vadd.f32 %v1399, %v1514
      %1516 = vmatmul.bf16.gmra.mxu0 %v929
      %v1517 = vpop.f32.mrf.mxu0
      %v1518 = vadd.f32 %v1402, %v1517
      %v1519 = vpop.f32.mrf.mxu0
      %v1520 = vadd.f32 %v1404, %v1519
      %1521 = vmatmul.bf16.gmra.mxu0 %v931
      %v1522 = vpop.f32.mrf.mxu0
      %v1523 = vadd.f32 %v1407, %v1522
      %v1524 = vpop.f32.mrf.mxu0
      %v1525 = vadd.f32 %v1409, %v1524
      %1526 = vmatmul.bf16.gmra.mxu0 %v933
      %v1527 = vpop.f32.mrf.mxu0
      %v1528 = vadd.f32 %v1412, %v1527
      %v1529 = vpop.f32.mrf.mxu0
      %v1530 = vadd.f32 %v1414, %v1529
      %1531 = vmatmul.bf16.gmra.mxu0 %v935
      %v1532 = vpop.f32.mrf.mxu0
      %v1533 = vadd.f32 %v1417, %v1532
      %v1534 = vpop.f32.mrf.mxu0
      %v1535 = vadd.f32 %v1419, %v1534
      %1536 = vmatmul.bf16.gmra.mxu0 %v937
      %v1537 = vpop.f32.mrf.mxu0
      %v1538 = vadd.f32 %v1422, %v1537
      %v1539 = vpop.f32.mrf.mxu0
      %v1540 = vadd.f32 %v1424, %v1539
      %1541 = vmatmul.bf16.gmra.mxu0 %v939
      %v1542 = vpop.f32.mrf.mxu0
      %v1543 = vadd.f32 %v1427, %v1542
      %v1544 = vpop.f32.mrf.mxu0
      %v1545 = vadd.f32 %v1429, %v1544
      %1546 = vmatmul.bf16.gmra.mxu0 %v941
      %v1547 = vpop.f32.mrf.mxu0
      %v1548 = vadd.f32 %v1432, %v1547
      %v1549 = vpop.f32.mrf.mxu0
      %v1550 = vadd.f32 %v1434, %v1549
      %1551 = vmatmul.bf16.gmra.mxu0 %v943
      %v1552 = vpop.f32.mrf.mxu0
      %v1553 = vadd.f32 %v1437, %v1552
      %v1554 = vpop.f32.mrf.mxu0
      %v1555 = vadd.f32 %v1439, %v1554
      %1556 = vmatmul.bf16.gmra.mxu0 %v945
      %v1557 = vpop.f32.mrf.mxu0
      %v1558 = vadd.f32 %v1442, %v1557
      %v1559 = vpop.f32.mrf.mxu0
      %v1560 = vadd.f32 %v1444, %v1559
      %1561 = vmatmul.bf16.gmra.mxu0 %v947
      %v1562 = vpop.f32.mrf.mxu0
      %v1563 = vadd.f32 %v1447, %v1562
      %v1564 = vpop.f32.mrf.mxu0
      %1565 = vmatmul.bf16.gmra.mxu0 %v949
      %v1566 = vpop.f32.mrf.mxu0
      %v1567 = vpop.f32.mrf.mxu0
      %1568 = vdwg.mxu0
      %v1617 = vunpack.c.l.b16 %v980
      %v1618 = vunpack.c.l.b16 %v981
      %v1619 = vunpack.c.l.b16 %v982
      %v1620 = vunpack.c.l.b16 %v983
      %v1621 = vunpack.c.l.b16 %v984
      %v1622 = vunpack.c.l.b16 %v985
      %v1623 = vunpack.c.l.b16 %v986
      %v1624 = vunpack.c.l.b16 %v987
      %v1625 = vunpack.c.l.b16 %v988
      %v1626 = vunpack.c.l.b16 %v989
      %v1627 = vunpack.c.l.b16 %v990
      %v1628 = vunpack.c.l.b16 %v991
      %v1629 = vunpack.c.l.b16 %v992
      %v1630 = vunpack.c.l.b16 %v993
      %v1631 = vunpack.c.l.b16 %v994
      %v1632 = vunpack.c.l.b16 %v995
      %v1633 = vunpack.c.l.b16 %v996
      %v1634 = vunpack.c.l.b16 %v997
      %v1635 = vunpack.c.l.b16 %v998
      %v1636 = vunpack.c.l.b16 %v999
      %v1637 = vunpack.c.l.b16 %v1000
      %v1638 = vunpack.c.l.b16 %v1001
      %v1639 = vunpack.c.l.b16 %v1002
      %v1640 = vunpack.c.l.b16 %v1003
      %v1641 = vunpack.c.l.b16 %v1004
      %v1642 = vunpack.c.l.b16 %v1005
      %v1643 = vunpack.c.l.b16 %v1006
      %v1644 = vunpack.c.l.b16 %v1007
      %v1645 = vunpack.c.l.b16 %v1008
      %v1646 = vunpack.c.l.b16 %v1009
      %v1647 = vunpack.c.l.b16 %v1010
      %v1648 = vunpack.c.l.b16 %v1011
      %v1649 = vunpack.c.l.b16 %v1012
      %v1650 = vunpack.c.l.b16 %v1013
      %v1651 = vunpack.c.l.b16 %v1014
      %v1652 = vunpack.c.l.b16 %v1015
      %v1653 = vunpack.c.l.b16 %v1016
      %v1654 = vunpack.c.l.b16 %v1017
      %v1655 = vunpack.c.l.b16 %v1018
      %v1656 = vunpack.c.l.b16 %v1019
      %v1657 = vunpack.c.l.b16 %v1020
      %v1658 = vunpack.c.l.b16 %v1021
      %v1659 = vunpack.c.l.b16 %v1022
      %v1660 = vunpack.c.l.b16 %v1023
      %v1661 = vunpack.c.l.b16 %v1024
      %v1662 = vunpack.c.l.b16 %v1025
      %v1663 = vunpack.c.l.b16 %v1026
      %v1664 = vunpack.c.l.b16 %v1027
      %v1665 = vpack.c.b16 %v1618, %v1617
      %v1666 = vpack.c.b16 %v1620, %v1619
      %v1667 = vpack.c.b16 %v1622, %v1621
      %v1668 = vpack.c.b16 %v1624, %v1623
      %v1669 = vpack.c.b16 %v1626, %v1625
      %v1670 = vpack.c.b16 %v1628, %v1627
      %v1671 = vpack.c.b16 %v1630, %v1629
      %v1672 = vpack.c.b16 %v1632, %v1631
      %v1673 = vpack.c.b16 %v1634, %v1633
      %v1674 = vpack.c.b16 %v1636, %v1635
      %v1675 = vpack.c.b16 %v1638, %v1637
      %v1676 = vpack.c.b16 %v1640, %v1639
      %v1677 = vpack.c.b16 %v1642, %v1641
      %v1678 = vpack.c.b16 %v1644, %v1643
      %v1679 = vpack.c.b16 %v1646, %v1645
      %v1680 = vpack.c.b16 %v1648, %v1647
      %v1681 = vpack.c.b16 %v1650, %v1649
      %v1682 = vpack.c.b16 %v1652, %v1651
      %v1683 = vpack.c.b16 %v1654, %v1653
      %v1684 = vpack.c.b16 %v1656, %v1655
      %v1685 = vpack.c.b16 %v1658, %v1657
      %v1686 = vpack.c.b16 %v1660, %v1659
      %v1687 = vpack.c.b16 %v1662, %v1661
      %v1688 = vpack.c.b16 %v1664, %v1663
      %1713 = vmatpush.bf16.msra.mxu0 %v1672
      %1714 = vmatpush.bf16.msra.mxu0 %v1671
      %1715 = vmatpush.bf16.msra.mxu0 %v1670
      %1716 = vmatpush.bf16.msra.mxu0 %v1669
      %1717 = vmatpush.bf16.msra.mxu0 %v1668
      %1718 = vmatpush.bf16.msra.mxu0 %v1667
      %1719 = vmatpush.bf16.msra.mxu0 %v1666
      %1720 = vmatpush.bf16.msra.mxu0 %v1665
      %1721 = vmatmul.bf16.gmra.mxu0 %v606
      %v1722 = vpop.f32.mrf.mxu0
      %v1723 = vadd.f32 %v1463, %v1722
      %v1724 = vpop.f32.mrf.mxu0
      %v1725 = vadd.f32 %v1465, %v1724
      %1726 = vmatmul.bf16.gmra.mxu0 %v607
      %v1727 = vpop.f32.mrf.mxu0
      %v1728 = vadd.f32 %v1468, %v1727
      %v1729 = vpop.f32.mrf.mxu0
      %v1730 = vadd.f32 %v1470, %v1729
      %1731 = vmatmul.bf16.gmra.mxu0 %v608
      %v1732 = vpop.f32.mrf.mxu0
      %v1733 = vadd.f32 %v1473, %v1732
      %v1734 = vpop.f32.mrf.mxu0
      %v1735 = vadd.f32 %v1475, %v1734
      %1736 = vmatmul.bf16.gmra.mxu0 %v609
      %v1737 = vpop.f32.mrf.mxu0
      %v1738 = vadd.f32 %v1478, %v1737
      %v1739 = vpop.f32.mrf.mxu0
      %v1740 = vadd.f32 %v1480, %v1739
      %1741 = vmatmul.bf16.gmra.mxu0 %v610
      %v1742 = vpop.f32.mrf.mxu0
      %v1743 = vadd.f32 %v1483, %v1742
      %v1744 = vpop.f32.mrf.mxu0
      %v1745 = vadd.f32 %v1485, %v1744
      %1746 = vmatmul.bf16.gmra.mxu0 %v611
      %v1747 = vpop.f32.mrf.mxu0
      %v1748 = vadd.f32 %v1488, %v1747
      %v1749 = vpop.f32.mrf.mxu0
      %v1750 = vadd.f32 %v1490, %v1749
      %1751 = vmatmul.bf16.gmra.mxu0 %v612
      %v1752 = vpop.f32.mrf.mxu0
      %v1753 = vadd.f32 %v1493, %v1752
      %v1754 = vpop.f32.mrf.mxu0
      %v1755 = vadd.f32 %v1495, %v1754
      %1756 = vmatmul.bf16.gmra.mxu0 %v613
      %v1757 = vpop.f32.mrf.mxu0
      %v1758 = vadd.f32 %v1498, %v1757
      %v1759 = vpop.f32.mrf.mxu0
      %v1760 = vadd.f32 %v1500, %v1759
      %1761 = vmatmul.bf16.gmra.mxu0 %v614
      %v1762 = vpop.f32.mrf.mxu0
      %v1763 = vadd.f32 %v1503, %v1762
      %v1764 = vpop.f32.mrf.mxu0
      %v1765 = vadd.f32 %v1505, %v1764
      %1766 = vmatmul.bf16.gmra.mxu0 %v615
      %v1767 = vpop.f32.mrf.mxu0
      %v1768 = vadd.f32 %v1508, %v1767
      %v1769 = vpop.f32.mrf.mxu0
      %v1770 = vadd.f32 %v1510, %v1769
      %1771 = vmatmul.bf16.gmra.mxu0 %v616
      %v1772 = vpop.f32.mrf.mxu0
      %v1773 = vadd.f32 %v1513, %v1772
      %v1774 = vpop.f32.mrf.mxu0
      %v1775 = vadd.f32 %v1515, %v1774
      %1776 = vmatmul.bf16.gmra.mxu0 %v617
      %v1777 = vpop.f32.mrf.mxu0
      %v1778 = vadd.f32 %v1518, %v1777
      %v1779 = vpop.f32.mrf.mxu0
      %v1780 = vadd.f32 %v1520, %v1779
      %1781 = vmatmul.bf16.gmra.mxu0 %v618
      %v1782 = vpop.f32.mrf.mxu0
      %v1783 = vadd.f32 %v1523, %v1782
      %v1784 = vpop.f32.mrf.mxu0
      %v1785 = vadd.f32 %v1525, %v1784
      %1786 = vmatmul.bf16.gmra.mxu0 %v619
      %v1787 = vpop.f32.mrf.mxu0
      %v1788 = vadd.f32 %v1528, %v1787
      %v1789 = vpop.f32.mrf.mxu0
      %v1790 = vadd.f32 %v1530, %v1789
      %1791 = vmatmul.bf16.gmra.mxu0 %v620
      %v1792 = vpop.f32.mrf.mxu0
      %v1793 = vadd.f32 %v1533, %v1792
      %v1794 = vpop.f32.mrf.mxu0
      %v1795 = vadd.f32 %v1535, %v1794
      %1796 = vmatmul.bf16.gmra.mxu0 %v621
      %v1797 = vpop.f32.mrf.mxu0
      %v1798 = vadd.f32 %v1538, %v1797
      %v1799 = vpop.f32.mrf.mxu0
      %v1800 = vadd.f32 %v1540, %v1799
      %1801 = vmatmul.bf16.gmra.mxu0 %v622
      %v1802 = vpop.f32.mrf.mxu0
      %v1803 = vadd.f32 %v1543, %v1802
      %v1804 = vpop.f32.mrf.mxu0
      %v1805 = vadd.f32 %v1545, %v1804
      %1806 = vmatmul.bf16.gmra.mxu0 %v623
      %v1807 = vpop.f32.mrf.mxu0
      %v1808 = vadd.f32 %v1548, %v1807
      %v1809 = vpop.f32.mrf.mxu0
      %v1810 = vadd.f32 %v1550, %v1809
      %1811 = vmatmul.bf16.gmra.mxu0 %v624
      %v1812 = vpop.f32.mrf.mxu0
      %v1813 = vadd.f32 %v1553, %v1812
      %v1814 = vpop.f32.mrf.mxu0
      %v1815 = vadd.f32 %v1555, %v1814
      %1816 = vmatmul.bf16.gmra.mxu0 %v625
      %v1817 = vpop.f32.mrf.mxu0
      %v1818 = vadd.f32 %v1558, %v1817
      %v1819 = vpop.f32.mrf.mxu0
      %v1820 = vadd.f32 %v1560, %v1819
      %1821 = vmatmul.bf16.gmra.mxu0 %v626
      %v1822 = vpop.f32.mrf.mxu0
      %v1823 = vadd.f32 %v1563, %v1822
      %v1824 = vpop.f32.mrf.mxu0
      %1825 = vmatmul.bf16.gmra.mxu0 %v627
      %v1826 = vpop.f32.mrf.mxu0
      %v1827 = vpop.f32.mrf.mxu0
      %1828 = vdwg.mxu0
      %1829 = vmatpush.bf16.msra.mxu0 %v1680
      %1830 = vmatpush.bf16.msra.mxu0 %v1679
      %1831 = vmatpush.bf16.msra.mxu0 %v1678
      %1832 = vmatpush.bf16.msra.mxu0 %v1677
      %1833 = vmatpush.bf16.msra.mxu0 %v1676
      %1834 = vmatpush.bf16.msra.mxu0 %v1675
      %1835 = vmatpush.bf16.msra.mxu0 %v1674
      %1836 = vmatpush.bf16.msra.mxu0 %v1673
      %1837 = vmatmul.bf16.gmra.mxu0 %v673
      %v1838 = vpop.f32.mrf.mxu0
      %v1839 = vadd.f32 %v1723, %v1838
      %v1840 = vpop.f32.mrf.mxu0
      %v1841 = vadd.f32 %v1725, %v1840
      %1842 = vmatmul.bf16.gmra.mxu0 %v681
      %v1843 = vpop.f32.mrf.mxu0
      %v1844 = vadd.f32 %v1728, %v1843
      %v1845 = vpop.f32.mrf.mxu0
      %v1846 = vadd.f32 %v1730, %v1845
      %1847 = vmatmul.bf16.gmra.mxu0 %v689
      %v1848 = vpop.f32.mrf.mxu0
      %v1849 = vadd.f32 %v1733, %v1848
      %v1850 = vpop.f32.mrf.mxu0
      %v1851 = vadd.f32 %v1735, %v1850
      %1852 = vmatmul.bf16.gmra.mxu0 %v697
      %v1853 = vpop.f32.mrf.mxu0
      %v1854 = vadd.f32 %v1738, %v1853
      %v1855 = vpop.f32.mrf.mxu0
      %v1856 = vadd.f32 %v1740, %v1855
      %1857 = vmatmul.bf16.gmra.mxu0 %v705
      %v1858 = vpop.f32.mrf.mxu0
      %v1859 = vadd.f32 %v1743, %v1858
      %v1860 = vpop.f32.mrf.mxu0
      %v1861 = vadd.f32 %v1745, %v1860
      %1862 = vmatmul.bf16.gmra.mxu0 %v713
      %v1863 = vpop.f32.mrf.mxu0
      %v1864 = vadd.f32 %v1748, %v1863
      %v1865 = vpop.f32.mrf.mxu0
      %v1866 = vadd.f32 %v1750, %v1865
      %1867 = vmatmul.bf16.gmra.mxu0 %v721
      %v1868 = vpop.f32.mrf.mxu0
      %v1869 = vadd.f32 %v1753, %v1868
      %v1870 = vpop.f32.mrf.mxu0
      %v1871 = vadd.f32 %v1755, %v1870
      %1872 = vmatmul.bf16.gmra.mxu0 %v729
      %v1873 = vpop.f32.mrf.mxu0
      %v1874 = vadd.f32 %v1758, %v1873
      %v1875 = vpop.f32.mrf.mxu0
      %v1876 = vadd.f32 %v1760, %v1875
      %1877 = vmatmul.bf16.gmra.mxu0 %v737
      %v1878 = vpop.f32.mrf.mxu0
      %v1879 = vadd.f32 %v1763, %v1878
      %v1880 = vpop.f32.mrf.mxu0
      %v1881 = vadd.f32 %v1765, %v1880
      %1882 = vmatmul.bf16.gmra.mxu0 %v745
      %v1883 = vpop.f32.mrf.mxu0
      %v1884 = vadd.f32 %v1768, %v1883
      %v1885 = vpop.f32.mrf.mxu0
      %v1886 = vadd.f32 %v1770, %v1885
      %1887 = vmatmul.bf16.gmra.mxu0 %v753
      %v1888 = vpop.f32.mrf.mxu0
      %v1889 = vadd.f32 %v1773, %v1888
      %v1890 = vpop.f32.mrf.mxu0
      %v1891 = vadd.f32 %v1775, %v1890
      %1892 = vmatmul.bf16.gmra.mxu0 %v761
      %v1893 = vpop.f32.mrf.mxu0
      %v1894 = vadd.f32 %v1778, %v1893
      %v1895 = vpop.f32.mrf.mxu0
      %v1896 = vadd.f32 %v1780, %v1895
      %1897 = vmatmul.bf16.gmra.mxu0 %v769
      %v1898 = vpop.f32.mrf.mxu0
      %v1899 = vadd.f32 %v1783, %v1898
      %v1900 = vpop.f32.mrf.mxu0
      %v1901 = vadd.f32 %v1785, %v1900
      %1902 = vmatmul.bf16.gmra.mxu0 %v777
      %v1903 = vpop.f32.mrf.mxu0
      %v1904 = vadd.f32 %v1788, %v1903
      %v1905 = vpop.f32.mrf.mxu0
      %v1906 = vadd.f32 %v1790, %v1905
      %1907 = vmatmul.bf16.gmra.mxu0 %v785
      %v1908 = vpop.f32.mrf.mxu0
      %v1909 = vadd.f32 %v1793, %v1908
      %v1910 = vpop.f32.mrf.mxu0
      %v1911 = vadd.f32 %v1795, %v1910
      %1912 = vmatmul.bf16.gmra.mxu0 %v793
      %v1913 = vpop.f32.mrf.mxu0
      %v1914 = vadd.f32 %v1798, %v1913
      %v1915 = vpop.f32.mrf.mxu0
      %v1916 = vadd.f32 %v1800, %v1915
      %1917 = vmatmul.bf16.gmra.mxu0 %v801
      %v1918 = vpop.f32.mrf.mxu0
      %v1919 = vadd.f32 %v1803, %v1918
      %v1920 = vpop.f32.mrf.mxu0
      %v1921 = vadd.f32 %v1805, %v1920
      %1922 = vmatmul.bf16.gmra.mxu0 %v809
      %v1923 = vpop.f32.mrf.mxu0
      %v1924 = vadd.f32 %v1808, %v1923
      %v1925 = vpop.f32.mrf.mxu0
      %v1926 = vadd.f32 %v1810, %v1925
      %1927 = vmatmul.bf16.gmra.mxu0 %v817
      %v1928 = vpop.f32.mrf.mxu0
      %v1929 = vadd.f32 %v1813, %v1928
      %v1930 = vpop.f32.mrf.mxu0
      %v1931 = vadd.f32 %v1815, %v1930
      %1932 = vmatmul.bf16.gmra.mxu0 %v825
      %v1933 = vpop.f32.mrf.mxu0
      %v1934 = vadd.f32 %v1818, %v1933
      %v1935 = vpop.f32.mrf.mxu0
      %v1936 = vadd.f32 %v1820, %v1935
      %1937 = vmatmul.bf16.gmra.mxu0 %v833
      %v1938 = vpop.f32.mrf.mxu0
      %v1939 = vadd.f32 %v1823, %v1938
      %v1940 = vpop.f32.mrf.mxu0
      %1941 = vmatmul.bf16.gmra.mxu0 %v841
      %v1942 = vpop.f32.mrf.mxu0
      %v1943 = vpop.f32.mrf.mxu0
      %1944 = vdwg.mxu0
      %1945 = vmatpush.bf16.msra.mxu0 %v1688
      %1946 = vmatpush.bf16.msra.mxu0 %v1687
      %1947 = vmatpush.bf16.msra.mxu0 %v1686
      %1948 = vmatpush.bf16.msra.mxu0 %v1685
      %1949 = vmatpush.bf16.msra.mxu0 %v1684
      %1950 = vmatpush.bf16.msra.mxu0 %v1683
      %1951 = vmatpush.bf16.msra.mxu0 %v1682
      %1952 = vmatpush.bf16.msra.mxu0 %v1681
      %1953 = vmatmul.bf16.gmra.mxu0 %v903
      %v1954 = vpop.f32.mrf.mxu0
      %v1955 = vadd.f32 %v1839, %v1954
      %v1956 = vpop.f32.mrf.mxu0
      %v1957 = vadd.f32 %v1841, %v1956
      %1958 = vmatmul.bf16.gmra.mxu0 %v905
      %v1959 = vpop.f32.mrf.mxu0
      %v1960 = vadd.f32 %v1844, %v1959
      %v1961 = vpop.f32.mrf.mxu0
      %v1962 = vadd.f32 %v1846, %v1961
      %1963 = vmatmul.bf16.gmra.mxu0 %v907
      %v1964 = vpop.f32.mrf.mxu0
      %v1965 = vadd.f32 %v1849, %v1964
      %v1966 = vpop.f32.mrf.mxu0
      %v1967 = vadd.f32 %v1851, %v1966
      %1968 = vmatmul.bf16.gmra.mxu0 %v909
      %v1969 = vpop.f32.mrf.mxu0
      %v1970 = vadd.f32 %v1854, %v1969
      %v1971 = vpop.f32.mrf.mxu0
      %v1972 = vadd.f32 %v1856, %v1971
      %1973 = vmatmul.bf16.gmra.mxu0 %v911
      %v1974 = vpop.f32.mrf.mxu0
      %v1975 = vadd.f32 %v1859, %v1974
      %v1976 = vpop.f32.mrf.mxu0
      %v1977 = vadd.f32 %v1861, %v1976
      %1978 = vmatmul.bf16.gmra.mxu0 %v913
      %v1979 = vpop.f32.mrf.mxu0
      %v1980 = vadd.f32 %v1864, %v1979
      %v1981 = vpop.f32.mrf.mxu0
      %v1982 = vadd.f32 %v1866, %v1981
      %1983 = vmatmul.bf16.gmra.mxu0 %v915
      %v1984 = vpop.f32.mrf.mxu0
      %v1985 = vadd.f32 %v1869, %v1984
      %v1986 = vpop.f32.mrf.mxu0
      %v1987 = vadd.f32 %v1871, %v1986
      %1988 = vmatmul.bf16.gmra.mxu0 %v917
      %v1989 = vpop.f32.mrf.mxu0
      %v1990 = vadd.f32 %v1874, %v1989
      %v1991 = vpop.f32.mrf.mxu0
      %v1992 = vadd.f32 %v1876, %v1991
      %1993 = vmatmul.bf16.gmra.mxu0 %v919
      %v1994 = vpop.f32.mrf.mxu0
      %v1995 = vadd.f32 %v1879, %v1994
      %v1996 = vpop.f32.mrf.mxu0
      %v1997 = vadd.f32 %v1881, %v1996
      %1998 = vmatmul.bf16.gmra.mxu0 %v921
      %v1999 = vpop.f32.mrf.mxu0
      %v2000 = vadd.f32 %v1884, %v1999
      %v2001 = vpop.f32.mrf.mxu0
      %v2002 = vadd.f32 %v1886, %v2001
      %2003 = vmatmul.bf16.gmra.mxu0 %v923
      %v2004 = vpop.f32.mrf.mxu0
      %v2005 = vadd.f32 %v1889, %v2004
      %v2006 = vpop.f32.mrf.mxu0
      %v2007 = vadd.f32 %v1891, %v2006
      %2008 = vmatmul.bf16.gmra.mxu0 %v925
      %v2009 = vpop.f32.mrf.mxu0
      %v2010 = vadd.f32 %v1894, %v2009
      %v2011 = vpop.f32.mrf.mxu0
      %v2012 = vadd.f32 %v1896, %v2011
      %2013 = vmatmul.bf16.gmra.mxu0 %v927
      %v2014 = vpop.f32.mrf.mxu0
      %v2015 = vadd.f32 %v1899, %v2014
      %v2016 = vpop.f32.mrf.mxu0
      %v2017 = vadd.f32 %v1901, %v2016
      %2018 = vmatmul.bf16.gmra.mxu0 %v929
      %v2019 = vpop.f32.mrf.mxu0
      %v2020 = vadd.f32 %v1904, %v2019
      %v2021 = vpop.f32.mrf.mxu0
      %v2022 = vadd.f32 %v1906, %v2021
      %2023 = vmatmul.bf16.gmra.mxu0 %v931
      %v2024 = vpop.f32.mrf.mxu0
      %v2025 = vadd.f32 %v1909, %v2024
      %v2026 = vpop.f32.mrf.mxu0
      %v2027 = vadd.f32 %v1911, %v2026
      %2028 = vmatmul.bf16.gmra.mxu0 %v933
      %v2029 = vpop.f32.mrf.mxu0
      %v2030 = vadd.f32 %v1914, %v2029
      %v2031 = vpop.f32.mrf.mxu0
      %v2032 = vadd.f32 %v1916, %v2031
      %2033 = vmatmul.bf16.gmra.mxu0 %v935
      %v2034 = vpop.f32.mrf.mxu0
      %v2035 = vadd.f32 %v1919, %v2034
      %v2036 = vpop.f32.mrf.mxu0
      %v2037 = vadd.f32 %v1921, %v2036
      %2038 = vmatmul.bf16.gmra.mxu0 %v937
      %v2039 = vpop.f32.mrf.mxu0
      %v2040 = vadd.f32 %v1924, %v2039
      %v2041 = vpop.f32.mrf.mxu0
      %v2042 = vadd.f32 %v1926, %v2041
      %2043 = vmatmul.bf16.gmra.mxu0 %v939
      %v2044 = vpop.f32.mrf.mxu0
      %v2045 = vadd.f32 %v1929, %v2044
      %v2046 = vpop.f32.mrf.mxu0
      %v2047 = vadd.f32 %v1931, %v2046
      %2048 = vmatmul.bf16.gmra.mxu0 %v941
      %v2049 = vpop.f32.mrf.mxu0
      %v2050 = vadd.f32 %v1934, %v2049
      %v2051 = vpop.f32.mrf.mxu0
      %v2052 = vadd.f32 %v1936, %v2051
      %2053 = vmatmul.bf16.gmra.mxu0 %v943
      %v2054 = vpop.f32.mrf.mxu0
      %v2055 = vadd.f32 %v1939, %v2054
      %v2056 = vpop.f32.mrf.mxu0
      %2057 = vmatmul.bf16.gmra.mxu0 %v945
      %v2058 = vpop.f32.mrf.mxu0
      %v2059 = vpop.f32.mrf.mxu0
      %2060 = vdwg.mxu0
      %s2061 = scalar_lea.vmem %s3, 384
      %v2062 = vld [vmem:[%s2061] sm:$0xf]
      %v2063 = vld [vmem:[%s2061 + $0x4] sm:$0xf]
      %v2064 = vld [vmem:[%s2061 + $0x8] sm:$0xf]
      %v2065 = vld [vmem:[%s2061 + $0xc] sm:$0xf]
      %v2066 = vld [vmem:[%s2061 + $0x10] sm:$0xf]
      %v2067 = vld [vmem:[%s2061 + $0x14] sm:$0xf]
      %v2068 = vld [vmem:[%s2061 + $0x18] sm:$0xf]
      %v2069 = vld [vmem:[%s2061 + $0x1c] sm:$0xf]
      %v2070 = vld [vmem:[%s2061 + $0x20] sm:$0xf]
      %v2071 = vld [vmem:[%s2061 + $0x24] sm:$0xf]
      %v2072 = vld [vmem:[%s2061 + $0x28] sm:$0xf]
      %v2073 = vld [vmem:[%s2061 + $0x2c] sm:$0xf]
      %v2074 = vld [vmem:[%s2061 + $0x30] sm:$0xf]
      %v2075 = vld [vmem:[%s2061 + $0x34] sm:$0xf]
      %v2076 = vld [vmem:[%s2061 + $0x38] sm:$0xf]
      %v2077 = vld [vmem:[%s2061 + $0x3c] sm:$0xf]
      %v2078 = vld [vmem:[%s2061 + $0x40] sm:$0xf]
      %v2079 = vld [vmem:[%s2061 + $0x44] sm:$0xf]
      %v2080 = vld [vmem:[%s2061 + $0x48] sm:$0xf]
      %v2081 = vld [vmem:[%s2061 + $0x4c] sm:$0xf]
      %v2082 = vld [vmem:[%s2061 + $0x50] sm:$0xf]
      %v2083 = vld [vmem:[%s2061 + $0x54] sm:$0xf]
      %v2084 = vld [vmem:[%s2061 + $0x58] sm:$0xf]
      %v2085 = vld [vmem:[%s2061 + $0x5c] sm:$0xf]
      %v2086 = vld [vmem:[%s2061 + $0x60] sm:$0xf]
      %v2087 = vld [vmem:[%s2061 + $0x64] sm:$0xf]
      %v2088 = vld [vmem:[%s2061 + $0x68] sm:$0xf]
      %v2089 = vld [vmem:[%s2061 + $0x6c] sm:$0xf]
      %v2090 = vld [vmem:[%s2061 + $0x70] sm:$0xf]
      %v2091 = vld [vmem:[%s2061 + $0x74] sm:$0xf]
      %v2092 = vld [vmem:[%s2061 + $0x78] sm:$0xf]
      %v2093 = vld [vmem:[%s2061 + $0x7c] sm:$0xf]
      %v2094 = vld [vmem:[%s2061 + $0x80] sm:$0xf]
      %v2095 = vld [vmem:[%s2061 + $0x84] sm:$0xf]
      %v2096 = vld [vmem:[%s2061 + $0x88] sm:$0xf]
      %v2097 = vld [vmem:[%s2061 + $0x8c] sm:$0xf]
      %v2098 = vld [vmem:[%s2061 + $0x90] sm:$0xf]
      %v2099 = vld [vmem:[%s2061 + $0x94] sm:$0xf]
      %v2100 = vld [vmem:[%s2061 + $0x98] sm:$0xf]
      %v2101 = vld [vmem:[%s2061 + $0x9c] sm:$0xf]
      %v2102 = vld [vmem:[%s2061 + $0xa0] sm:$0xf]
      %v2103 = vld [vmem:[%s2061 + $0xa4] sm:$0xf]
      %v2104 = vld [vmem:[%s2061 + $0xa8] sm:$0xf]
      %v2105 = vld [vmem:[%s2061 + $0xac] sm:$0xf]
      %v2106 = vld [vmem:[%s2061 + $0xb0] sm:$0xf]
      %v2107 = vld [vmem:[%s2061 + $0xb4] sm:$0xf]
      %v2108 = vld [vmem:[%s2061 + $0xb8] sm:$0xf]
      %v2109 = vld [vmem:[%s2061 + $0xbc] sm:$0xf]
      %v2158 = vunpack.c.l.b16 %v2062
      %v2159 = vunpack.c.l.b16 %v2063
      %v2160 = vunpack.c.l.b16 %v2064
      %v2161 = vunpack.c.l.b16 %v2065
      %v2162 = vunpack.c.l.b16 %v2066
      %v2163 = vunpack.c.l.b16 %v2067
      %v2164 = vunpack.c.l.b16 %v2068
      %v2165 = vunpack.c.l.b16 %v2069
      %v2166 = vunpack.c.l.b16 %v2070
      %v2167 = vunpack.c.l.b16 %v2071
      %v2168 = vunpack.c.l.b16 %v2072
      %v2169 = vunpack.c.l.b16 %v2073
      %v2170 = vunpack.c.l.b16 %v2074
      %v2171 = vunpack.c.l.b16 %v2075
      %v2172 = vunpack.c.l.b16 %v2076
      %v2173 = vunpack.c.l.b16 %v2077
      %v2174 = vunpack.c.l.b16 %v2078
      %v2175 = vunpack.c.l.b16 %v2079
      %v2176 = vunpack.c.l.b16 %v2080
      %v2177 = vunpack.c.l.b16 %v2081
      %v2178 = vunpack.c.l.b16 %v2082
      %v2179 = vunpack.c.l.b16 %v2083
      %v2180 = vunpack.c.l.b16 %v2084
      %v2181 = vunpack.c.l.b16 %v2085
      %v2182 = vunpack.c.l.b16 %v2086
      %v2183 = vunpack.c.l.b16 %v2087
      %v2184 = vunpack.c.l.b16 %v2088
      %v2185 = vunpack.c.l.b16 %v2089
      %v2186 = vunpack.c.l.b16 %v2090
      %v2187 = vunpack.c.l.b16 %v2091
      %v2188 = vunpack.c.l.b16 %v2092
      %v2189 = vunpack.c.l.b16 %v2093
      %v2190 = vunpack.c.l.b16 %v2094
      %v2191 = vunpack.c.l.b16 %v2095
      %v2192 = vunpack.c.l.b16 %v2096
      %v2193 = vunpack.c.l.b16 %v2097
      %v2194 = vunpack.c.l.b16 %v2098
      %v2195 = vunpack.c.l.b16 %v2099
      %v2196 = vunpack.c.l.b16 %v2100
      %v2197 = vunpack.c.l.b16 %v2101
      %v2198 = vunpack.c.l.b16 %v2102
      %v2199 = vunpack.c.l.b16 %v2103
      %v2200 = vunpack.c.l.b16 %v2104
      %v2201 = vunpack.c.l.b16 %v2105
      %v2202 = vunpack.c.l.b16 %v2106
      %v2203 = vunpack.c.l.b16 %v2107
      %v2204 = vunpack.c.l.b16 %v2108
      %v2205 = vunpack.c.l.b16 %v2109
      %v2206 = vpack.c.b16 %v2159, %v2158
      %v2207 = vpack.c.b16 %v2161, %v2160
      %v2208 = vpack.c.b16 %v2163, %v2162
      %v2209 = vpack.c.b16 %v2165, %v2164
      %v2210 = vpack.c.b16 %v2167, %v2166
      %v2211 = vpack.c.b16 %v2169, %v2168
      %v2212 = vpack.c.b16 %v2171, %v2170
      %v2213 = vpack.c.b16 %v2173, %v2172
      %v2214 = vpack.c.b16 %v2175, %v2174
      %v2215 = vpack.c.b16 %v2177, %v2176
      %v2216 = vpack.c.b16 %v2179, %v2178
      %v2217 = vpack.c.b16 %v2181, %v2180
      %v2218 = vpack.c.b16 %v2183, %v2182
      %v2219 = vpack.c.b16 %v2185, %v2184
      %v2220 = vpack.c.b16 %v2187, %v2186
      %v2221 = vpack.c.b16 %v2189, %v2188
      %v2222 = vpack.c.b16 %v2191, %v2190
      %v2223 = vpack.c.b16 %v2193, %v2192
      %v2224 = vpack.c.b16 %v2195, %v2194
      %v2225 = vpack.c.b16 %v2197, %v2196
      %v2226 = vpack.c.b16 %v2199, %v2198
      %v2227 = vpack.c.b16 %v2201, %v2200
      %v2228 = vpack.c.b16 %v2203, %v2202
      %v2229 = vpack.c.b16 %v2205, %v2204
      %2254 = vmatpush.bf16.msra.mxu0 %v2213
      %2255 = vmatpush.bf16.msra.mxu0 %v2212
      %2256 = vmatpush.bf16.msra.mxu0 %v2211
      %2257 = vmatpush.bf16.msra.mxu0 %v2210
      %2258 = vmatpush.bf16.msra.mxu0 %v2209
      %2259 = vmatpush.bf16.msra.mxu0 %v2208
      %2260 = vmatpush.bf16.msra.mxu0 %v2207
      %2261 = vmatpush.bf16.msra.mxu0 %v2206
      %2262 = vmatmul.bf16.gmra.mxu0 %v610
      %v2263 = vpop.f32.mrf.mxu0
      %v2264 = vadd.f32 0.0, %v2263
      %v2265 = vpop.f32.mrf.mxu0
      %v2266 = vadd.f32 0.0, %v2265
      %2267 = vmatmul.bf16.gmra.mxu0 %v611
      %v2268 = vpop.f32.mrf.mxu0
      %v2269 = vadd.f32 0.0, %v2268
      %v2270 = vpop.f32.mrf.mxu0
      %v2271 = vadd.f32 0.0, %v2270
      %2272 = vmatmul.bf16.gmra.mxu0 %v612
      %v2273 = vpop.f32.mrf.mxu0
      %v2274 = vadd.f32 0.0, %v2273
      %v2275 = vpop.f32.mrf.mxu0
      %v2276 = vadd.f32 0.0, %v2275
      %2277 = vmatmul.bf16.gmra.mxu0 %v613
      %v2278 = vpop.f32.mrf.mxu0
      %v2279 = vadd.f32 0.0, %v2278
      %v2280 = vpop.f32.mrf.mxu0
      %v2281 = vadd.f32 0.0, %v2280
      %2282 = vmatmul.bf16.gmra.mxu0 %v614
      %v2283 = vpop.f32.mrf.mxu0
      %v2284 = vadd.f32 0.0, %v2283
      %v2285 = vpop.f32.mrf.mxu0
      %v2286 = vadd.f32 0.0, %v2285
      %2287 = vmatmul.bf16.gmra.mxu0 %v615
      %v2288 = vpop.f32.mrf.mxu0
      %v2289 = vadd.f32 0.0, %v2288
      %v2290 = vpop.f32.mrf.mxu0
      %v2291 = vadd.f32 0.0, %v2290
      %2292 = vmatmul.bf16.gmra.mxu0 %v616
      %v2293 = vpop.f32.mrf.mxu0
      %v2294 = vadd.f32 0.0, %v2293
      %v2295 = vpop.f32.mrf.mxu0
      %v2296 = vadd.f32 0.0, %v2295
      %2297 = vmatmul.bf16.gmra.mxu0 %v617
      %v2298 = vpop.f32.mrf.mxu0
      %v2299 = vadd.f32 0.0, %v2298
      %v2300 = vpop.f32.mrf.mxu0
      %v2301 = vadd.f32 0.0, %v2300
      %2302 = vmatmul.bf16.gmra.mxu0 %v618
      %v2303 = vpop.f32.mrf.mxu0
      %v2304 = vadd.f32 0.0, %v2303
      %v2305 = vpop.f32.mrf.mxu0
      %v2306 = vadd.f32 0.0, %v2305
      %2307 = vmatmul.bf16.gmra.mxu0 %v619
      %v2308 = vpop.f32.mrf.mxu0
      %v2309 = vadd.f32 0.0, %v2308
      %v2310 = vpop.f32.mrf.mxu0
      %v2311 = vadd.f32 0.0, %v2310
      %2312 = vmatmul.bf16.gmra.mxu0 %v620
      %v2313 = vpop.f32.mrf.mxu0
      %v2314 = vadd.f32 0.0, %v2313
      %v2315 = vpop.f32.mrf.mxu0
      %v2316 = vadd.f32 0.0, %v2315
      %2317 = vmatmul.bf16.gmra.mxu0 %v621
      %v2318 = vpop.f32.mrf.mxu0
      %v2319 = vadd.f32 0.0, %v2318
      %v2320 = vpop.f32.mrf.mxu0
      %v2321 = vadd.f32 0.0, %v2320
      %2322 = vmatmul.bf16.gmra.mxu0 %v622
      %v2323 = vpop.f32.mrf.mxu0
      %v2324 = vadd.f32 0.0, %v2323
      %v2325 = vpop.f32.mrf.mxu0
      %v2326 = vadd.f32 0.0, %v2325
      %2327 = vmatmul.bf16.gmra.mxu0 %v623
      %v2328 = vpop.f32.mrf.mxu0
      %v2329 = vadd.f32 0.0, %v2328
      %v2330 = vpop.f32.mrf.mxu0
      %v2331 = vadd.f32 0.0, %v2330
      %2332 = vmatmul.bf16.gmra.mxu0 %v624
      %v2333 = vpop.f32.mrf.mxu0
      %v2334 = vadd.f32 0.0, %v2333
      %v2335 = vpop.f32.mrf.mxu0
      %v2336 = vadd.f32 0.0, %v2335
      %2337 = vmatmul.bf16.gmra.mxu0 %v625
      %v2338 = vpop.f32.mrf.mxu0
      %v2339 = vadd.f32 0.0, %v2338
      %v2340 = vpop.f32.mrf.mxu0
      %v2341 = vadd.f32 0.0, %v2340
      %2342 = vmatmul.bf16.gmra.mxu0 %v626
      %v2343 = vpop.f32.mrf.mxu0
      %v2344 = vadd.f32 0.0, %v2343
      %v2345 = vpop.f32.mrf.mxu0
      %v2346 = vadd.f32 0.0, %v2345
      %2347 = vmatmul.bf16.gmra.mxu0 %v627
      %v2348 = vpop.f32.mrf.mxu0
      %v2349 = vadd.f32 0.0, %v2348
      %v2350 = vpop.f32.mrf.mxu0
      %v2351 = vadd.f32 0.0, %v2350
      %2352 = vmatmul.bf16.gmra.mxu0 %v628
      %v2353 = vpop.f32.mrf.mxu0
      %v2354 = vadd.f32 0.0, %v2353
      %v2355 = vpop.f32.mrf.mxu0
      %v2356 = vadd.f32 0.0, %v2355
      %2357 = vmatmul.bf16.gmra.mxu0 %v629
      %v2358 = vpop.f32.mrf.mxu0
      %v2359 = vadd.f32 0.0, %v2358
      %v2360 = vpop.f32.mrf.mxu0
      %v2361 = vadd.f32 0.0, %v2360
      %2362 = vmatmul.bf16.gmra.mxu0 %v630
      %v2363 = vpop.f32.mrf.mxu0
      %v2364 = vadd.f32 0.0, %v2363
      %v2365 = vpop.f32.mrf.mxu0
      %2366 = vmatmul.bf16.gmra.mxu0 %v631
      %v2367 = vpop.f32.mrf.mxu0
      %v2368 = vpop.f32.mrf.mxu0
      %2369 = vdwg.mxu0
      %2370 = vmatpush.bf16.msra.mxu0 %v2221
      %2371 = vmatpush.bf16.msra.mxu0 %v2220
      %2372 = vmatpush.bf16.msra.mxu0 %v2219
      %2373 = vmatpush.bf16.msra.mxu0 %v2218
      %2374 = vmatpush.bf16.msra.mxu0 %v2217
      %2375 = vmatpush.bf16.msra.mxu0 %v2216
      %2376 = vmatpush.bf16.msra.mxu0 %v2215
      %2377 = vmatpush.bf16.msra.mxu0 %v2214
      %2378 = vmatmul.bf16.gmra.mxu0 %v705
      %v2379 = vpop.f32.mrf.mxu0
      %v2380 = vadd.f32 %v2264, %v2379
      %v2381 = vpop.f32.mrf.mxu0
      %v2382 = vadd.f32 %v2266, %v2381
      %2383 = vmatmul.bf16.gmra.mxu0 %v713
      %v2384 = vpop.f32.mrf.mxu0
      %v2385 = vadd.f32 %v2269, %v2384
      %v2386 = vpop.f32.mrf.mxu0
      %v2387 = vadd.f32 %v2271, %v2386
      %2388 = vmatmul.bf16.gmra.mxu0 %v721
      %v2389 = vpop.f32.mrf.mxu0
      %v2390 = vadd.f32 %v2274, %v2389
      %v2391 = vpop.f32.mrf.mxu0
      %v2392 = vadd.f32 %v2276, %v2391
      %2393 = vmatmul.bf16.gmra.mxu0 %v729
      %v2394 = vpop.f32.mrf.mxu0
      %v2395 = vadd.f32 %v2279, %v2394
      %v2396 = vpop.f32.mrf.mxu0
      %v2397 = vadd.f32 %v2281, %v2396
      %2398 = vmatmul.bf16.gmra.mxu0 %v737
      %v2399 = vpop.f32.mrf.mxu0
      %v2400 = vadd.f32 %v2284, %v2399
      %v2401 = vpop.f32.mrf.mxu0
      %v2402 = vadd.f32 %v2286, %v2401
      %2403 = vmatmul.bf16.gmra.mxu0 %v745
      %v2404 = vpop.f32.mrf.mxu0
      %v2405 = vadd.f32 %v2289, %v2404
      %v2406 = vpop.f32.mrf.mxu0
      %v2407 = vadd.f32 %v2291, %v2406
      %2408 = vmatmul.bf16.gmra.mxu0 %v753
      %v2409 = vpop.f32.mrf.mxu0
      %v2410 = vadd.f32 %v2294, %v2409
      %v2411 = vpop.f32.mrf.mxu0
      %v2412 = vadd.f32 %v2296, %v2411
      %2413 = vmatmul.bf16.gmra.mxu0 %v761
      %v2414 = vpop.f32.mrf.mxu0
      %v2415 = vadd.f32 %v2299, %v2414
      %v2416 = vpop.f32.mrf.mxu0
      %v2417 = vadd.f32 %v2301, %v2416
      %2418 = vmatmul.bf16.gmra.mxu0 %v769
      %v2419 = vpop.f32.mrf.mxu0
      %v2420 = vadd.f32 %v2304, %v2419
      %v2421 = vpop.f32.mrf.mxu0
      %v2422 = vadd.f32 %v2306, %v2421
      %2423 = vmatmul.bf16.gmra.mxu0 %v777
      %v2424 = vpop.f32.mrf.mxu0
      %v2425 = vadd.f32 %v2309, %v2424
      %v2426 = vpop.f32.mrf.mxu0
      %v2427 = vadd.f32 %v2311, %v2426
      %2428 = vmatmul.bf16.gmra.mxu0 %v785
      %v2429 = vpop.f32.mrf.mxu0
      %v2430 = vadd.f32 %v2314, %v2429
      %v2431 = vpop.f32.mrf.mxu0
      %v2432 = vadd.f32 %v2316, %v2431
      %2433 = vmatmul.bf16.gmra.mxu0 %v793
      %v2434 = vpop.f32.mrf.mxu0
      %v2435 = vadd.f32 %v2319, %v2434
      %v2436 = vpop.f32.mrf.mxu0
      %v2437 = vadd.f32 %v2321, %v2436
      %2438 = vmatmul.bf16.gmra.mxu0 %v801
      %v2439 = vpop.f32.mrf.mxu0
      %v2440 = vadd.f32 %v2324, %v2439
      %v2441 = vpop.f32.mrf.mxu0
      %v2442 = vadd.f32 %v2326, %v2441
      %2443 = vmatmul.bf16.gmra.mxu0 %v809
      %v2444 = vpop.f32.mrf.mxu0
      %v2445 = vadd.f32 %v2329, %v2444
      %v2446 = vpop.f32.mrf.mxu0
      %v2447 = vadd.f32 %v2331, %v2446
      %2448 = vmatmul.bf16.gmra.mxu0 %v817
      %v2449 = vpop.f32.mrf.mxu0
      %v2450 = vadd.f32 %v2334, %v2449
      %v2451 = vpop.f32.mrf.mxu0
      %v2452 = vadd.f32 %v2336, %v2451
      %2453 = vmatmul.bf16.gmra.mxu0 %v825
      %v2454 = vpop.f32.mrf.mxu0
      %v2455 = vadd.f32 %v2339, %v2454
      %v2456 = vpop.f32.mrf.mxu0
      %v2457 = vadd.f32 %v2341, %v2456
      %2458 = vmatmul.bf16.gmra.mxu0 %v833
      %v2459 = vpop.f32.mrf.mxu0
      %v2460 = vadd.f32 %v2344, %v2459
      %v2461 = vpop.f32.mrf.mxu0
      %v2462 = vadd.f32 %v2346, %v2461
      %2463 = vmatmul.bf16.gmra.mxu0 %v841
      %v2464 = vpop.f32.mrf.mxu0
      %v2465 = vadd.f32 %v2349, %v2464
      %v2466 = vpop.f32.mrf.mxu0
      %v2467 = vadd.f32 %v2351, %v2466
      %2468 = vmatmul.bf16.gmra.mxu0 %v849
      %v2469 = vpop.f32.mrf.mxu0
      %v2470 = vadd.f32 %v2354, %v2469
      %v2471 = vpop.f32.mrf.mxu0
      %v2472 = vadd.f32 %v2356, %v2471
      %2473 = vmatmul.bf16.gmra.mxu0 %v857
      %v2474 = vpop.f32.mrf.mxu0
      %v2475 = vadd.f32 %v2359, %v2474
      %v2476 = vpop.f32.mrf.mxu0
      %v2477 = vadd.f32 %v2361, %v2476
      %2478 = vmatmul.bf16.gmra.mxu0 %v865
      %v2479 = vpop.f32.mrf.mxu0
      %v2480 = vadd.f32 %v2364, %v2479
      %v2481 = vpop.f32.mrf.mxu0
      %2482 = vmatmul.bf16.gmra.mxu0 %v873
      %v2483 = vpop.f32.mrf.mxu0
      %v2484 = vpop.f32.mrf.mxu0
      %2485 = vdwg.mxu0
      %2486 = vmatpush.bf16.msra.mxu0 %v2229
      %2487 = vmatpush.bf16.msra.mxu0 %v2228
      %2488 = vmatpush.bf16.msra.mxu0 %v2227
      %2489 = vmatpush.bf16.msra.mxu0 %v2226
      %2490 = vmatpush.bf16.msra.mxu0 %v2225
      %2491 = vmatpush.bf16.msra.mxu0 %v2224
      %2492 = vmatpush.bf16.msra.mxu0 %v2223
      %2493 = vmatpush.bf16.msra.mxu0 %v2222
      %2494 = vmatmul.bf16.gmra.mxu0 %v911
      %v2495 = vpop.f32.mrf.mxu0
      %v2496 = vadd.f32 %v2380, %v2495
      %v2497 = vpop.f32.mrf.mxu0
      %v2498 = vadd.f32 %v2382, %v2497
      %2499 = vmatmul.bf16.gmra.mxu0 %v913
      %v2500 = vpop.f32.mrf.mxu0
      %v2501 = vadd.f32 %v2385, %v2500
      %v2502 = vpop.f32.mrf.mxu0
      %v2503 = vadd.f32 %v2387, %v2502
      %2504 = vmatmul.bf16.gmra.mxu0 %v915
      %v2505 = vpop.f32.mrf.mxu0
      %v2506 = vadd.f32 %v2390, %v2505
      %v2507 = vpop.f32.mrf.mxu0
      %v2508 = vadd.f32 %v2392, %v2507
      %2509 = vmatmul.bf16.gmra.mxu0 %v917
      %v2510 = vpop.f32.mrf.mxu0
      %v2511 = vadd.f32 %v2395, %v2510
      %v2512 = vpop.f32.mrf.mxu0
      %v2513 = vadd.f32 %v2397, %v2512
      %2514 = vmatmul.bf16.gmra.mxu0 %v919
      %v2515 = vpop.f32.mrf.mxu0
      %v2516 = vadd.f32 %v2400, %v2515
      %v2517 = vpop.f32.mrf.mxu0
      %v2518 = vadd.f32 %v2402, %v2517
      %2519 = vmatmul.bf16.gmra.mxu0 %v921
      %v2520 = vpop.f32.mrf.mxu0
      %v2521 = vadd.f32 %v2405, %v2520
      %v2522 = vpop.f32.mrf.mxu0
      %v2523 = vadd.f32 %v2407, %v2522
      %2524 = vmatmul.bf16.gmra.mxu0 %v923
      %v2525 = vpop.f32.mrf.mxu0
      %v2526 = vadd.f32 %v2410, %v2525
      %v2527 = vpop.f32.mrf.mxu0
      %v2528 = vadd.f32 %v2412, %v2527
      %2529 = vmatmul.bf16.gmra.mxu0 %v925
      %v2530 = vpop.f32.mrf.mxu0
      %v2531 = vadd.f32 %v2415, %v2530
      %v2532 = vpop.f32.mrf.mxu0
      %v2533 = vadd.f32 %v2417, %v2532
      %2534 = vmatmul.bf16.gmra.mxu0 %v927
      %v2535 = vpop.f32.mrf.mxu0
      %v2536 = vadd.f32 %v2420, %v2535
      %v2537 = vpop.f32.mrf.mxu0
      %v2538 = vadd.f32 %v2422, %v2537
      %2539 = vmatmul.bf16.gmra.mxu0 %v929
      %v2540 = vpop.f32.mrf.mxu0
      %v2541 = vadd.f32 %v2425, %v2540
      %v2542 = vpop.f32.mrf.mxu0
      %v2543 = vadd.f32 %v2427, %v2542
      %2544 = vmatmul.bf16.gmra.mxu0 %v931
      %v2545 = vpop.f32.mrf.mxu0
      %v2546 = vadd.f32 %v2430, %v2545
      %v2547 = vpop.f32.mrf.mxu0
      %v2548 = vadd.f32 %v2432, %v2547
      %2549 = vmatmul.bf16.gmra.mxu0 %v933
      %v2550 = vpop.f32.mrf.mxu0
      %v2551 = vadd.f32 %v2435, %v2550
      %v2552 = vpop.f32.mrf.mxu0
      %v2553 = vadd.f32 %v2437, %v2552
      %2554 = vmatmul.bf16.gmra.mxu0 %v935
      %v2555 = vpop.f32.mrf.mxu0
      %v2556 = vadd.f32 %v2440, %v2555
      %v2557 = vpop.f32.mrf.mxu0
      %v2558 = vadd.f32 %v2442, %v2557
      %2559 = vmatmul.bf16.gmra.mxu0 %v937
      %v2560 = vpop.f32.mrf.mxu0
      %v2561 = vadd.f32 %v2445, %v2560
      %v2562 = vpop.f32.mrf.mxu0
      %v2563 = vadd.f32 %v2447, %v2562
      %2564 = vmatmul.bf16.gmra.mxu0 %v939
      %v2565 = vpop.f32.mrf.mxu0
      %v2566 = vadd.f32 %v2450, %v2565
      %v2567 = vpop.f32.mrf.mxu0
      %v2568 = vadd.f32 %v2452, %v2567
      %2569 = vmatmul.bf16.gmra.mxu0 %v941
      %v2570 = vpop.f32.mrf.mxu0
      %v2571 = vadd.f32 %v2455, %v2570
      %v2572 = vpop.f32.mrf.mxu0
      %v2573 = vadd.f32 %v2457, %v2572
      %2574 = vmatmul.bf16.gmra.mxu0 %v943
      %v2575 = vpop.f32.mrf.mxu0
      %v2576 = vadd.f32 %v2460, %v2575
      %v2577 = vpop.f32.mrf.mxu0
      %v2578 = vadd.f32 %v2462, %v2577
      %2579 = vmatmul.bf16.gmra.mxu0 %v945
      %v2580 = vpop.f32.mrf.mxu0
      %v2581 = vadd.f32 %v2465, %v2580
      %v2582 = vpop.f32.mrf.mxu0
      %v2583 = vadd.f32 %v2467, %v2582
      %2584 = vmatmul.bf16.gmra.mxu0 %v947
      %v2585 = vpop.f32.mrf.mxu0
      %v2586 = vadd.f32 %v2470, %v2585
      %v2587 = vpop.f32.mrf.mxu0
      %v2588 = vadd.f32 %v2472, %v2587
      %2589 = vmatmul.bf16.gmra.mxu0 %v949
      %v2590 = vpop.f32.mrf.mxu0
      %v2591 = vadd.f32 %v2475, %v2590
      %v2592 = vpop.f32.mrf.mxu0
      %v2593 = vadd.f32 %v2477, %v2592
      %2594 = vmatmul.bf16.gmra.mxu0 %v951
      %v2595 = vpop.f32.mrf.mxu0
      %v2596 = vadd.f32 %v2480, %v2595
      %v2597 = vpop.f32.mrf.mxu0
      %2598 = vmatmul.bf16.gmra.mxu0 %v953
      %v2599 = vpop.f32.mrf.mxu0
      %v2600 = vpop.f32.mrf.mxu0
      %2601 = vdwg.mxu0
      %v2602 = vadd.f32 %v1955, %v2496
      %v2603 = vadd.f32 %v1957, %v2498
      %v2604 = vadd.f32 %v1960, %v2501
      %v2605 = vadd.f32 %v1962, %v2503
      %v2606 = vadd.f32 %v1965, %v2506
      %v2607 = vadd.f32 %v1967, %v2508
      %v2608 = vadd.f32 %v1970, %v2511
      %v2609 = vadd.f32 %v1972, %v2513
      %v2610 = vadd.f32 %v1975, %v2516
      %v2611 = vadd.f32 %v1977, %v2518
      %v2612 = vadd.f32 %v1980, %v2521
      %v2613 = vadd.f32 %v1982, %v2523
      %v2614 = vadd.f32 %v1985, %v2526
      %v2615 = vadd.f32 %v1987, %v2528
      %v2616 = vadd.f32 %v1990, %v2531
      %v2617 = vadd.f32 %v1992, %v2533
      %v2618 = vadd.f32 %v1995, %v2536
      %v2619 = vadd.f32 %v1997, %v2538
      %v2620 = vadd.f32 %v2000, %v2541
      %v2621 = vadd.f32 %v2002, %v2543
      %v2622 = vadd.f32 %v2005, %v2546
      %v2623 = vadd.f32 %v2007, %v2548
      %v2624 = vadd.f32 %v2010, %v2551
      %v2625 = vadd.f32 %v2012, %v2553
      %v2626 = vadd.f32 %v2015, %v2556
      %v2627 = vadd.f32 %v2017, %v2558
      %v2628 = vadd.f32 %v2020, %v2561
      %v2629 = vadd.f32 %v2022, %v2563
      %v2630 = vadd.f32 %v2025, %v2566
      %v2631 = vadd.f32 %v2027, %v2568
      %v2632 = vadd.f32 %v2030, %v2571
      %v2633 = vadd.f32 %v2032, %v2573
      %v2634 = vadd.f32 %v2035, %v2576
      %v2635 = vadd.f32 %v2037, %v2578
      %v2636 = vadd.f32 %v2040, %v2581
      %v2637 = vadd.f32 %v2042, %v2583
      %v2638 = vadd.f32 %v2045, %v2586
      %v2639 = vadd.f32 %v2047, %v2588
      %v2640 = vadd.f32 %v2050, %v2591
      %v2641 = vadd.f32 %v2052, %v2593
      %v2642 = vadd.f32 %v2055, %v2596
      %v2695 = vunpack.c.l.b16 %v449
      %v2696 = vunpack.c.l.b16 %v450
      %v2697 = vunpack.c.l.b16 %v451
      %v2698 = vunpack.c.l.b16 %v452
      %v2699 = vunpack.c.l.b16 %v453
      %v2700 = vunpack.c.l.b16 %v454
      %v2701 = vunpack.c.l.b16 %v455
      %v2702 = vunpack.c.l.b16 %v456
      %v2703 = vunpack.c.l.b16 %v457
      %v2704 = vunpack.c.l.b16 %v458
      %v2705 = vunpack.c.l.b16 %v459
      %v2706 = vunpack.c.l.b16 %v460
      %v2707 = vunpack.c.l.b16 %v461
      %v2708 = vunpack.c.l.b16 %v462
      %v2709 = vunpack.c.l.b16 %v463
      %v2710 = vunpack.c.l.b16 %v464
      %v2711 = vunpack.c.l.b16 %v465
      %v2712 = vunpack.c.l.b16 %v466
      %v2713 = vunpack.c.l.b16 %v467
      %v2714 = vunpack.c.l.b16 %v468
      %v2715 = vunpack.c.l.b16 %v469
      %v2716 = vunpack.c.l.b16 %v470
      %v2717 = vunpack.c.l.b16 %v471
      %v2718 = vunpack.c.l.b16 %v472
      %v2719 = vunpack.c.l.b16 %v473
      %v2720 = vunpack.c.l.b16 %v474
      %v2721 = vunpack.c.l.b16 %v475
      %v2722 = vunpack.c.l.b16 %v476
      %v2723 = vunpack.c.l.b16 %v477
      %v2724 = vunpack.c.l.b16 %v478
      %v2725 = vunpack.c.l.b16 %v479
      %v2726 = vunpack.c.l.b16 %v480
      %v2727 = vunpack.c.l.b16 %v481
      %v2728 = vunpack.c.l.b16 %v482
      %v2729 = vunpack.c.l.b16 %v483
      %v2730 = vunpack.c.l.b16 %v484
      %v2731 = vunpack.c.l.b16 %v485
      %v2732 = vunpack.c.l.b16 %v486
      %v2733 = vunpack.c.l.b16 %v487
      %v2734 = vunpack.c.l.b16 %v488
      %v2735 = vunpack.c.l.b16 %v489
      %v2736 = vunpack.c.l.b16 %v490
      %v2737 = vunpack.c.l.b16 %v491
      %v2738 = vunpack.c.l.b16 %v492
      %v2739 = vunpack.c.l.b16 %v493
      %v2740 = vunpack.c.l.b16 %v494
      %v2741 = vunpack.c.l.b16 %v495
      %v2742 = vunpack.c.l.b16 %v496
      %v2743 = vunpack.c.l.b16 %v497
      %v2744 = vunpack.c.l.b16 %v498
      %v2745 = vunpack.c.l.b16 %v499
      %v2746 = vunpack.c.l.b16 %v500
      %v2747 = vpack.c.b16 %v2696, %v2695
      %v2748 = vpack.c.b16 %v2698, %v2697
      %v2749 = vpack.c.b16 %v2700, %v2699
      %v2750 = vpack.c.b16 %v2702, %v2701
      %v2751 = vpack.c.b16 %v2704, %v2703
      %v2752 = vpack.c.b16 %v2706, %v2705
      %v2753 = vpack.c.b16 %v2708, %v2707
      %v2754 = vpack.c.b16 %v2710, %v2709
      %v2755 = vpack.c.b16 %v2712, %v2711
      %v2756 = vpack.c.b16 %v2714, %v2713
      %v2757 = vpack.c.b16 %v2716, %v2715
      %v2758 = vpack.c.b16 %v2718, %v2717
      %v2759 = vpack.c.b16 %v2720, %v2719
      %v2760 = vpack.c.b16 %v2722, %v2721
      %v2761 = vpack.c.b16 %v2724, %v2723
      %v2762 = vpack.c.b16 %v2726, %v2725
      %v2763 = vpack.c.b16 %v2728, %v2727
      %v2764 = vpack.c.b16 %v2730, %v2729
      %v2765 = vpack.c.b16 %v2732, %v2731
      %v2766 = vpack.c.b16 %v2734, %v2733
      %v2767 = vpack.c.b16 %v2736, %v2735
      %v2768 = vpack.c.b16 %v2738, %v2737
      %v2769 = vpack.c.b16 %v2740, %v2739
      %v2770 = vpack.c.b16 %v2742, %v2741
      %v2771 = vpack.c.b16 %v2744, %v2743
      %v2772 = vpack.c.b16 %v2746, %v2745
      %v2800 = vunpack.c.l.b16 %v501
      %v2801 = vpack.c.b16 %v2800, %v2800
      %v2803 = vshrl.u32 %v2747, 16
      %v2805 = vshll.u32 %v2747, 16
      %v2807 = vrot.slane %v2805, 1
      %v2808 = vor.u32 %v2803, %v2807
      %v2810 = vshll.u32 %v2748, 16
      %v2812 = vrot.slane %v2810, 1
      %v2813 = vsel %vm661, %v2808, %v2812
      %v2814 = vshrl.u32 %v2748, 16
      %v2816 = vor.u32 %v2814, %v2812
      %v2818 = vshll.u32 %v2749, 16
      %v2820 = vrot.slane %v2818, 1
      %v2821 = vsel %vm661, %v2816, %v2820
      %v2822 = vshrl.u32 %v2749, 16
      %v2824 = vor.u32 %v2822, %v2820
      %v2826 = vshll.u32 %v2750, 16
      %v2828 = vrot.slane %v2826, 1
      %v2829 = vsel %vm661, %v2824, %v2828
      %v2830 = vshrl.u32 %v2750, 16
      %v2832 = vor.u32 %v2830, %v2828
      %v2834 = vshll.u32 %v2751, 16
      %v2836 = vrot.slane %v2834, 1
      %v2837 = vsel %vm661, %v2832, %v2836
      %v2838 = vshrl.u32 %v2751, 16
      %v2840 = vor.u32 %v2838, %v2836
      %v2842 = vshll.u32 %v2752, 16
      %v2844 = vrot.slane %v2842, 1
      %v2845 = vsel %vm661, %v2840, %v2844
      %v2846 = vshrl.u32 %v2752, 16
      %v2848 = vor.u32 %v2846, %v2844
      %v2850 = vshll.u32 %v2753, 16
      %v2852 = vrot.slane %v2850, 1
      %v2853 = vsel %vm661, %v2848, %v2852
      %v2854 = vshrl.u32 %v2753, 16
      %v2856 = vor.u32 %v2854, %v2852
      %v2858 = vshll.u32 %v2754, 16
      %v2860 = vrot.slane %v2858, 1
      %v2861 = vsel %vm661, %v2856, %v2860
      %v2862 = vshrl.u32 %v2754, 16
      %v2864 = vor.u32 %v2862, %v2860
      %v2866 = vshll.u32 %v2755, 16
      %v2868 = vrot.slane %v2866, 1
      %v2869 = vsel %vm661, %v2864, %v2868
      %v2870 = vshrl.u32 %v2755, 16
      %v2872 = vor.u32 %v2870, %v2868
      %v2874 = vshll.u32 %v2756, 16
      %v2876 = vrot.slane %v2874, 1
      %v2877 = vsel %vm661, %v2872, %v2876
      %v2878 = vshrl.u32 %v2756, 16
      %v2880 = vor.u32 %v2878, %v2876
      %v2882 = vshll.u32 %v2757, 16
      %v2884 = vrot.slane %v2882, 1
      %v2885 = vsel %vm661, %v2880, %v2884
      %v2886 = vshrl.u32 %v2757, 16
      %v2888 = vor.u32 %v2886, %v2884
      %v2890 = vshll.u32 %v2758, 16
      %v2892 = vrot.slane %v2890, 1
      %v2893 = vsel %vm661, %v2888, %v2892
      %v2894 = vshrl.u32 %v2758, 16
      %v2896 = vor.u32 %v2894, %v2892
      %v2898 = vshll.u32 %v2759, 16
      %v2900 = vrot.slane %v2898, 1
      %v2901 = vsel %vm661, %v2896, %v2900
      %v2902 = vshrl.u32 %v2759, 16
      %v2904 = vor.u32 %v2902, %v2900
      %v2906 = vshll.u32 %v2760, 16
      %v2908 = vrot.slane %v2906, 1
      %v2909 = vsel %vm661, %v2904, %v2908
      %v2910 = vshrl.u32 %v2760, 16
      %v2912 = vor.u32 %v2910, %v2908
      %v2914 = vshll.u32 %v2761, 16
      %v2916 = vrot.slane %v2914, 1
      %v2917 = vsel %vm661, %v2912, %v2916
      %v2918 = vshrl.u32 %v2761, 16
      %v2920 = vor.u32 %v2918, %v2916
      %v2922 = vshll.u32 %v2762, 16
      %v2924 = vrot.slane %v2922, 1
      %v2925 = vsel %vm661, %v2920, %v2924
      %v2926 = vshrl.u32 %v2762, 16
      %v2928 = vor.u32 %v2926, %v2924
      %v2930 = vshll.u32 %v2763, 16
      %v2932 = vrot.slane %v2930, 1
      %v2933 = vsel %vm661, %v2928, %v2932
      %v2934 = vshrl.u32 %v2763, 16
      %v2936 = vor.u32 %v2934, %v2932
      %v2938 = vshll.u32 %v2764, 16
      %v2940 = vrot.slane %v2938, 1
      %v2941 = vsel %vm661, %v2936, %v2940
      %v2942 = vshrl.u32 %v2764, 16
      %v2944 = vor.u32 %v2942, %v2940
      %v2946 = vshll.u32 %v2765, 16
      %v2948 = vrot.slane %v2946, 1
      %v2949 = vsel %vm661, %v2944, %v2948
      %v2950 = vshrl.u32 %v2765, 16
      %v2952 = vor.u32 %v2950, %v2948
      %v2954 = vshll.u32 %v2766, 16
      %v2956 = vrot.slane %v2954, 1
      %v2957 = vsel %vm661, %v2952, %v2956
      %v2958 = vshrl.u32 %v2766, 16
      %v2960 = vor.u32 %v2958, %v2956
      %v2962 = vshll.u32 %v2767, 16
      %v2964 = vrot.slane %v2962, 1
      %v2965 = vsel %vm661, %v2960, %v2964
      %v2966 = vshrl.u32 %v2767, 16
      %v2968 = vor.u32 %v2966, %v2964
      %v2970 = vshll.u32 %v2768, 16
      %v2972 = vrot.slane %v2970, 1
      %v2973 = vsel %vm661, %v2968, %v2972
      %v2974 = vshrl.u32 %v2768, 16
      %v2976 = vor.u32 %v2974, %v2972
      %v2978 = vshll.u32 %v2769, 16
      %v2980 = vrot.slane %v2978, 1
      %v2981 = vsel %vm661, %v2976, %v2980
      %v2982 = vshrl.u32 %v2769, 16
      %v2984 = vor.u32 %v2982, %v2980
      %v2986 = vshll.u32 %v2770, 16
      %v2988 = vrot.slane %v2986, 1
      %v2989 = vsel %vm661, %v2984, %v2988
      %v2990 = vshrl.u32 %v2770, 16
      %v2992 = vor.u32 %v2990, %v2988
      %v2994 = vshll.u32 %v2771, 16
      %v2996 = vrot.slane %v2994, 1
      %v2997 = vsel %vm661, %v2992, %v2996
      %v2998 = vshrl.u32 %v2771, 16
      %v3000 = vor.u32 %v2998, %v2996
      %v3002 = vshll.u32 %v2772, 16
      %v3004 = vrot.slane %v3002, 1
      %v3005 = vsel %vm661, %v3000, %v3004
      %v3006 = vshrl.u32 %v2772, 16
      %v3008 = vor.u32 %v3006, %v3004
      %v3010 = vshll.u32 %v2801, 16
      %v3012 = vrot.slane %v3010, 1
      %v3013 = vsel %vm661, %v3008, %v3012
      %v3040 = vrot.slane %v2747, 1
      %v3041 = vrot.slane %v2748, 1
      %v3042 = vsel %vm900, %v3040, %v3041
      %v3043 = vrot.slane %v2749, 1
      %v3044 = vsel %vm900, %v3041, %v3043
      %v3045 = vrot.slane %v2750, 1
      %v3046 = vsel %vm900, %v3043, %v3045
      %v3047 = vrot.slane %v2751, 1
      %v3048 = vsel %vm900, %v3045, %v3047
      %v3049 = vrot.slane %v2752, 1
      %v3050 = vsel %vm900, %v3047, %v3049
      %v3051 = vrot.slane %v2753, 1
      %v3052 = vsel %vm900, %v3049, %v3051
      %v3053 = vrot.slane %v2754, 1
      %v3054 = vsel %vm900, %v3051, %v3053
      %v3055 = vrot.slane %v2755, 1
      %v3056 = vsel %vm900, %v3053, %v3055
      %v3057 = vrot.slane %v2756, 1
      %v3058 = vsel %vm900, %v3055, %v3057
      %v3059 = vrot.slane %v2757, 1
      %v3060 = vsel %vm900, %v3057, %v3059
      %v3061 = vrot.slane %v2758, 1
      %v3062 = vsel %vm900, %v3059, %v3061
      %v3063 = vrot.slane %v2759, 1
      %v3064 = vsel %vm900, %v3061, %v3063
      %v3065 = vrot.slane %v2760, 1
      %v3066 = vsel %vm900, %v3063, %v3065
      %v3067 = vrot.slane %v2761, 1
      %v3068 = vsel %vm900, %v3065, %v3067
      %v3069 = vrot.slane %v2762, 1
      %v3070 = vsel %vm900, %v3067, %v3069
      %v3071 = vrot.slane %v2763, 1
      %v3072 = vsel %vm900, %v3069, %v3071
      %v3073 = vrot.slane %v2764, 1
      %v3074 = vsel %vm900, %v3071, %v3073
      %v3075 = vrot.slane %v2765, 1
      %v3076 = vsel %vm900, %v3073, %v3075
      %v3077 = vrot.slane %v2766, 1
      %v3078 = vsel %vm900, %v3075, %v3077
      %v3079 = vrot.slane %v2767, 1
      %v3080 = vsel %vm900, %v3077, %v3079
      %v3081 = vrot.slane %v2768, 1
      %v3082 = vsel %vm900, %v3079, %v3081
      %v3083 = vrot.slane %v2769, 1
      %v3084 = vsel %vm900, %v3081, %v3083
      %v3085 = vrot.slane %v2770, 1
      %v3086 = vsel %vm900, %v3083, %v3085
      %v3087 = vrot.slane %v2771, 1
      %v3088 = vsel %vm900, %v3085, %v3087
      %v3089 = vrot.slane %v2772, 1
      %v3090 = vsel %vm900, %v3087, %v3089
      %v3091 = vrot.slane %v2801, 1
      %v3092 = vsel %vm900, %v3089, %v3091
      %v3119 = vld [vmem:[%s4] sm:$0xf]
      %v3120 = vld [vmem:[%s4 + $0x4] sm:$0xf]
      %v3121 = vld [vmem:[%s4 + $0x8] sm:$0xf]
      %v3122 = vld [vmem:[%s4 + $0xc] sm:$0xf]
      %v3123 = vld [vmem:[%s4 + $0x10] sm:$0xf]
      %v3124 = vld [vmem:[%s4 + $0x14] sm:$0xf]
      %v3125 = vld [vmem:[%s4 + $0x18] sm:$0xf]
      %v3126 = vld [vmem:[%s4 + $0x1c] sm:$0xf]
      %v3127 = vld [vmem:[%s4 + $0x20] sm:$0xf]
      %v3128 = vld [vmem:[%s4 + $0x24] sm:$0xf]
      %v3129 = vld [vmem:[%s4 + $0x28] sm:$0xf]
      %v3130 = vld [vmem:[%s4 + $0x2c] sm:$0xf]
      %v3131 = vld [vmem:[%s4 + $0x30] sm:$0xf]
      %v3132 = vld [vmem:[%s4 + $0x34] sm:$0xf]
      %v3133 = vld [vmem:[%s4 + $0x38] sm:$0xf]
      %v3134 = vld [vmem:[%s4 + $0x3c] sm:$0xf]
      %v3135 = vld [vmem:[%s4 + $0x40] sm:$0xf]
      %v3136 = vld [vmem:[%s4 + $0x44] sm:$0xf]
      %v3137 = vld [vmem:[%s4 + $0x48] sm:$0xf]
      %v3138 = vld [vmem:[%s4 + $0x4c] sm:$0xf]
      %v3139 = vld [vmem:[%s4 + $0x50] sm:$0xf]
      %v3140 = vld [vmem:[%s4 + $0x54] sm:$0xf]
      %v3141 = vld [vmem:[%s4 + $0x58] sm:$0xf]
      %v3142 = vld [vmem:[%s4 + $0x5c] sm:$0xf]
      %v3143 = vld [vmem:[%s4 + $0x60] sm:$0xf]
      %v3144 = vld [vmem:[%s4 + $0x64] sm:$0xf]
      %v3145 = vld [vmem:[%s4 + $0x68] sm:$0xf]
      %v3146 = vld [vmem:[%s4 + $0x6c] sm:$0xf]
      %v3147 = vld [vmem:[%s4 + $0x70] sm:$0xf]
      %v3148 = vld [vmem:[%s4 + $0x74] sm:$0xf]
      %v3149 = vld [vmem:[%s4 + $0x78] sm:$0xf]
      %v3150 = vld [vmem:[%s4 + $0x7c] sm:$0xf]
      %v3151 = vld [vmem:[%s4 + $0x80] sm:$0xf]
      %v3152 = vld [vmem:[%s4 + $0x84] sm:$0xf]
      %v3153 = vld [vmem:[%s4 + $0x88] sm:$0xf]
      %v3154 = vld [vmem:[%s4 + $0x8c] sm:$0xf]
      %v3155 = vld [vmem:[%s4 + $0x90] sm:$0xf]
      %v3156 = vld [vmem:[%s4 + $0x94] sm:$0xf]
      %v3157 = vld [vmem:[%s4 + $0x98] sm:$0xf]
      %v3158 = vld [vmem:[%s4 + $0x9c] sm:$0xf]
      %v3159 = vld [vmem:[%s4 + $0xa0] sm:$0xf]
      %v3160 = vld [vmem:[%s4 + $0xa4] sm:$0xf]
      %v3161 = vld [vmem:[%s4 + $0xa8] sm:$0xf]
      %v3162 = vld [vmem:[%s4 + $0xac] sm:$0xf]
      %v3163 = vld [vmem:[%s4 + $0xb0] sm:$0xf]
      %v3164 = vld [vmem:[%s4 + $0xb4] sm:$0xf]
      %v3165 = vld [vmem:[%s4 + $0xb8] sm:$0xf]
      %v3166 = vld [vmem:[%s4 + $0xbc] sm:$0xf]
      %v3215 = vunpack.c.l.b16 %v3119
      %v3216 = vunpack.c.l.b16 %v3120
      %v3217 = vunpack.c.l.b16 %v3121
      %v3218 = vunpack.c.l.b16 %v3122
      %v3219 = vunpack.c.l.b16 %v3123
      %v3220 = vunpack.c.l.b16 %v3124
      %v3221 = vunpack.c.l.b16 %v3125
      %v3222 = vunpack.c.l.b16 %v3126
      %v3223 = vunpack.c.l.b16 %v3127
      %v3224 = vunpack.c.l.b16 %v3128
      %v3225 = vunpack.c.l.b16 %v3129
      %v3226 = vunpack.c.l.b16 %v3130
      %v3227 = vunpack.c.l.b16 %v3131
      %v3228 = vunpack.c.l.b16 %v3132
      %v3229 = vunpack.c.l.b16 %v3133
      %v3230 = vunpack.c.l.b16 %v3134
      %v3231 = vunpack.c.l.b16 %v3135
      %v3232 = vunpack.c.l.b16 %v3136
      %v3233 = vunpack.c.l.b16 %v3137
      %v3234 = vunpack.c.l.b16 %v3138
      %v3235 = vunpack.c.l.b16 %v3139
      %v3236 = vunpack.c.l.b16 %v3140
      %v3237 = vunpack.c.l.b16 %v3141
      %v3238 = vunpack.c.l.b16 %v3142
      %v3239 = vunpack.c.l.b16 %v3143
      %v3240 = vunpack.c.l.b16 %v3144
      %v3241 = vunpack.c.l.b16 %v3145
      %v3242 = vunpack.c.l.b16 %v3146
      %v3243 = vunpack.c.l.b16 %v3147
      %v3244 = vunpack.c.l.b16 %v3148
      %v3245 = vunpack.c.l.b16 %v3149
      %v3246 = vunpack.c.l.b16 %v3150
      %v3247 = vunpack.c.l.b16 %v3151
      %v3248 = vunpack.c.l.b16 %v3152
      %v3249 = vunpack.c.l.b16 %v3153
      %v3250 = vunpack.c.l.b16 %v3154
      %v3251 = vunpack.c.l.b16 %v3155
      %v3252 = vunpack.c.l.b16 %v3156
      %v3253 = vunpack.c.l.b16 %v3157
      %v3254 = vunpack.c.l.b16 %v3158
      %v3255 = vunpack.c.l.b16 %v3159
      %v3256 = vunpack.c.l.b16 %v3160
      %v3257 = vunpack.c.l.b16 %v3161
      %v3258 = vunpack.c.l.b16 %v3162
      %v3259 = vunpack.c.l.b16 %v3163
      %v3260 = vunpack.c.l.b16 %v3164
      %v3261 = vunpack.c.l.b16 %v3165
      %v3262 = vunpack.c.l.b16 %v3166
      %v3263 = vpack.c.b16 %v3216, %v3215
      %v3264 = vpack.c.b16 %v3218, %v3217
      %v3265 = vpack.c.b16 %v3220, %v3219
      %v3266 = vpack.c.b16 %v3222, %v3221
      %v3267 = vpack.c.b16 %v3224, %v3223
      %v3268 = vpack.c.b16 %v3226, %v3225
      %v3269 = vpack.c.b16 %v3228, %v3227
      %v3270 = vpack.c.b16 %v3230, %v3229
      %v3271 = vpack.c.b16 %v3232, %v3231
      %v3272 = vpack.c.b16 %v3234, %v3233
      %v3273 = vpack.c.b16 %v3236, %v3235
      %v3274 = vpack.c.b16 %v3238, %v3237
      %v3275 = vpack.c.b16 %v3240, %v3239
      %v3276 = vpack.c.b16 %v3242, %v3241
      %v3277 = vpack.c.b16 %v3244, %v3243
      %v3278 = vpack.c.b16 %v3246, %v3245
      %v3279 = vpack.c.b16 %v3248, %v3247
      %v3280 = vpack.c.b16 %v3250, %v3249
      %v3281 = vpack.c.b16 %v3252, %v3251
      %v3282 = vpack.c.b16 %v3254, %v3253
      %v3283 = vpack.c.b16 %v3256, %v3255
      %v3284 = vpack.c.b16 %v3258, %v3257
      %v3285 = vpack.c.b16 %v3260, %v3259
      %v3286 = vpack.c.b16 %v3262, %v3261
      %3311 = vmatpush.bf16.msra.mxu0 %v3270
      %3312 = vmatpush.bf16.msra.mxu0 %v3269
      %3313 = vmatpush.bf16.msra.mxu0 %v3268
      %3314 = vmatpush.bf16.msra.mxu0 %v3267
      %3315 = vmatpush.bf16.msra.mxu0 %v3266
      %3316 = vmatpush.bf16.msra.mxu0 %v3265
      %3317 = vmatpush.bf16.msra.mxu0 %v3264
      %3318 = vmatpush.bf16.msra.mxu0 %v3263
      %3319 = vmatmul.bf16.gmra.mxu0 %v2747
      %v3320 = vpop.f32.mrf.mxu0
      %v3321 = vadd.f32 0.0, %v3320
      %v3322 = vpop.f32.mrf.mxu0
      %v3323 = vadd.f32 0.0, %v3322
      %3324 = vmatmul.bf16.gmra.mxu0 %v2748
      %v3325 = vpop.f32.mrf.mxu0
      %v3326 = vadd.f32 0.0, %v3325
      %v3327 = vpop.f32.mrf.mxu0
      %v3328 = vadd.f32 0.0, %v3327
      %3329 = vmatmul.bf16.gmra.mxu0 %v2749
      %v3330 = vpop.f32.mrf.mxu0
      %v3331 = vadd.f32 0.0, %v3330
      %v3332 = vpop.f32.mrf.mxu0
      %v3333 = vadd.f32 0.0, %v3332
      %3334 = vmatmul.bf16.gmra.mxu0 %v2750
      %v3335 = vpop.f32.mrf.mxu0
      %v3336 = vadd.f32 0.0, %v3335
      %v3337 = vpop.f32.mrf.mxu0
      %v3338 = vadd.f32 0.0, %v3337
      %3339 = vmatmul.bf16.gmra.mxu0 %v2751
      %v3340 = vpop.f32.mrf.mxu0
      %v3341 = vadd.f32 0.0, %v3340
      %v3342 = vpop.f32.mrf.mxu0
      %v3343 = vadd.f32 0.0, %v3342
      %3344 = vmatmul.bf16.gmra.mxu0 %v2752
      %v3345 = vpop.f32.mrf.mxu0
      %v3346 = vadd.f32 0.0, %v3345
      %v3347 = vpop.f32.mrf.mxu0
      %v3348 = vadd.f32 0.0, %v3347
      %3349 = vmatmul.bf16.gmra.mxu0 %v2753
      %v3350 = vpop.f32.mrf.mxu0
      %v3351 = vadd.f32 0.0, %v3350
      %v3352 = vpop.f32.mrf.mxu0
      %v3353 = vadd.f32 0.0, %v3352
      %3354 = vmatmul.bf16.gmra.mxu0 %v2754
      %v3355 = vpop.f32.mrf.mxu0
      %v3356 = vadd.f32 0.0, %v3355
      %v3357 = vpop.f32.mrf.mxu0
      %v3358 = vadd.f32 0.0, %v3357
      %3359 = vmatmul.bf16.gmra.mxu0 %v2755
      %v3360 = vpop.f32.mrf.mxu0
      %v3361 = vadd.f32 0.0, %v3360
      %v3362 = vpop.f32.mrf.mxu0
      %v3363 = vadd.f32 0.0, %v3362
      %3364 = vmatmul.bf16.gmra.mxu0 %v2756
      %v3365 = vpop.f32.mrf.mxu0
      %v3366 = vadd.f32 0.0, %v3365
      %v3367 = vpop.f32.mrf.mxu0
      %v3368 = vadd.f32 0.0, %v3367
      %3369 = vmatmul.bf16.gmra.mxu0 %v2757
      %v3370 = vpop.f32.mrf.mxu0
      %v3371 = vadd.f32 0.0, %v3370
      %v3372 = vpop.f32.mrf.mxu0
      %v3373 = vadd.f32 0.0, %v3372
      %3374 = vmatmul.bf16.gmra.mxu0 %v2758
      %v3375 = vpop.f32.mrf.mxu0
      %v3376 = vadd.f32 0.0, %v3375
      %v3377 = vpop.f32.mrf.mxu0
      %v3378 = vadd.f32 0.0, %v3377
      %3379 = vmatmul.bf16.gmra.mxu0 %v2759
      %v3380 = vpop.f32.mrf.mxu0
      %v3381 = vadd.f32 0.0, %v3380
      %v3382 = vpop.f32.mrf.mxu0
      %v3383 = vadd.f32 0.0, %v3382
      %3384 = vmatmul.bf16.gmra.mxu0 %v2760
      %v3385 = vpop.f32.mrf.mxu0
      %v3386 = vadd.f32 0.0, %v3385
      %v3387 = vpop.f32.mrf.mxu0
      %v3388 = vadd.f32 0.0, %v3387
      %3389 = vmatmul.bf16.gmra.mxu0 %v2761
      %v3390 = vpop.f32.mrf.mxu0
      %v3391 = vadd.f32 0.0, %v3390
      %v3392 = vpop.f32.mrf.mxu0
      %v3393 = vadd.f32 0.0, %v3392
      %3394 = vmatmul.bf16.gmra.mxu0 %v2762
      %v3395 = vpop.f32.mrf.mxu0
      %v3396 = vadd.f32 0.0, %v3395
      %v3397 = vpop.f32.mrf.mxu0
      %v3398 = vadd.f32 0.0, %v3397
      %3399 = vmatmul.bf16.gmra.mxu0 %v2763
      %v3400 = vpop.f32.mrf.mxu0
      %v3401 = vadd.f32 0.0, %v3400
      %v3402 = vpop.f32.mrf.mxu0
      %v3403 = vadd.f32 0.0, %v3402
      %3404 = vmatmul.bf16.gmra.mxu0 %v2764
      %v3405 = vpop.f32.mrf.mxu0
      %v3406 = vadd.f32 0.0, %v3405
      %v3407 = vpop.f32.mrf.mxu0
      %v3408 = vadd.f32 0.0, %v3407
      %3409 = vmatmul.bf16.gmra.mxu0 %v2765
      %v3410 = vpop.f32.mrf.mxu0
      %v3411 = vadd.f32 0.0, %v3410
      %v3412 = vpop.f32.mrf.mxu0
      %v3413 = vadd.f32 0.0, %v3412
      %3414 = vmatmul.bf16.gmra.mxu0 %v2766
      %v3415 = vpop.f32.mrf.mxu0
      %v3416 = vadd.f32 0.0, %v3415
      %v3417 = vpop.f32.mrf.mxu0
      %v3418 = vadd.f32 0.0, %v3417
      %3419 = vmatmul.bf16.gmra.mxu0 %v2767
      %v3420 = vpop.f32.mrf.mxu0
      %v3421 = vadd.f32 0.0, %v3420
      %v3422 = vpop.f32.mrf.mxu0
      %3423 = vmatmul.bf16.gmra.mxu0 %v2768
      %v3424 = vpop.f32.mrf.mxu0
      %v3425 = vpop.f32.mrf.mxu0
      %3426 = vdwg.mxu0
      %3427 = vmatpush.bf16.msra.mxu0 %v3278
      %3428 = vmatpush.bf16.msra.mxu0 %v3277
      %3429 = vmatpush.bf16.msra.mxu0 %v3276
      %3430 = vmatpush.bf16.msra.mxu0 %v3275
      %3431 = vmatpush.bf16.msra.mxu0 %v3274
      %3432 = vmatpush.bf16.msra.mxu0 %v3273
      %3433 = vmatpush.bf16.msra.mxu0 %v3272
      %3434 = vmatpush.bf16.msra.mxu0 %v3271
      %3435 = vmatmul.bf16.gmra.mxu0 %v2813
      %v3436 = vpop.f32.mrf.mxu0
      %v3437 = vadd.f32 %v3321, %v3436
      %v3438 = vpop.f32.mrf.mxu0
      %v3439 = vadd.f32 %v3323, %v3438
      %3440 = vmatmul.bf16.gmra.mxu0 %v2821
      %v3441 = vpop.f32.mrf.mxu0
      %v3442 = vadd.f32 %v3326, %v3441
      %v3443 = vpop.f32.mrf.mxu0
      %v3444 = vadd.f32 %v3328, %v3443
      %3445 = vmatmul.bf16.gmra.mxu0 %v2829
      %v3446 = vpop.f32.mrf.mxu0
      %v3447 = vadd.f32 %v3331, %v3446
      %v3448 = vpop.f32.mrf.mxu0
      %v3449 = vadd.f32 %v3333, %v3448
      %3450 = vmatmul.bf16.gmra.mxu0 %v2837
      %v3451 = vpop.f32.mrf.mxu0
      %v3452 = vadd.f32 %v3336, %v3451
      %v3453 = vpop.f32.mrf.mxu0
      %v3454 = vadd.f32 %v3338, %v3453
      %3455 = vmatmul.bf16.gmra.mxu0 %v2845
      %v3456 = vpop.f32.mrf.mxu0
      %v3457 = vadd.f32 %v3341, %v3456
      %v3458 = vpop.f32.mrf.mxu0
      %v3459 = vadd.f32 %v3343, %v3458
      %3460 = vmatmul.bf16.gmra.mxu0 %v2853
      %v3461 = vpop.f32.mrf.mxu0
      %v3462 = vadd.f32 %v3346, %v3461
      %v3463 = vpop.f32.mrf.mxu0
      %v3464 = vadd.f32 %v3348, %v3463
      %3465 = vmatmul.bf16.gmra.mxu0 %v2861
      %v3466 = vpop.f32.mrf.mxu0
      %v3467 = vadd.f32 %v3351, %v3466
      %v3468 = vpop.f32.mrf.mxu0
      %v3469 = vadd.f32 %v3353, %v3468
      %3470 = vmatmul.bf16.gmra.mxu0 %v2869
      %v3471 = vpop.f32.mrf.mxu0
      %v3472 = vadd.f32 %v3356, %v3471
      %v3473 = vpop.f32.mrf.mxu0
      %v3474 = vadd.f32 %v3358, %v3473
      %3475 = vmatmul.bf16.gmra.mxu0 %v2877
      %v3476 = vpop.f32.mrf.mxu0
      %v3477 = vadd.f32 %v3361, %v3476
      %v3478 = vpop.f32.mrf.mxu0
      %v3479 = vadd.f32 %v3363, %v3478
      %3480 = vmatmul.bf16.gmra.mxu0 %v2885
      %v3481 = vpop.f32.mrf.mxu0
      %v3482 = vadd.f32 %v3366, %v3481
      %v3483 = vpop.f32.mrf.mxu0
      %v3484 = vadd.f32 %v3368, %v3483
      %3485 = vmatmul.bf16.gmra.mxu0 %v2893
      %v3486 = vpop.f32.mrf.mxu0
      %v3487 = vadd.f32 %v3371, %v3486
      %v3488 = vpop.f32.mrf.mxu0
      %v3489 = vadd.f32 %v3373, %v3488
      %3490 = vmatmul.bf16.gmra.mxu0 %v2901
      %v3491 = vpop.f32.mrf.mxu0
      %v3492 = vadd.f32 %v3376, %v3491
      %v3493 = vpop.f32.mrf.mxu0
      %v3494 = vadd.f32 %v3378, %v3493
      %3495 = vmatmul.bf16.gmra.mxu0 %v2909
      %v3496 = vpop.f32.mrf.mxu0
      %v3497 = vadd.f32 %v3381, %v3496
      %v3498 = vpop.f32.mrf.mxu0
      %v3499 = vadd.f32 %v3383, %v3498
      %3500 = vmatmul.bf16.gmra.mxu0 %v2917
      %v3501 = vpop.f32.mrf.mxu0
      %v3502 = vadd.f32 %v3386, %v3501
      %v3503 = vpop.f32.mrf.mxu0
      %v3504 = vadd.f32 %v3388, %v3503
      %3505 = vmatmul.bf16.gmra.mxu0 %v2925
      %v3506 = vpop.f32.mrf.mxu0
      %v3507 = vadd.f32 %v3391, %v3506
      %v3508 = vpop.f32.mrf.mxu0
      %v3509 = vadd.f32 %v3393, %v3508
      %3510 = vmatmul.bf16.gmra.mxu0 %v2933
      %v3511 = vpop.f32.mrf.mxu0
      %v3512 = vadd.f32 %v3396, %v3511
      %v3513 = vpop.f32.mrf.mxu0
      %v3514 = vadd.f32 %v3398, %v3513
      %3515 = vmatmul.bf16.gmra.mxu0 %v2941
      %v3516 = vpop.f32.mrf.mxu0
      %v3517 = vadd.f32 %v3401, %v3516
      %v3518 = vpop.f32.mrf.mxu0
      %v3519 = vadd.f32 %v3403, %v3518
      %3520 = vmatmul.bf16.gmra.mxu0 %v2949
      %v3521 = vpop.f32.mrf.mxu0
      %v3522 = vadd.f32 %v3406, %v3521
      %v3523 = vpop.f32.mrf.mxu0
      %v3524 = vadd.f32 %v3408, %v3523
      %3525 = vmatmul.bf16.gmra.mxu0 %v2957
      %v3526 = vpop.f32.mrf.mxu0
      %v3527 = vadd.f32 %v3411, %v3526
      %v3528 = vpop.f32.mrf.mxu0
      %v3529 = vadd.f32 %v3413, %v3528
      %3530 = vmatmul.bf16.gmra.mxu0 %v2965
      %v3531 = vpop.f32.mrf.mxu0
      %v3532 = vadd.f32 %v3416, %v3531
      %v3533 = vpop.f32.mrf.mxu0
      %v3534 = vadd.f32 %v3418, %v3533
      %3535 = vmatmul.bf16.gmra.mxu0 %v2973
      %v3536 = vpop.f32.mrf.mxu0
      %v3537 = vadd.f32 %v3421, %v3536
      %v3538 = vpop.f32.mrf.mxu0
      %3539 = vmatmul.bf16.gmra.mxu0 %v2981
      %v3540 = vpop.f32.mrf.mxu0
      %v3541 = vpop.f32.mrf.mxu0
      %3542 = vdwg.mxu0
      %3543 = vmatpush.bf16.msra.mxu0 %v3286
      %3544 = vmatpush.bf16.msra.mxu0 %v3285
      %3545 = vmatpush.bf16.msra.mxu0 %v3284
      %3546 = vmatpush.bf16.msra.mxu0 %v3283
      %3547 = vmatpush.bf16.msra.mxu0 %v3282
      %3548 = vmatpush.bf16.msra.mxu0 %v3281
      %3549 = vmatpush.bf16.msra.mxu0 %v3280
      %3550 = vmatpush.bf16.msra.mxu0 %v3279
      %3551 = vmatmul.bf16.gmra.mxu0 %v3042
      %v3552 = vpop.f32.mrf.mxu0
      %v3553 = vadd.f32 %v3437, %v3552
      %v3554 = vpop.f32.mrf.mxu0
      %v3555 = vadd.f32 %v3439, %v3554
      %3556 = vmatmul.bf16.gmra.mxu0 %v3044
      %v3557 = vpop.f32.mrf.mxu0
      %v3558 = vadd.f32 %v3442, %v3557
      %v3559 = vpop.f32.mrf.mxu0
      %v3560 = vadd.f32 %v3444, %v3559
      %3561 = vmatmul.bf16.gmra.mxu0 %v3046
      %v3562 = vpop.f32.mrf.mxu0
      %v3563 = vadd.f32 %v3447, %v3562
      %v3564 = vpop.f32.mrf.mxu0
      %v3565 = vadd.f32 %v3449, %v3564
      %3566 = vmatmul.bf16.gmra.mxu0 %v3048
      %v3567 = vpop.f32.mrf.mxu0
      %v3568 = vadd.f32 %v3452, %v3567
      %v3569 = vpop.f32.mrf.mxu0
      %v3570 = vadd.f32 %v3454, %v3569
      %3571 = vmatmul.bf16.gmra.mxu0 %v3050
      %v3572 = vpop.f32.mrf.mxu0
      %v3573 = vadd.f32 %v3457, %v3572
      %v3574 = vpop.f32.mrf.mxu0
      %v3575 = vadd.f32 %v3459, %v3574
      %3576 = vmatmul.bf16.gmra.mxu0 %v3052
      %v3577 = vpop.f32.mrf.mxu0
      %v3578 = vadd.f32 %v3462, %v3577
      %v3579 = vpop.f32.mrf.mxu0
      %v3580 = vadd.f32 %v3464, %v3579
      %3581 = vmatmul.bf16.gmra.mxu0 %v3054
      %v3582 = vpop.f32.mrf.mxu0
      %v3583 = vadd.f32 %v3467, %v3582
      %v3584 = vpop.f32.mrf.mxu0
      %v3585 = vadd.f32 %v3469, %v3584
      %3586 = vmatmul.bf16.gmra.mxu0 %v3056
      %v3587 = vpop.f32.mrf.mxu0
      %v3588 = vadd.f32 %v3472, %v3587
      %v3589 = vpop.f32.mrf.mxu0
      %v3590 = vadd.f32 %v3474, %v3589
      %3591 = vmatmul.bf16.gmra.mxu0 %v3058
      %v3592 = vpop.f32.mrf.mxu0
      %v3593 = vadd.f32 %v3477, %v3592
      %v3594 = vpop.f32.mrf.mxu0
      %v3595 = vadd.f32 %v3479, %v3594
      %3596 = vmatmul.bf16.gmra.mxu0 %v3060
      %v3597 = vpop.f32.mrf.mxu0
      %v3598 = vadd.f32 %v3482, %v3597
      %v3599 = vpop.f32.mrf.mxu0
      %v3600 = vadd.f32 %v3484, %v3599
      %3601 = vmatmul.bf16.gmra.mxu0 %v3062
      %v3602 = vpop.f32.mrf.mxu0
      %v3603 = vadd.f32 %v3487, %v3602
      %v3604 = vpop.f32.mrf.mxu0
      %v3605 = vadd.f32 %v3489, %v3604
      %3606 = vmatmul.bf16.gmra.mxu0 %v3064
      %v3607 = vpop.f32.mrf.mxu0
      %v3608 = vadd.f32 %v3492, %v3607
      %v3609 = vpop.f32.mrf.mxu0
      %v3610 = vadd.f32 %v3494, %v3609
      %3611 = vmatmul.bf16.gmra.mxu0 %v3066
      %v3612 = vpop.f32.mrf.mxu0
      %v3613 = vadd.f32 %v3497, %v3612
      %v3614 = vpop.f32.mrf.mxu0
      %v3615 = vadd.f32 %v3499, %v3614
      %3616 = vmatmul.bf16.gmra.mxu0 %v3068
      %v3617 = vpop.f32.mrf.mxu0
      %v3618 = vadd.f32 %v3502, %v3617
      %v3619 = vpop.f32.mrf.mxu0
      %v3620 = vadd.f32 %v3504, %v3619
      %3621 = vmatmul.bf16.gmra.mxu0 %v3070
      %v3622 = vpop.f32.mrf.mxu0
      %v3623 = vadd.f32 %v3507, %v3622
      %v3624 = vpop.f32.mrf.mxu0
      %v3625 = vadd.f32 %v3509, %v3624
      %3626 = vmatmul.bf16.gmra.mxu0 %v3072
      %v3627 = vpop.f32.mrf.mxu0
      %v3628 = vadd.f32 %v3512, %v3627
      %v3629 = vpop.f32.mrf.mxu0
      %v3630 = vadd.f32 %v3514, %v3629
      %3631 = vmatmul.bf16.gmra.mxu0 %v3074
      %v3632 = vpop.f32.mrf.mxu0
      %v3633 = vadd.f32 %v3517, %v3632
      %v3634 = vpop.f32.mrf.mxu0
      %v3635 = vadd.f32 %v3519, %v3634
      %3636 = vmatmul.bf16.gmra.mxu0 %v3076
      %v3637 = vpop.f32.mrf.mxu0
      %v3638 = vadd.f32 %v3522, %v3637
      %v3639 = vpop.f32.mrf.mxu0
      %v3640 = vadd.f32 %v3524, %v3639
      %3641 = vmatmul.bf16.gmra.mxu0 %v3078
      %v3642 = vpop.f32.mrf.mxu0
      %v3643 = vadd.f32 %v3527, %v3642
      %v3644 = vpop.f32.mrf.mxu0
      %v3645 = vadd.f32 %v3529, %v3644
      %3646 = vmatmul.bf16.gmra.mxu0 %v3080
      %v3647 = vpop.f32.mrf.mxu0
      %v3648 = vadd.f32 %v3532, %v3647
      %v3649 = vpop.f32.mrf.mxu0
      %v3650 = vadd.f32 %v3534, %v3649
      %3651 = vmatmul.bf16.gmra.mxu0 %v3082
      %v3652 = vpop.f32.mrf.mxu0
      %v3653 = vadd.f32 %v3537, %v3652
      %v3654 = vpop.f32.mrf.mxu0
      %3655 = vmatmul.bf16.gmra.mxu0 %v3084
      %v3656 = vpop.f32.mrf.mxu0
      %v3657 = vpop.f32.mrf.mxu0
      %3658 = vdwg.mxu0
      %v3659 = vadd.f32 %v2602, %v3553
      %v3660 = vadd.f32 %v2603, %v3555
      %v3661 = vadd.f32 %v2604, %v3558
      %v3662 = vadd.f32 %v2605, %v3560
      %v3663 = vadd.f32 %v2606, %v3563
      %v3664 = vadd.f32 %v2607, %v3565
      %v3665 = vadd.f32 %v2608, %v3568
      %v3666 = vadd.f32 %v2609, %v3570
      %v3667 = vadd.f32 %v2610, %v3573
      %v3668 = vadd.f32 %v2611, %v3575
      %v3669 = vadd.f32 %v2612, %v3578
      %v3670 = vadd.f32 %v2613, %v3580
      %v3671 = vadd.f32 %v2614, %v3583
      %v3672 = vadd.f32 %v2615, %v3585
      %v3673 = vadd.f32 %v2616, %v3588
      %v3674 = vadd.f32 %v2617, %v3590
      %v3675 = vadd.f32 %v2618, %v3593
      %v3676 = vadd.f32 %v2619, %v3595
      %v3677 = vadd.f32 %v2620, %v3598
      %v3678 = vadd.f32 %v2621, %v3600
      %v3679 = vadd.f32 %v2622, %v3603
      %v3680 = vadd.f32 %v2623, %v3605
      %v3681 = vadd.f32 %v2624, %v3608
      %v3682 = vadd.f32 %v2625, %v3610
      %v3683 = vadd.f32 %v2626, %v3613
      %v3684 = vadd.f32 %v2627, %v3615
      %v3685 = vadd.f32 %v2628, %v3618
      %v3686 = vadd.f32 %v2629, %v3620
      %v3687 = vadd.f32 %v2630, %v3623
      %v3688 = vadd.f32 %v2631, %v3625
      %v3689 = vadd.f32 %v2632, %v3628
      %v3690 = vadd.f32 %v2633, %v3630
      %v3691 = vadd.f32 %v2634, %v3633
      %v3692 = vadd.f32 %v2635, %v3635
      %v3693 = vadd.f32 %v2636, %v3638
      %v3694 = vadd.f32 %v2637, %v3640
      %v3695 = vadd.f32 %v2638, %v3643
      %v3696 = vadd.f32 %v2639, %v3645
      %v3697 = vadd.f32 %v2640, %v3648
      %v3698 = vadd.f32 %v2641, %v3650
      %v3699 = vadd.f32 %v2642, %v3653
      %s3700 = scalar_lea.vmem %s4, 192
      %v3701 = vld [vmem:[%s3700] sm:$0xf]
      %v3702 = vld [vmem:[%s3700 + $0x4] sm:$0xf]
      %v3703 = vld [vmem:[%s3700 + $0x8] sm:$0xf]
      %v3704 = vld [vmem:[%s3700 + $0xc] sm:$0xf]
      %v3705 = vld [vmem:[%s3700 + $0x10] sm:$0xf]
      %v3706 = vld [vmem:[%s3700 + $0x14] sm:$0xf]
      %v3707 = vld [vmem:[%s3700 + $0x18] sm:$0xf]
      %v3708 = vld [vmem:[%s3700 + $0x1c] sm:$0xf]
      %v3709 = vld [vmem:[%s3700 + $0x20] sm:$0xf]
      %v3710 = vld [vmem:[%s3700 + $0x24] sm:$0xf]
      %v3711 = vld [vmem:[%s3700 + $0x28] sm:$0xf]
      %v3712 = vld [vmem:[%s3700 + $0x2c] sm:$0xf]
      %v3713 = vld [vmem:[%s3700 + $0x30] sm:$0xf]
      %v3714 = vld [vmem:[%s3700 + $0x34] sm:$0xf]
      %v3715 = vld [vmem:[%s3700 + $0x38] sm:$0xf]
      %v3716 = vld [vmem:[%s3700 + $0x3c] sm:$0xf]
      %v3717 = vld [vmem:[%s3700 + $0x40] sm:$0xf]
      %v3718 = vld [vmem:[%s3700 + $0x44] sm:$0xf]
      %v3719 = vld [vmem:[%s3700 + $0x48] sm:$0xf]
      %v3720 = vld [vmem:[%s3700 + $0x4c] sm:$0xf]
      %v3721 = vld [vmem:[%s3700 + $0x50] sm:$0xf]
      %v3722 = vld [vmem:[%s3700 + $0x54] sm:$0xf]
      %v3723 = vld [vmem:[%s3700 + $0x58] sm:$0xf]
      %v3724 = vld [vmem:[%s3700 + $0x5c] sm:$0xf]
      %v3725 = vld [vmem:[%s3700 + $0x60] sm:$0xf]
      %v3726 = vld [vmem:[%s3700 + $0x64] sm:$0xf]
      %v3727 = vld [vmem:[%s3700 + $0x68] sm:$0xf]
      %v3728 = vld [vmem:[%s3700 + $0x6c] sm:$0xf]
      %v3729 = vld [vmem:[%s3700 + $0x70] sm:$0xf]
      %v3730 = vld [vmem:[%s3700 + $0x74] sm:$0xf]
      %v3731 = vld [vmem:[%s3700 + $0x78] sm:$0xf]
      %v3732 = vld [vmem:[%s3700 + $0x7c] sm:$0xf]
      %v3733 = vld [vmem:[%s3700 + $0x80] sm:$0xf]
      %v3734 = vld [vmem:[%s3700 + $0x84] sm:$0xf]
      %v3735 = vld [vmem:[%s3700 + $0x88] sm:$0xf]
      %v3736 = vld [vmem:[%s3700 + $0x8c] sm:$0xf]
      %v3737 = vld [vmem:[%s3700 + $0x90] sm:$0xf]
      %v3738 = vld [vmem:[%s3700 + $0x94] sm:$0xf]
      %v3739 = vld [vmem:[%s3700 + $0x98] sm:$0xf]
      %v3740 = vld [vmem:[%s3700 + $0x9c] sm:$0xf]
      %v3741 = vld [vmem:[%s3700 + $0xa0] sm:$0xf]
      %v3742 = vld [vmem:[%s3700 + $0xa4] sm:$0xf]
      %v3743 = vld [vmem:[%s3700 + $0xa8] sm:$0xf]
      %v3744 = vld [vmem:[%s3700 + $0xac] sm:$0xf]
      %v3745 = vld [vmem:[%s3700 + $0xb0] sm:$0xf]
      %v3746 = vld [vmem:[%s3700 + $0xb4] sm:$0xf]
      %v3747 = vld [vmem:[%s3700 + $0xb8] sm:$0xf]
      %v3748 = vld [vmem:[%s3700 + $0xbc] sm:$0xf]
      %v3797 = vunpack.c.l.b16 %v3701
      %v3798 = vunpack.c.l.b16 %v3702
      %v3799 = vunpack.c.l.b16 %v3703
      %v3800 = vunpack.c.l.b16 %v3704
      %v3801 = vunpack.c.l.b16 %v3705
      %v3802 = vunpack.c.l.b16 %v3706
      %v3803 = vunpack.c.l.b16 %v3707
      %v3804 = vunpack.c.l.b16 %v3708
      %v3805 = vunpack.c.l.b16 %v3709
      %v3806 = vunpack.c.l.b16 %v3710
      %v3807 = vunpack.c.l.b16 %v3711
      %v3808 = vunpack.c.l.b16 %v3712
      %v3809 = vunpack.c.l.b16 %v3713
      %v3810 = vunpack.c.l.b16 %v3714
      %v3811 = vunpack.c.l.b16 %v3715
      %v3812 = vunpack.c.l.b16 %v3716
      %v3813 = vunpack.c.l.b16 %v3717
      %v3814 = vunpack.c.l.b16 %v3718
      %v3815 = vunpack.c.l.b16 %v3719
      %v3816 = vunpack.c.l.b16 %v3720
      %v3817 = vunpack.c.l.b16 %v3721
      %v3818 = vunpack.c.l.b16 %v3722
      %v3819 = vunpack.c.l.b16 %v3723
      %v3820 = vunpack.c.l.b16 %v3724
      %v3821 = vunpack.c.l.b16 %v3725
      %v3822 = vunpack.c.l.b16 %v3726
      %v3823 = vunpack.c.l.b16 %v3727
      %v3824 = vunpack.c.l.b16 %v3728
      %v3825 = vunpack.c.l.b16 %v3729
      %v3826 = vunpack.c.l.b16 %v3730
      %v3827 = vunpack.c.l.b16 %v3731
      %v3828 = vunpack.c.l.b16 %v3732
      %v3829 = vunpack.c.l.b16 %v3733
      %v3830 = vunpack.c.l.b16 %v3734
      %v3831 = vunpack.c.l.b16 %v3735
      %v3832 = vunpack.c.l.b16 %v3736
      %v3833 = vunpack.c.l.b16 %v3737
      %v3834 = vunpack.c.l.b16 %v3738
      %v3835 = vunpack.c.l.b16 %v3739
      %v3836 = vunpack.c.l.b16 %v3740
      %v3837 = vunpack.c.l.b16 %v3741
      %v3838 = vunpack.c.l.b16 %v3742
      %v3839 = vunpack.c.l.b16 %v3743
      %v3840 = vunpack.c.l.b16 %v3744
      %v3841 = vunpack.c.l.b16 %v3745
      %v3842 = vunpack.c.l.b16 %v3746
      %v3843 = vunpack.c.l.b16 %v3747
      %v3844 = vunpack.c.l.b16 %v3748
      %v3845 = vpack.c.b16 %v3798, %v3797
      %v3846 = vpack.c.b16 %v3800, %v3799
      %v3847 = vpack.c.b16 %v3802, %v3801
      %v3848 = vpack.c.b16 %v3804, %v3803
      %v3849 = vpack.c.b16 %v3806, %v3805
      %v3850 = vpack.c.b16 %v3808, %v3807
      %v3851 = vpack.c.b16 %v3810, %v3809
      %v3852 = vpack.c.b16 %v3812, %v3811
      %v3853 = vpack.c.b16 %v3814, %v3813
      %v3854 = vpack.c.b16 %v3816, %v3815
      %v3855 = vpack.c.b16 %v3818, %v3817
      %v3856 = vpack.c.b16 %v3820, %v3819
      %v3857 = vpack.c.b16 %v3822, %v3821
      %v3858 = vpack.c.b16 %v3824, %v3823
      %v3859 = vpack.c.b16 %v3826, %v3825
      %v3860 = vpack.c.b16 %v3828, %v3827
      %v3861 = vpack.c.b16 %v3830, %v3829
      %v3862 = vpack.c.b16 %v3832, %v3831
      %v3863 = vpack.c.b16 %v3834, %v3833
      %v3864 = vpack.c.b16 %v3836, %v3835
      %v3865 = vpack.c.b16 %v3838, %v3837
      %v3866 = vpack.c.b16 %v3840, %v3839
      %v3867 = vpack.c.b16 %v3842, %v3841
      %v3868 = vpack.c.b16 %v3844, %v3843
      %3893 = vmatpush.bf16.msra.mxu0 %v3852
      %3894 = vmatpush.bf16.msra.mxu0 %v3851
      %3895 = vmatpush.bf16.msra.mxu0 %v3850
      %3896 = vmatpush.bf16.msra.mxu0 %v3849
      %3897 = vmatpush.bf16.msra.mxu0 %v3848
      %3898 = vmatpush.bf16.msra.mxu0 %v3847
      %3899 = vmatpush.bf16.msra.mxu0 %v3846
      %3900 = vmatpush.bf16.msra.mxu0 %v3845
      %3901 = vmatmul.bf16.gmra.mxu0 %v2749
      %v3902 = vpop.f32.mrf.mxu0
      %v3903 = vadd.f32 0.0, %v3902
      %v3904 = vpop.f32.mrf.mxu0
      %v3905 = vadd.f32 0.0, %v3904
      %3906 = vmatmul.bf16.gmra.mxu0 %v2750
      %v3907 = vpop.f32.mrf.mxu0
      %v3908 = vadd.f32 0.0, %v3907
      %v3909 = vpop.f32.mrf.mxu0
      %v3910 = vadd.f32 0.0, %v3909
      %3911 = vmatmul.bf16.gmra.mxu0 %v2751
      %v3912 = vpop.f32.mrf.mxu0
      %v3913 = vadd.f32 0.0, %v3912
      %v3914 = vpop.f32.mrf.mxu0
      %v3915 = vadd.f32 0.0, %v3914
      %3916 = vmatmul.bf16.gmra.mxu0 %v2752
      %v3917 = vpop.f32.mrf.mxu0
      %v3918 = vadd.f32 0.0, %v3917
      %v3919 = vpop.f32.mrf.mxu0
      %v3920 = vadd.f32 0.0, %v3919
      %3921 = vmatmul.bf16.gmra.mxu0 %v2753
      %v3922 = vpop.f32.mrf.mxu0
      %v3923 = vadd.f32 0.0, %v3922
      %v3924 = vpop.f32.mrf.mxu0
      %v3925 = vadd.f32 0.0, %v3924
      %3926 = vmatmul.bf16.gmra.mxu0 %v2754
      %v3927 = vpop.f32.mrf.mxu0
      %v3928 = vadd.f32 0.0, %v3927
      %v3929 = vpop.f32.mrf.mxu0
      %v3930 = vadd.f32 0.0, %v3929
      %3931 = vmatmul.bf16.gmra.mxu0 %v2755
      %v3932 = vpop.f32.mrf.mxu0
      %v3933 = vadd.f32 0.0, %v3932
      %v3934 = vpop.f32.mrf.mxu0
      %v3935 = vadd.f32 0.0, %v3934
      %3936 = vmatmul.bf16.gmra.mxu0 %v2756
      %v3937 = vpop.f32.mrf.mxu0
      %v3938 = vadd.f32 0.0, %v3937
      %v3939 = vpop.f32.mrf.mxu0
      %v3940 = vadd.f32 0.0, %v3939
      %3941 = vmatmul.bf16.gmra.mxu0 %v2757
      %v3942 = vpop.f32.mrf.mxu0
      %v3943 = vadd.f32 0.0, %v3942
      %v3944 = vpop.f32.mrf.mxu0
      %v3945 = vadd.f32 0.0, %v3944
      %3946 = vmatmul.bf16.gmra.mxu0 %v2758
      %v3947 = vpop.f32.mrf.mxu0
      %v3948 = vadd.f32 0.0, %v3947
      %v3949 = vpop.f32.mrf.mxu0
      %v3950 = vadd.f32 0.0, %v3949
      %3951 = vmatmul.bf16.gmra.mxu0 %v2759
      %v3952 = vpop.f32.mrf.mxu0
      %v3953 = vadd.f32 0.0, %v3952
      %v3954 = vpop.f32.mrf.mxu0
      %v3955 = vadd.f32 0.0, %v3954
      %3956 = vmatmul.bf16.gmra.mxu0 %v2760
      %v3957 = vpop.f32.mrf.mxu0
      %v3958 = vadd.f32 0.0, %v3957
      %v3959 = vpop.f32.mrf.mxu0
      %v3960 = vadd.f32 0.0, %v3959
      %3961 = vmatmul.bf16.gmra.mxu0 %v2761
      %v3962 = vpop.f32.mrf.mxu0
      %v3963 = vadd.f32 0.0, %v3962
      %v3964 = vpop.f32.mrf.mxu0
      %v3965 = vadd.f32 0.0, %v3964
      %3966 = vmatmul.bf16.gmra.mxu0 %v2762
      %v3967 = vpop.f32.mrf.mxu0
      %v3968 = vadd.f32 0.0, %v3967
      %v3969 = vpop.f32.mrf.mxu0
      %v3970 = vadd.f32 0.0, %v3969
      %3971 = vmatmul.bf16.gmra.mxu0 %v2763
      %v3972 = vpop.f32.mrf.mxu0
      %v3973 = vadd.f32 0.0, %v3972
      %v3974 = vpop.f32.mrf.mxu0
      %v3975 = vadd.f32 0.0, %v3974
      %3976 = vmatmul.bf16.gmra.mxu0 %v2764
      %v3977 = vpop.f32.mrf.mxu0
      %v3978 = vadd.f32 0.0, %v3977
      %v3979 = vpop.f32.mrf.mxu0
      %v3980 = vadd.f32 0.0, %v3979
      %3981 = vmatmul.bf16.gmra.mxu0 %v2765
      %v3982 = vpop.f32.mrf.mxu0
      %v3983 = vadd.f32 0.0, %v3982
      %v3984 = vpop.f32.mrf.mxu0
      %v3985 = vadd.f32 0.0, %v3984
      %3986 = vmatmul.bf16.gmra.mxu0 %v2766
      %v3987 = vpop.f32.mrf.mxu0
      %v3988 = vadd.f32 0.0, %v3987
      %v3989 = vpop.f32.mrf.mxu0
      %v3990 = vadd.f32 0.0, %v3989
      %3991 = vmatmul.bf16.gmra.mxu0 %v2767
      %v3992 = vpop.f32.mrf.mxu0
      %v3993 = vadd.f32 0.0, %v3992
      %v3994 = vpop.f32.mrf.mxu0
      %v3995 = vadd.f32 0.0, %v3994
      %3996 = vmatmul.bf16.gmra.mxu0 %v2768
      %v3997 = vpop.f32.mrf.mxu0
      %v3998 = vadd.f32 0.0, %v3997
      %v3999 = vpop.f32.mrf.mxu0
      %v4000 = vadd.f32 0.0, %v3999
      %4001 = vmatmul.bf16.gmra.mxu0 %v2769
      %v4002 = vpop.f32.mrf.mxu0
      %v4003 = vadd.f32 0.0, %v4002
      %v4004 = vpop.f32.mrf.mxu0
      %4005 = vmatmul.bf16.gmra.mxu0 %v2770
      %v4006 = vpop.f32.mrf.mxu0
      %v4007 = vpop.f32.mrf.mxu0
      %4008 = vdwg.mxu0
      %4009 = vmatpush.bf16.msra.mxu0 %v3860
      %4010 = vmatpush.bf16.msra.mxu0 %v3859
      %4011 = vmatpush.bf16.msra.mxu0 %v3858
      %4012 = vmatpush.bf16.msra.mxu0 %v3857
      %4013 = vmatpush.bf16.msra.mxu0 %v3856
      %4014 = vmatpush.bf16.msra.mxu0 %v3855
      %4015 = vmatpush.bf16.msra.mxu0 %v3854
      %4016 = vmatpush.bf16.msra.mxu0 %v3853
      %4017 = vmatmul.bf16.gmra.mxu0 %v2829
      %v4018 = vpop.f32.mrf.mxu0
      %v4019 = vadd.f32 %v3903, %v4018
      %v4020 = vpop.f32.mrf.mxu0
      %v4021 = vadd.f32 %v3905, %v4020
      %4022 = vmatmul.bf16.gmra.mxu0 %v2837
      %v4023 = vpop.f32.mrf.mxu0
      %v4024 = vadd.f32 %v3908, %v4023
      %v4025 = vpop.f32.mrf.mxu0
      %v4026 = vadd.f32 %v3910, %v4025
      %4027 = vmatmul.bf16.gmra.mxu0 %v2845
      %v4028 = vpop.f32.mrf.mxu0
      %v4029 = vadd.f32 %v3913, %v4028
      %v4030 = vpop.f32.mrf.mxu0
      %v4031 = vadd.f32 %v3915, %v4030
      %4032 = vmatmul.bf16.gmra.mxu0 %v2853
      %v4033 = vpop.f32.mrf.mxu0
      %v4034 = vadd.f32 %v3918, %v4033
      %v4035 = vpop.f32.mrf.mxu0
      %v4036 = vadd.f32 %v3920, %v4035
      %4037 = vmatmul.bf16.gmra.mxu0 %v2861
      %v4038 = vpop.f32.mrf.mxu0
      %v4039 = vadd.f32 %v3923, %v4038
      %v4040 = vpop.f32.mrf.mxu0
      %v4041 = vadd.f32 %v3925, %v4040
      %4042 = vmatmul.bf16.gmra.mxu0 %v2869
      %v4043 = vpop.f32.mrf.mxu0
      %v4044 = vadd.f32 %v3928, %v4043
      %v4045 = vpop.f32.mrf.mxu0
      %v4046 = vadd.f32 %v3930, %v4045
      %4047 = vmatmul.bf16.gmra.mxu0 %v2877
      %v4048 = vpop.f32.mrf.mxu0
      %v4049 = vadd.f32 %v3933, %v4048
      %v4050 = vpop.f32.mrf.mxu0
      %v4051 = vadd.f32 %v3935, %v4050
      %4052 = vmatmul.bf16.gmra.mxu0 %v2885
      %v4053 = vpop.f32.mrf.mxu0
      %v4054 = vadd.f32 %v3938, %v4053
      %v4055 = vpop.f32.mrf.mxu0
      %v4056 = vadd.f32 %v3940, %v4055
      %4057 = vmatmul.bf16.gmra.mxu0 %v2893
      %v4058 = vpop.f32.mrf.mxu0
      %v4059 = vadd.f32 %v3943, %v4058
      %v4060 = vpop.f32.mrf.mxu0
      %v4061 = vadd.f32 %v3945, %v4060
      %4062 = vmatmul.bf16.gmra.mxu0 %v2901
      %v4063 = vpop.f32.mrf.mxu0
      %v4064 = vadd.f32 %v3948, %v4063
      %v4065 = vpop.f32.mrf.mxu0
      %v4066 = vadd.f32 %v3950, %v4065
      %4067 = vmatmul.bf16.gmra.mxu0 %v2909
      %v4068 = vpop.f32.mrf.mxu0
      %v4069 = vadd.f32 %v3953, %v4068
      %v4070 = vpop.f32.mrf.mxu0
      %v4071 = vadd.f32 %v3955, %v4070
      %4072 = vmatmul.bf16.gmra.mxu0 %v2917
      %v4073 = vpop.f32.mrf.mxu0
      %v4074 = vadd.f32 %v3958, %v4073
      %v4075 = vpop.f32.mrf.mxu0
      %v4076 = vadd.f32 %v3960, %v4075
      %4077 = vmatmul.bf16.gmra.mxu0 %v2925
      %v4078 = vpop.f32.mrf.mxu0
      %v4079 = vadd.f32 %v3963, %v4078
      %v4080 = vpop.f32.mrf.mxu0
      %v4081 = vadd.f32 %v3965, %v4080
      %4082 = vmatmul.bf16.gmra.mxu0 %v2933
      %v4083 = vpop.f32.mrf.mxu0
      %v4084 = vadd.f32 %v3968, %v4083
      %v4085 = vpop.f32.mrf.mxu0
      %v4086 = vadd.f32 %v3970, %v4085
      %4087 = vmatmul.bf16.gmra.mxu0 %v2941
      %v4088 = vpop.f32.mrf.mxu0
      %v4089 = vadd.f32 %v3973, %v4088
      %v4090 = vpop.f32.mrf.mxu0
      %v4091 = vadd.f32 %v3975, %v4090
      %4092 = vmatmul.bf16.gmra.mxu0 %v2949
      %v4093 = vpop.f32.mrf.mxu0
      %v4094 = vadd.f32 %v3978, %v4093
      %v4095 = vpop.f32.mrf.mxu0
      %v4096 = vadd.f32 %v3980, %v4095
      %4097 = vmatmul.bf16.gmra.mxu0 %v2957
      %v4098 = vpop.f32.mrf.mxu0
      %v4099 = vadd.f32 %v3983, %v4098
      %v4100 = vpop.f32.mrf.mxu0
      %v4101 = vadd.f32 %v3985, %v4100
      %4102 = vmatmul.bf16.gmra.mxu0 %v2965
      %v4103 = vpop.f32.mrf.mxu0
      %v4104 = vadd.f32 %v3988, %v4103
      %v4105 = vpop.f32.mrf.mxu0
      %v4106 = vadd.f32 %v3990, %v4105
      %4107 = vmatmul.bf16.gmra.mxu0 %v2973
      %v4108 = vpop.f32.mrf.mxu0
      %v4109 = vadd.f32 %v3993, %v4108
      %v4110 = vpop.f32.mrf.mxu0
      %v4111 = vadd.f32 %v3995, %v4110
      %4112 = vmatmul.bf16.gmra.mxu0 %v2981
      %v4113 = vpop.f32.mrf.mxu0
      %v4114 = vadd.f32 %v3998, %v4113
      %v4115 = vpop.f32.mrf.mxu0
      %v4116 = vadd.f32 %v4000, %v4115
      %4117 = vmatmul.bf16.gmra.mxu0 %v2989
      %v4118 = vpop.f32.mrf.mxu0
      %v4119 = vadd.f32 %v4003, %v4118
      %v4120 = vpop.f32.mrf.mxu0
      %4121 = vmatmul.bf16.gmra.mxu0 %v2997
      %v4122 = vpop.f32.mrf.mxu0
      %v4123 = vpop.f32.mrf.mxu0
      %4124 = vdwg.mxu0
      %4125 = vmatpush.bf16.msra.mxu0 %v3868
      %4126 = vmatpush.bf16.msra.mxu0 %v3867
      %4127 = vmatpush.bf16.msra.mxu0 %v3866
      %4128 = vmatpush.bf16.msra.mxu0 %v3865
      %4129 = vmatpush.bf16.msra.mxu0 %v3864
      %4130 = vmatpush.bf16.msra.mxu0 %v3863
      %4131 = vmatpush.bf16.msra.mxu0 %v3862
      %4132 = vmatpush.bf16.msra.mxu0 %v3861
      %4133 = vmatmul.bf16.gmra.mxu0 %v3046
      %v4134 = vpop.f32.mrf.mxu0
      %v4135 = vadd.f32 %v4019, %v4134
      %v4136 = vpop.f32.mrf.mxu0
      %v4137 = vadd.f32 %v4021, %v4136
      %4138 = vmatmul.bf16.gmra.mxu0 %v3048
      %v4139 = vpop.f32.mrf.mxu0
      %v4140 = vadd.f32 %v4024, %v4139
      %v4141 = vpop.f32.mrf.mxu0
      %v4142 = vadd.f32 %v4026, %v4141
      %4143 = vmatmul.bf16.gmra.mxu0 %v3050
      %v4144 = vpop.f32.mrf.mxu0
      %v4145 = vadd.f32 %v4029, %v4144
      %v4146 = vpop.f32.mrf.mxu0
      %v4147 = vadd.f32 %v4031, %v4146
      %4148 = vmatmul.bf16.gmra.mxu0 %v3052
      %v4149 = vpop.f32.mrf.mxu0
      %v4150 = vadd.f32 %v4034, %v4149
      %v4151 = vpop.f32.mrf.mxu0
      %v4152 = vadd.f32 %v4036, %v4151
      %4153 = vmatmul.bf16.gmra.mxu0 %v3054
      %v4154 = vpop.f32.mrf.mxu0
      %v4155 = vadd.f32 %v4039, %v4154
      %v4156 = vpop.f32.mrf.mxu0
      %v4157 = vadd.f32 %v4041, %v4156
      %4158 = vmatmul.bf16.gmra.mxu0 %v3056
      %v4159 = vpop.f32.mrf.mxu0
      %v4160 = vadd.f32 %v4044, %v4159
      %v4161 = vpop.f32.mrf.mxu0
      %v4162 = vadd.f32 %v4046, %v4161
      %4163 = vmatmul.bf16.gmra.mxu0 %v3058
      %v4164 = vpop.f32.mrf.mxu0
      %v4165 = vadd.f32 %v4049, %v4164
      %v4166 = vpop.f32.mrf.mxu0
      %v4167 = vadd.f32 %v4051, %v4166
      %4168 = vmatmul.bf16.gmra.mxu0 %v3060
      %v4169 = vpop.f32.mrf.mxu0
      %v4170 = vadd.f32 %v4054, %v4169
      %v4171 = vpop.f32.mrf.mxu0
      %v4172 = vadd.f32 %v4056, %v4171
      %4173 = vmatmul.bf16.gmra.mxu0 %v3062
      %v4174 = vpop.f32.mrf.mxu0
      %v4175 = vadd.f32 %v4059, %v4174
      %v4176 = vpop.f32.mrf.mxu0
      %v4177 = vadd.f32 %v4061, %v4176
      %4178 = vmatmul.bf16.gmra.mxu0 %v3064
      %v4179 = vpop.f32.mrf.mxu0
      %v4180 = vadd.f32 %v4064, %v4179
      %v4181 = vpop.f32.mrf.mxu0
      %v4182 = vadd.f32 %v4066, %v4181
      %4183 = vmatmul.bf16.gmra.mxu0 %v3066
      %v4184 = vpop.f32.mrf.mxu0
      %v4185 = vadd.f32 %v4069, %v4184
      %v4186 = vpop.f32.mrf.mxu0
      %v4187 = vadd.f32 %v4071, %v4186
      %4188 = vmatmul.bf16.gmra.mxu0 %v3068
      %v4189 = vpop.f32.mrf.mxu0
      %v4190 = vadd.f32 %v4074, %v4189
      %v4191 = vpop.f32.mrf.mxu0
      %v4192 = vadd.f32 %v4076, %v4191
      %4193 = vmatmul.bf16.gmra.mxu0 %v3070
      %v4194 = vpop.f32.mrf.mxu0
      %v4195 = vadd.f32 %v4079, %v4194
      %v4196 = vpop.f32.mrf.mxu0
      %v4197 = vadd.f32 %v4081, %v4196
      %4198 = vmatmul.bf16.gmra.mxu0 %v3072
      %v4199 = vpop.f32.mrf.mxu0
      %v4200 = vadd.f32 %v4084, %v4199
      %v4201 = vpop.f32.mrf.mxu0
      %v4202 = vadd.f32 %v4086, %v4201
      %4203 = vmatmul.bf16.gmra.mxu0 %v3074
      %v4204 = vpop.f32.mrf.mxu0
      %v4205 = vadd.f32 %v4089, %v4204
      %v4206 = vpop.f32.mrf.mxu0
      %v4207 = vadd.f32 %v4091, %v4206
      %4208 = vmatmul.bf16.gmra.mxu0 %v3076
      %v4209 = vpop.f32.mrf.mxu0
      %v4210 = vadd.f32 %v4094, %v4209
      %v4211 = vpop.f32.mrf.mxu0
      %v4212 = vadd.f32 %v4096, %v4211
      %4213 = vmatmul.bf16.gmra.mxu0 %v3078
      %v4214 = vpop.f32.mrf.mxu0
      %v4215 = vadd.f32 %v4099, %v4214
      %v4216 = vpop.f32.mrf.mxu0
      %v4217 = vadd.f32 %v4101, %v4216
      %4218 = vmatmul.bf16.gmra.mxu0 %v3080
      %v4219 = vpop.f32.mrf.mxu0
      %v4220 = vadd.f32 %v4104, %v4219
      %v4221 = vpop.f32.mrf.mxu0
      %v4222 = vadd.f32 %v4106, %v4221
      %4223 = vmatmul.bf16.gmra.mxu0 %v3082
      %v4224 = vpop.f32.mrf.mxu0
      %v4225 = vadd.f32 %v4109, %v4224
      %v4226 = vpop.f32.mrf.mxu0
      %v4227 = vadd.f32 %v4111, %v4226
      %4228 = vmatmul.bf16.gmra.mxu0 %v3084
      %v4229 = vpop.f32.mrf.mxu0
      %v4230 = vadd.f32 %v4114, %v4229
      %v4231 = vpop.f32.mrf.mxu0
      %v4232 = vadd.f32 %v4116, %v4231
      %4233 = vmatmul.bf16.gmra.mxu0 %v3086
      %v4234 = vpop.f32.mrf.mxu0
      %v4235 = vadd.f32 %v4119, %v4234
      %v4236 = vpop.f32.mrf.mxu0
      %4237 = vmatmul.bf16.gmra.mxu0 %v3088
      %v4238 = vpop.f32.mrf.mxu0
      %v4239 = vpop.f32.mrf.mxu0
      %4240 = vdwg.mxu0
      %v4241 = vadd.f32 %v3659, %v4135
      %v4242 = vadd.f32 %v3660, %v4137
      %v4243 = vadd.f32 %v3661, %v4140
      %v4244 = vadd.f32 %v3662, %v4142
      %v4245 = vadd.f32 %v3663, %v4145
      %v4246 = vadd.f32 %v3664, %v4147
      %v4247 = vadd.f32 %v3665, %v4150
      %v4248 = vadd.f32 %v3666, %v4152
      %v4249 = vadd.f32 %v3667, %v4155
      %v4250 = vadd.f32 %v3668, %v4157
      %v4251 = vadd.f32 %v3669, %v4160
      %v4252 = vadd.f32 %v3670, %v4162
      %v4253 = vadd.f32 %v3671, %v4165
      %v4254 = vadd.f32 %v3672, %v4167
      %v4255 = vadd.f32 %v3673, %v4170
      %v4256 = vadd.f32 %v3674, %v4172
      %v4257 = vadd.f32 %v3675, %v4175
      %v4258 = vadd.f32 %v3676, %v4177
      %v4259 = vadd.f32 %v3677, %v4180
      %v4260 = vadd.f32 %v3678, %v4182
      %v4261 = vadd.f32 %v3679, %v4185
      %v4262 = vadd.f32 %v3680, %v4187
      %v4263 = vadd.f32 %v3681, %v4190
      %v4264 = vadd.f32 %v3682, %v4192
      %v4265 = vadd.f32 %v3683, %v4195
      %v4266 = vadd.f32 %v3684, %v4197
      %v4267 = vadd.f32 %v3685, %v4200
      %v4268 = vadd.f32 %v3686, %v4202
      %v4269 = vadd.f32 %v3687, %v4205
      %v4270 = vadd.f32 %v3688, %v4207
      %v4271 = vadd.f32 %v3689, %v4210
      %v4272 = vadd.f32 %v3690, %v4212
      %v4273 = vadd.f32 %v3691, %v4215
      %v4274 = vadd.f32 %v3692, %v4217
      %v4275 = vadd.f32 %v3693, %v4220
      %v4276 = vadd.f32 %v3694, %v4222
      %v4277 = vadd.f32 %v3695, %v4225
      %v4278 = vadd.f32 %v3696, %v4227
      %v4279 = vadd.f32 %v3697, %v4230
      %v4280 = vadd.f32 %v3698, %v4232
      %v4281 = vadd.f32 %v3699, %v4235
      %s4282 = scalar_lea.vmem %s4, 384
      %v4283 = vld [vmem:[%s4282] sm:$0xf]
      %v4284 = vld [vmem:[%s4282 + $0x4] sm:$0xf]
      %v4285 = vld [vmem:[%s4282 + $0x8] sm:$0xf]
      %v4286 = vld [vmem:[%s4282 + $0xc] sm:$0xf]
      %v4287 = vld [vmem:[%s4282 + $0x10] sm:$0xf]
      %v4288 = vld [vmem:[%s4282 + $0x14] sm:$0xf]
      %v4289 = vld [vmem:[%s4282 + $0x18] sm:$0xf]
      %v4290 = vld [vmem:[%s4282 + $0x1c] sm:$0xf]
      %v4291 = vld [vmem:[%s4282 + $0x20] sm:$0xf]
      %v4292 = vld [vmem:[%s4282 + $0x24] sm:$0xf]
      %v4293 = vld [vmem:[%s4282 + $0x28] sm:$0xf]
      %v4294 = vld [vmem:[%s4282 + $0x2c] sm:$0xf]
      %v4295 = vld [vmem:[%s4282 + $0x30] sm:$0xf]
      %v4296 = vld [vmem:[%s4282 + $0x34] sm:$0xf]
      %v4297 = vld [vmem:[%s4282 + $0x38] sm:$0xf]
      %v4298 = vld [vmem:[%s4282 + $0x3c] sm:$0xf]
      %v4299 = vld [vmem:[%s4282 + $0x40] sm:$0xf]
      %v4300 = vld [vmem:[%s4282 + $0x44] sm:$0xf]
      %v4301 = vld [vmem:[%s4282 + $0x48] sm:$0xf]
      %v4302 = vld [vmem:[%s4282 + $0x4c] sm:$0xf]
      %v4303 = vld [vmem:[%s4282 + $0x50] sm:$0xf]
      %v4304 = vld [vmem:[%s4282 + $0x54] sm:$0xf]
      %v4305 = vld [vmem:[%s4282 + $0x58] sm:$0xf]
      %v4306 = vld [vmem:[%s4282 + $0x5c] sm:$0xf]
      %v4307 = vld [vmem:[%s4282 + $0x60] sm:$0xf]
      %v4308 = vld [vmem:[%s4282 + $0x64] sm:$0xf]
      %v4309 = vld [vmem:[%s4282 + $0x68] sm:$0xf]
      %v4310 = vld [vmem:[%s4282 + $0x6c] sm:$0xf]
      %v4311 = vld [vmem:[%s4282 + $0x70] sm:$0xf]
      %v4312 = vld [vmem:[%s4282 + $0x74] sm:$0xf]
      %v4313 = vld [vmem:[%s4282 + $0x78] sm:$0xf]
      %v4314 = vld [vmem:[%s4282 + $0x7c] sm:$0xf]
      %v4315 = vld [vmem:[%s4282 + $0x80] sm:$0xf]
      %v4316 = vld [vmem:[%s4282 + $0x84] sm:$0xf]
      %v4317 = vld [vmem:[%s4282 + $0x88] sm:$0xf]
      %v4318 = vld [vmem:[%s4282 + $0x8c] sm:$0xf]
      %v4319 = vld [vmem:[%s4282 + $0x90] sm:$0xf]
      %v4320 = vld [vmem:[%s4282 + $0x94] sm:$0xf]
      %v4321 = vld [vmem:[%s4282 + $0x98] sm:$0xf]
      %v4322 = vld [vmem:[%s4282 + $0x9c] sm:$0xf]
      %v4323 = vld [vmem:[%s4282 + $0xa0] sm:$0xf]
      %v4324 = vld [vmem:[%s4282 + $0xa4] sm:$0xf]
      %v4325 = vld [vmem:[%s4282 + $0xa8] sm:$0xf]
      %v4326 = vld [vmem:[%s4282 + $0xac] sm:$0xf]
      %v4327 = vld [vmem:[%s4282 + $0xb0] sm:$0xf]
      %v4328 = vld [vmem:[%s4282 + $0xb4] sm:$0xf]
      %v4329 = vld [vmem:[%s4282 + $0xb8] sm:$0xf]
      %v4330 = vld [vmem:[%s4282 + $0xbc] sm:$0xf]
      %v4379 = vunpack.c.l.b16 %v4283
      %v4380 = vunpack.c.l.b16 %v4284
      %v4381 = vunpack.c.l.b16 %v4285
      %v4382 = vunpack.c.l.b16 %v4286
      %v4383 = vunpack.c.l.b16 %v4287
      %v4384 = vunpack.c.l.b16 %v4288
      %v4385 = vunpack.c.l.b16 %v4289
      %v4386 = vunpack.c.l.b16 %v4290
      %v4387 = vunpack.c.l.b16 %v4291
      %v4388 = vunpack.c.l.b16 %v4292
      %v4389 = vunpack.c.l.b16 %v4293
      %v4390 = vunpack.c.l.b16 %v4294
      %v4391 = vunpack.c.l.b16 %v4295
      %v4392 = vunpack.c.l.b16 %v4296
      %v4393 = vunpack.c.l.b16 %v4297
      %v4394 = vunpack.c.l.b16 %v4298
      %v4395 = vunpack.c.l.b16 %v4299
      %v4396 = vunpack.c.l.b16 %v4300
      %v4397 = vunpack.c.l.b16 %v4301
      %v4398 = vunpack.c.l.b16 %v4302
      %v4399 = vunpack.c.l.b16 %v4303
      %v4400 = vunpack.c.l.b16 %v4304
      %v4401 = vunpack.c.l.b16 %v4305
      %v4402 = vunpack.c.l.b16 %v4306
      %v4403 = vunpack.c.l.b16 %v4307
      %v4404 = vunpack.c.l.b16 %v4308
      %v4405 = vunpack.c.l.b16 %v4309
      %v4406 = vunpack.c.l.b16 %v4310
      %v4407 = vunpack.c.l.b16 %v4311
      %v4408 = vunpack.c.l.b16 %v4312
      %v4409 = vunpack.c.l.b16 %v4313
      %v4410 = vunpack.c.l.b16 %v4314
      %v4411 = vunpack.c.l.b16 %v4315
      %v4412 = vunpack.c.l.b16 %v4316
      %v4413 = vunpack.c.l.b16 %v4317
      %v4414 = vunpack.c.l.b16 %v4318
      %v4415 = vunpack.c.l.b16 %v4319
      %v4416 = vunpack.c.l.b16 %v4320
      %v4417 = vunpack.c.l.b16 %v4321
      %v4418 = vunpack.c.l.b16 %v4322
      %v4419 = vunpack.c.l.b16 %v4323
      %v4420 = vunpack.c.l.b16 %v4324
      %v4421 = vunpack.c.l.b16 %v4325
      %v4422 = vunpack.c.l.b16 %v4326
      %v4423 = vunpack.c.l.b16 %v4327
      %v4424 = vunpack.c.l.b16 %v4328
      %v4425 = vunpack.c.l.b16 %v4329
      %v4426 = vunpack.c.l.b16 %v4330
      %v4427 = vpack.c.b16 %v4380, %v4379
      %v4428 = vpack.c.b16 %v4382, %v4381
      %v4429 = vpack.c.b16 %v4384, %v4383
      %v4430 = vpack.c.b16 %v4386, %v4385
      %v4431 = vpack.c.b16 %v4388, %v4387
      %v4432 = vpack.c.b16 %v4390, %v4389
      %v4433 = vpack.c.b16 %v4392, %v4391
      %v4434 = vpack.c.b16 %v4394, %v4393
      %v4435 = vpack.c.b16 %v4396, %v4395
      %v4436 = vpack.c.b16 %v4398, %v4397
      %v4437 = vpack.c.b16 %v4400, %v4399
      %v4438 = vpack.c.b16 %v4402, %v4401
      %v4439 = vpack.c.b16 %v4404, %v4403
      %v4440 = vpack.c.b16 %v4406, %v4405
      %v4441 = vpack.c.b16 %v4408, %v4407
      %v4442 = vpack.c.b16 %v4410, %v4409
      %v4443 = vpack.c.b16 %v4412, %v4411
      %v4444 = vpack.c.b16 %v4414, %v4413
      %v4445 = vpack.c.b16 %v4416, %v4415
      %v4446 = vpack.c.b16 %v4418, %v4417
      %v4447 = vpack.c.b16 %v4420, %v4419
      %v4448 = vpack.c.b16 %v4422, %v4421
      %v4449 = vpack.c.b16 %v4424, %v4423
      %v4450 = vpack.c.b16 %v4426, %v4425
      %4475 = vmatpush.bf16.msra.mxu0 %v4434
      %4476 = vmatpush.bf16.msra.mxu0 %v4433
      %4477 = vmatpush.bf16.msra.mxu0 %v4432
      %4478 = vmatpush.bf16.msra.mxu0 %v4431
      %4479 = vmatpush.bf16.msra.mxu0 %v4430
      %4480 = vmatpush.bf16.msra.mxu0 %v4429
      %4481 = vmatpush.bf16.msra.mxu0 %v4428
      %4482 = vmatpush.bf16.msra.mxu0 %v4427
      %4483 = vmatmul.bf16.gmra.mxu0 %v2751
      %v4484 = vpop.f32.mrf.mxu0
      %v4485 = vadd.f32 0.0, %v4484
      %v4486 = vpop.f32.mrf.mxu0
      %v4487 = vadd.f32 0.0, %v4486
      %4488 = vmatmul.bf16.gmra.mxu0 %v2752
      %v4489 = vpop.f32.mrf.mxu0
      %v4490 = vadd.f32 0.0, %v4489
      %v4491 = vpop.f32.mrf.mxu0
      %v4492 = vadd.f32 0.0, %v4491
      %4493 = vmatmul.bf16.gmra.mxu0 %v2753
      %v4494 = vpop.f32.mrf.mxu0
      %v4495 = vadd.f32 0.0, %v4494
      %v4496 = vpop.f32.mrf.mxu0
      %v4497 = vadd.f32 0.0, %v4496
      %4498 = vmatmul.bf16.gmra.mxu0 %v2754
      %v4499 = vpop.f32.mrf.mxu0
      %v4500 = vadd.f32 0.0, %v4499
      %v4501 = vpop.f32.mrf.mxu0
      %v4502 = vadd.f32 0.0, %v4501
      %4503 = vmatmul.bf16.gmra.mxu0 %v2755
      %v4504 = vpop.f32.mrf.mxu0
      %v4505 = vadd.f32 0.0, %v4504
      %v4506 = vpop.f32.mrf.mxu0
      %v4507 = vadd.f32 0.0, %v4506
      %4508 = vmatmul.bf16.gmra.mxu0 %v2756
      %v4509 = vpop.f32.mrf.mxu0
      %v4510 = vadd.f32 0.0, %v4509
      %v4511 = vpop.f32.mrf.mxu0
      %v4512 = vadd.f32 0.0, %v4511
      %4513 = vmatmul.bf16.gmra.mxu0 %v2757
      %v4514 = vpop.f32.mrf.mxu0
      %v4515 = vadd.f32 0.0, %v4514
      %v4516 = vpop.f32.mrf.mxu0
      %v4517 = vadd.f32 0.0, %v4516
      %4518 = vmatmul.bf16.gmra.mxu0 %v2758
      %v4519 = vpop.f32.mrf.mxu0
      %v4520 = vadd.f32 0.0, %v4519
      %v4521 = vpop.f32.mrf.mxu0
      %v4522 = vadd.f32 0.0, %v4521
      %4523 = vmatmul.bf16.gmra.mxu0 %v2759
      %v4524 = vpop.f32.mrf.mxu0
      %v4525 = vadd.f32 0.0, %v4524
      %v4526 = vpop.f32.mrf.mxu0
      %v4527 = vadd.f32 0.0, %v4526
      %4528 = vmatmul.bf16.gmra.mxu0 %v2760
      %v4529 = vpop.f32.mrf.mxu0
      %v4530 = vadd.f32 0.0, %v4529
      %v4531 = vpop.f32.mrf.mxu0
      %v4532 = vadd.f32 0.0, %v4531
      %4533 = vmatmul.bf16.gmra.mxu0 %v2761
      %v4534 = vpop.f32.mrf.mxu0
      %v4535 = vadd.f32 0.0, %v4534
      %v4536 = vpop.f32.mrf.mxu0
      %v4537 = vadd.f32 0.0, %v4536
      %4538 = vmatmul.bf16.gmra.mxu0 %v2762
      %v4539 = vpop.f32.mrf.mxu0
      %v4540 = vadd.f32 0.0, %v4539
      %v4541 = vpop.f32.mrf.mxu0
      %v4542 = vadd.f32 0.0, %v4541
      %4543 = vmatmul.bf16.gmra.mxu0 %v2763
      %v4544 = vpop.f32.mrf.mxu0
      %v4545 = vadd.f32 0.0, %v4544
      %v4546 = vpop.f32.mrf.mxu0
      %v4547 = vadd.f32 0.0, %v4546
      %4548 = vmatmul.bf16.gmra.mxu0 %v2764
      %v4549 = vpop.f32.mrf.mxu0
      %v4550 = vadd.f32 0.0, %v4549
      %v4551 = vpop.f32.mrf.mxu0
      %v4552 = vadd.f32 0.0, %v4551
      %4553 = vmatmul.bf16.gmra.mxu0 %v2765
      %v4554 = vpop.f32.mrf.mxu0
      %v4555 = vadd.f32 0.0, %v4554
      %v4556 = vpop.f32.mrf.mxu0
      %v4557 = vadd.f32 0.0, %v4556
      %4558 = vmatmul.bf16.gmra.mxu0 %v2766
      %v4559 = vpop.f32.mrf.mxu0
      %v4560 = vadd.f32 0.0, %v4559
      %v4561 = vpop.f32.mrf.mxu0
      %v4562 = vadd.f32 0.0, %v4561
      %4563 = vmatmul.bf16.gmra.mxu0 %v2767
      %v4564 = vpop.f32.mrf.mxu0
      %v4565 = vadd.f32 0.0, %v4564
      %v4566 = vpop.f32.mrf.mxu0
      %v4567 = vadd.f32 0.0, %v4566
      %4568 = vmatmul.bf16.gmra.mxu0 %v2768
      %v4569 = vpop.f32.mrf.mxu0
      %v4570 = vadd.f32 0.0, %v4569
      %v4571 = vpop.f32.mrf.mxu0
      %v4572 = vadd.f32 0.0, %v4571
      %4573 = vmatmul.bf16.gmra.mxu0 %v2769
      %v4574 = vpop.f32.mrf.mxu0
      %v4575 = vadd.f32 0.0, %v4574
      %v4576 = vpop.f32.mrf.mxu0
      %v4577 = vadd.f32 0.0, %v4576
      %4578 = vmatmul.bf16.gmra.mxu0 %v2770
      %v4579 = vpop.f32.mrf.mxu0
      %v4580 = vadd.f32 0.0, %v4579
      %v4581 = vpop.f32.mrf.mxu0
      %v4582 = vadd.f32 0.0, %v4581
      %4583 = vmatmul.bf16.gmra.mxu0 %v2771
      %v4584 = vpop.f32.mrf.mxu0
      %v4585 = vadd.f32 0.0, %v4584
      %v4586 = vpop.f32.mrf.mxu0
      %4587 = vmatmul.bf16.gmra.mxu0 %v2772
      %v4588 = vpop.f32.mrf.mxu0
      %v4589 = vpop.f32.mrf.mxu0
      %4590 = vdwg.mxu0
      %4591 = vmatpush.bf16.msra.mxu0 %v4442
      %4592 = vmatpush.bf16.msra.mxu0 %v4441
      %4593 = vmatpush.bf16.msra.mxu0 %v4440
      %4594 = vmatpush.bf16.msra.mxu0 %v4439
      %4595 = vmatpush.bf16.msra.mxu0 %v4438
      %4596 = vmatpush.bf16.msra.mxu0 %v4437
      %4597 = vmatpush.bf16.msra.mxu0 %v4436
      %4598 = vmatpush.bf16.msra.mxu0 %v4435
      %4599 = vmatmul.bf16.gmra.mxu0 %v2845
      %v4600 = vpop.f32.mrf.mxu0
      %v4601 = vadd.f32 %v4485, %v4600
      %v4602 = vpop.f32.mrf.mxu0
      %v4603 = vadd.f32 %v4487, %v4602
      %4604 = vmatmul.bf16.gmra.mxu0 %v2853
      %v4605 = vpop.f32.mrf.mxu0
      %v4606 = vadd.f32 %v4490, %v4605
      %v4607 = vpop.f32.mrf.mxu0
      %v4608 = vadd.f32 %v4492, %v4607
      %4609 = vmatmul.bf16.gmra.mxu0 %v2861
      %v4610 = vpop.f32.mrf.mxu0
      %v4611 = vadd.f32 %v4495, %v4610
      %v4612 = vpop.f32.mrf.mxu0
      %v4613 = vadd.f32 %v4497, %v4612
      %4614 = vmatmul.bf16.gmra.mxu0 %v2869
      %v4615 = vpop.f32.mrf.mxu0
      %v4616 = vadd.f32 %v4500, %v4615
      %v4617 = vpop.f32.mrf.mxu0
      %v4618 = vadd.f32 %v4502, %v4617
      %4619 = vmatmul.bf16.gmra.mxu0 %v2877
      %v4620 = vpop.f32.mrf.mxu0
      %v4621 = vadd.f32 %v4505, %v4620
      %v4622 = vpop.f32.mrf.mxu0
      %v4623 = vadd.f32 %v4507, %v4622
      %4624 = vmatmul.bf16.gmra.mxu0 %v2885
      %v4625 = vpop.f32.mrf.mxu0
      %v4626 = vadd.f32 %v4510, %v4625
      %v4627 = vpop.f32.mrf.mxu0
      %v4628 = vadd.f32 %v4512, %v4627
      %4629 = vmatmul.bf16.gmra.mxu0 %v2893
      %v4630 = vpop.f32.mrf.mxu0
      %v4631 = vadd.f32 %v4515, %v4630
      %v4632 = vpop.f32.mrf.mxu0
      %v4633 = vadd.f32 %v4517, %v4632
      %4634 = vmatmul.bf16.gmra.mxu0 %v2901
      %v4635 = vpop.f32.mrf.mxu0
      %v4636 = vadd.f32 %v4520, %v4635
      %v4637 = vpop.f32.mrf.mxu0
      %v4638 = vadd.f32 %v4522, %v4637
      %4639 = vmatmul.bf16.gmra.mxu0 %v2909
      %v4640 = vpop.f32.mrf.mxu0
      %v4641 = vadd.f32 %v4525, %v4640
      %v4642 = vpop.f32.mrf.mxu0
      %v4643 = vadd.f32 %v4527, %v4642
      %4644 = vmatmul.bf16.gmra.mxu0 %v2917
      %v4645 = vpop.f32.mrf.mxu0
      %v4646 = vadd.f32 %v4530, %v4645
      %v4647 = vpop.f32.mrf.mxu0
      %v4648 = vadd.f32 %v4532, %v4647
      %4649 = vmatmul.bf16.gmra.mxu0 %v2925
      %v4650 = vpop.f32.mrf.mxu0
      %v4651 = vadd.f32 %v4535, %v4650
      %v4652 = vpop.f32.mrf.mxu0
      %v4653 = vadd.f32 %v4537, %v4652
      %4654 = vmatmul.bf16.gmra.mxu0 %v2933
      %v4655 = vpop.f32.mrf.mxu0
      %v4656 = vadd.f32 %v4540, %v4655
      %v4657 = vpop.f32.mrf.mxu0
      %v4658 = vadd.f32 %v4542, %v4657
      %4659 = vmatmul.bf16.gmra.mxu0 %v2941
      %v4660 = vpop.f32.mrf.mxu0
      %v4661 = vadd.f32 %v4545, %v4660
      %v4662 = vpop.f32.mrf.mxu0
      %v4663 = vadd.f32 %v4547, %v4662
      %4664 = vmatmul.bf16.gmra.mxu0 %v2949
      %v4665 = vpop.f32.mrf.mxu0
      %v4666 = vadd.f32 %v4550, %v4665
      %v4667 = vpop.f32.mrf.mxu0
      %v4668 = vadd.f32 %v4552, %v4667
      %4669 = vmatmul.bf16.gmra.mxu0 %v2957
      %v4670 = vpop.f32.mrf.mxu0
      %v4671 = vadd.f32 %v4555, %v4670
      %v4672 = vpop.f32.mrf.mxu0
      %v4673 = vadd.f32 %v4557, %v4672
      %4674 = vmatmul.bf16.gmra.mxu0 %v2965
      %v4675 = vpop.f32.mrf.mxu0
      %v4676 = vadd.f32 %v4560, %v4675
      %v4677 = vpop.f32.mrf.mxu0
      %v4678 = vadd.f32 %v4562, %v4677
      %4679 = vmatmul.bf16.gmra.mxu0 %v2973
      %v4680 = vpop.f32.mrf.mxu0
      %v4681 = vadd.f32 %v4565, %v4680
      %v4682 = vpop.f32.mrf.mxu0
      %v4683 = vadd.f32 %v4567, %v4682
      %4684 = vmatmul.bf16.gmra.mxu0 %v2981
      %v4685 = vpop.f32.mrf.mxu0
      %v4686 = vadd.f32 %v4570, %v4685
      %v4687 = vpop.f32.mrf.mxu0
      %v4688 = vadd.f32 %v4572, %v4687
      %4689 = vmatmul.bf16.gmra.mxu0 %v2989
      %v4690 = vpop.f32.mrf.mxu0
      %v4691 = vadd.f32 %v4575, %v4690
      %v4692 = vpop.f32.mrf.mxu0
      %v4693 = vadd.f32 %v4577, %v4692
      %4694 = vmatmul.bf16.gmra.mxu0 %v2997
      %v4695 = vpop.f32.mrf.mxu0
      %v4696 = vadd.f32 %v4580, %v4695
      %v4697 = vpop.f32.mrf.mxu0
      %v4698 = vadd.f32 %v4582, %v4697
      %4699 = vmatmul.bf16.gmra.mxu0 %v3005
      %v4700 = vpop.f32.mrf.mxu0
      %v4701 = vadd.f32 %v4585, %v4700
      %v4702 = vpop.f32.mrf.mxu0
      %4703 = vmatmul.bf16.gmra.mxu0 %v3013
      %v4704 = vpop.f32.mrf.mxu0
      %v4705 = vpop.f32.mrf.mxu0
      %4706 = vdwg.mxu0
      %4707 = vmatpush.bf16.msra.mxu0 %v4450
      %4708 = vmatpush.bf16.msra.mxu0 %v4449
      %4709 = vmatpush.bf16.msra.mxu0 %v4448
      %4710 = vmatpush.bf16.msra.mxu0 %v4447
      %4711 = vmatpush.bf16.msra.mxu0 %v4446
      %4712 = vmatpush.bf16.msra.mxu0 %v4445
      %4713 = vmatpush.bf16.msra.mxu0 %v4444
      %4714 = vmatpush.bf16.msra.mxu0 %v4443
      %4715 = vmatmul.bf16.gmra.mxu0 %v3050
      %v4716 = vpop.f32.mrf.mxu0
      %v4717 = vadd.f32 %v4601, %v4716
      %v4718 = vpop.f32.mrf.mxu0
      %v4719 = vadd.f32 %v4603, %v4718
      %4720 = vmatmul.bf16.gmra.mxu0 %v3052
      %v4721 = vpop.f32.mrf.mxu0
      %v4722 = vadd.f32 %v4606, %v4721
      %v4723 = vpop.f32.mrf.mxu0
      %v4724 = vadd.f32 %v4608, %v4723
      %4725 = vmatmul.bf16.gmra.mxu0 %v3054
      %v4726 = vpop.f32.mrf.mxu0
      %v4727 = vadd.f32 %v4611, %v4726
      %v4728 = vpop.f32.mrf.mxu0
      %v4729 = vadd.f32 %v4613, %v4728
      %4730 = vmatmul.bf16.gmra.mxu0 %v3056
      %v4731 = vpop.f32.mrf.mxu0
      %v4732 = vadd.f32 %v4616, %v4731
      %v4733 = vpop.f32.mrf.mxu0
      %v4734 = vadd.f32 %v4618, %v4733
      %4735 = vmatmul.bf16.gmra.mxu0 %v3058
      %v4736 = vpop.f32.mrf.mxu0
      %v4737 = vadd.f32 %v4621, %v4736
      %v4738 = vpop.f32.mrf.mxu0
      %v4739 = vadd.f32 %v4623, %v4738
      %4740 = vmatmul.bf16.gmra.mxu0 %v3060
      %v4741 = vpop.f32.mrf.mxu0
      %v4742 = vadd.f32 %v4626, %v4741
      %v4743 = vpop.f32.mrf.mxu0
      %v4744 = vadd.f32 %v4628, %v4743
      %4745 = vmatmul.bf16.gmra.mxu0 %v3062
      %v4746 = vpop.f32.mrf.mxu0
      %v4747 = vadd.f32 %v4631, %v4746
      %v4748 = vpop.f32.mrf.mxu0
      %v4749 = vadd.f32 %v4633, %v4748
      %4750 = vmatmul.bf16.gmra.mxu0 %v3064
      %v4751 = vpop.f32.mrf.mxu0
      %v4752 = vadd.f32 %v4636, %v4751
      %v4753 = vpop.f32.mrf.mxu0
      %v4754 = vadd.f32 %v4638, %v4753
      %4755 = vmatmul.bf16.gmra.mxu0 %v3066
      %v4756 = vpop.f32.mrf.mxu0
      %v4757 = vadd.f32 %v4641, %v4756
      %v4758 = vpop.f32.mrf.mxu0
      %v4759 = vadd.f32 %v4643, %v4758
      %4760 = vmatmul.bf16.gmra.mxu0 %v3068
      %v4761 = vpop.f32.mrf.mxu0
      %v4762 = vadd.f32 %v4646, %v4761
      %v4763 = vpop.f32.mrf.mxu0
      %v4764 = vadd.f32 %v4648, %v4763
      %4765 = vmatmul.bf16.gmra.mxu0 %v3070
      %v4766 = vpop.f32.mrf.mxu0
      %v4767 = vadd.f32 %v4651, %v4766
      %v4768 = vpop.f32.mrf.mxu0
      %v4769 = vadd.f32 %v4653, %v4768
      %4770 = vmatmul.bf16.gmra.mxu0 %v3072
      %v4771 = vpop.f32.mrf.mxu0
      %v4772 = vadd.f32 %v4656, %v4771
      %v4773 = vpop.f32.mrf.mxu0
      %v4774 = vadd.f32 %v4658, %v4773
      %4775 = vmatmul.bf16.gmra.mxu0 %v3074
      %v4776 = vpop.f32.mrf.mxu0
      %v4777 = vadd.f32 %v4661, %v4776
      %v4778 = vpop.f32.mrf.mxu0
      %v4779 = vadd.f32 %v4663, %v4778
      %4780 = vmatmul.bf16.gmra.mxu0 %v3076
      %v4781 = vpop.f32.mrf.mxu0
      %v4782 = vadd.f32 %v4666, %v4781
      %v4783 = vpop.f32.mrf.mxu0
      %v4784 = vadd.f32 %v4668, %v4783
      %4785 = vmatmul.bf16.gmra.mxu0 %v3078
      %v4786 = vpop.f32.mrf.mxu0
      %v4787 = vadd.f32 %v4671, %v4786
      %v4788 = vpop.f32.mrf.mxu0
      %v4789 = vadd.f32 %v4673, %v4788
      %4790 = vmatmul.bf16.gmra.mxu0 %v3080
      %v4791 = vpop.f32.mrf.mxu0
      %v4792 = vadd.f32 %v4676, %v4791
      %v4793 = vpop.f32.mrf.mxu0
      %v4794 = vadd.f32 %v4678, %v4793
      %4795 = vmatmul.bf16.gmra.mxu0 %v3082
      %v4796 = vpop.f32.mrf.mxu0
      %v4797 = vadd.f32 %v4681, %v4796
      %v4798 = vpop.f32.mrf.mxu0
      %v4799 = vadd.f32 %v4683, %v4798
      %4800 = vmatmul.bf16.gmra.mxu0 %v3084
      %v4801 = vpop.f32.mrf.mxu0
      %v4802 = vadd.f32 %v4686, %v4801
      %v4803 = vpop.f32.mrf.mxu0
      %v4804 = vadd.f32 %v4688, %v4803
      %4805 = vmatmul.bf16.gmra.mxu0 %v3086
      %v4806 = vpop.f32.mrf.mxu0
      %v4807 = vadd.f32 %v4691, %v4806
      %v4808 = vpop.f32.mrf.mxu0
      %v4809 = vadd.f32 %v4693, %v4808
      %4810 = vmatmul.bf16.gmra.mxu0 %v3088
      %v4811 = vpop.f32.mrf.mxu0
      %v4812 = vadd.f32 %v4696, %v4811
      %v4813 = vpop.f32.mrf.mxu0
      %v4814 = vadd.f32 %v4698, %v4813
      %4815 = vmatmul.bf16.gmra.mxu0 %v3090
      %v4816 = vpop.f32.mrf.mxu0
      %v4817 = vadd.f32 %v4701, %v4816
      %v4818 = vpop.f32.mrf.mxu0
      %4819 = vmatmul.bf16.gmra.mxu0 %v3092
      %v4820 = vpop.f32.mrf.mxu0
      %v4821 = vpop.f32.mrf.mxu0
      %4822 = vdwg.mxu0
      %v4823 = vadd.f32 %v4241, %v4717
      %v4824 = vadd.f32 %v4242, %v4719
      %v4825 = vadd.f32 %v4243, %v4722
      %v4826 = vadd.f32 %v4244, %v4724
      %v4827 = vadd.f32 %v4245, %v4727
      %v4828 = vadd.f32 %v4246, %v4729
      %v4829 = vadd.f32 %v4247, %v4732
      %v4830 = vadd.f32 %v4248, %v4734
      %v4831 = vadd.f32 %v4249, %v4737
      %v4832 = vadd.f32 %v4250, %v4739
      %v4833 = vadd.f32 %v4251, %v4742
      %v4834 = vadd.f32 %v4252, %v4744
      %v4835 = vadd.f32 %v4253, %v4747
      %v4836 = vadd.f32 %v4254, %v4749
      %v4837 = vadd.f32 %v4255, %v4752
      %v4838 = vadd.f32 %v4256, %v4754
      %v4839 = vadd.f32 %v4257, %v4757
      %v4840 = vadd.f32 %v4258, %v4759
      %v4841 = vadd.f32 %v4259, %v4762
      %v4842 = vadd.f32 %v4260, %v4764
      %v4843 = vadd.f32 %v4261, %v4767
      %v4844 = vadd.f32 %v4262, %v4769
      %v4845 = vadd.f32 %v4263, %v4772
      %v4846 = vadd.f32 %v4264, %v4774
      %v4847 = vadd.f32 %v4265, %v4777
      %v4848 = vadd.f32 %v4266, %v4779
      %v4849 = vadd.f32 %v4267, %v4782
      %v4850 = vadd.f32 %v4268, %v4784
      %v4851 = vadd.f32 %v4269, %v4787
      %v4852 = vadd.f32 %v4270, %v4789
      %v4853 = vadd.f32 %v4271, %v4792
      %v4854 = vadd.f32 %v4272, %v4794
      %v4855 = vadd.f32 %v4273, %v4797
      %v4856 = vadd.f32 %v4274, %v4799
      %v4857 = vadd.f32 %v4275, %v4802
      %v4858 = vadd.f32 %v4276, %v4804
      %v4859 = vadd.f32 %v4277, %v4807
      %v4860 = vadd.f32 %v4278, %v4809
      %v4861 = vadd.f32 %v4279, %v4812
      %v4862 = vadd.f32 %v4280, %v4814
      %v4863 = vadd.f32 %v4281, %v4817
      %v4864 = vld [vmem:[%s6] sm:$0x1]
      %v4866 = vperm.slane %v4864, 0
      %v4868 = vadd.f32 %v4823, %v4866
      %v4869 = vadd.f32 %v4824, %v4866
      %v4870 = vadd.f32 %v4825, %v4866
      %v4871 = vadd.f32 %v4826, %v4866
      %v4872 = vadd.f32 %v4827, %v4866
      %v4873 = vadd.f32 %v4828, %v4866
      %v4874 = vadd.f32 %v4829, %v4866
      %v4875 = vadd.f32 %v4830, %v4866
      %v4876 = vadd.f32 %v4831, %v4866
      %v4877 = vadd.f32 %v4832, %v4866
      %v4878 = vadd.f32 %v4833, %v4866
      %v4879 = vadd.f32 %v4834, %v4866
      %v4880 = vadd.f32 %v4835, %v4866
      %v4881 = vadd.f32 %v4836, %v4866
      %v4882 = vadd.f32 %v4837, %v4866
      %v4883 = vadd.f32 %v4838, %v4866
      %v4884 = vadd.f32 %v4839, %v4866
      %v4885 = vadd.f32 %v4840, %v4866
      %v4886 = vadd.f32 %v4841, %v4866
      %v4887 = vadd.f32 %v4842, %v4866
      %v4888 = vadd.f32 %v4843, %v4866
      %v4889 = vadd.f32 %v4844, %v4866
      %v4890 = vadd.f32 %v4845, %v4866
      %v4891 = vadd.f32 %v4846, %v4866
      %v4892 = vadd.f32 %v4847, %v4866
      %v4893 = vadd.f32 %v4848, %v4866
      %v4894 = vadd.f32 %v4849, %v4866
      %v4895 = vadd.f32 %v4850, %v4866
      %v4896 = vadd.f32 %v4851, %v4866
      %v4897 = vadd.f32 %v4852, %v4866
      %v4898 = vadd.f32 %v4853, %v4866
      %v4899 = vadd.f32 %v4854, %v4866
      %v4900 = vadd.f32 %v4855, %v4866
      %v4901 = vadd.f32 %v4856, %v4866
      %v4902 = vadd.f32 %v4857, %v4866
      %v4903 = vadd.f32 %v4858, %v4866
      %v4904 = vadd.f32 %v4859, %v4866
      %v4905 = vadd.f32 %v4860, %v4866
      %v4906 = vadd.f32 %v4861, %v4866
      %v4907 = vadd.f32 %v4862, %v4866
      %v4908 = vadd.f32 %v4863, %v4866
      %v4909 = vmax.f32 %v4868, 0.0
      %v4910 = vmax.f32 %v4869, 0.0
      %v4911 = vmax.f32 %v4870, 0.0
      %v4912 = vmax.f32 %v4871, 0.0
      %v4913 = vmax.f32 %v4872, 0.0
      %v4914 = vmax.f32 %v4873, 0.0
      %v4915 = vmax.f32 %v4874, 0.0
      %v4916 = vmax.f32 %v4875, 0.0
      %v4917 = vmax.f32 %v4876, 0.0
      %v4918 = vmax.f32 %v4877, 0.0
      %v4919 = vmax.f32 %v4878, 0.0
      %v4920 = vmax.f32 %v4879, 0.0
      %v4921 = vmax.f32 %v4880, 0.0
      %v4922 = vmax.f32 %v4881, 0.0
      %v4923 = vmax.f32 %v4882, 0.0
      %v4924 = vmax.f32 %v4883, 0.0
      %v4925 = vmax.f32 %v4884, 0.0
      %v4926 = vmax.f32 %v4885, 0.0
      %v4927 = vmax.f32 %v4886, 0.0
      %v4928 = vmax.f32 %v4887, 0.0
      %v4929 = vmax.f32 %v4888, 0.0
      %v4930 = vmax.f32 %v4889, 0.0
      %v4931 = vmax.f32 %v4890, 0.0
      %v4932 = vmax.f32 %v4891, 0.0
      %v4933 = vmax.f32 %v4892, 0.0
      %v4934 = vmax.f32 %v4893, 0.0
      %v4935 = vmax.f32 %v4894, 0.0
      %v4936 = vmax.f32 %v4895, 0.0
      %v4937 = vmax.f32 %v4896, 0.0
      %v4938 = vmax.f32 %v4897, 0.0
      %v4939 = vmax.f32 %v4898, 0.0
      %v4940 = vmax.f32 %v4899, 0.0
      %v4941 = vmax.f32 %v4900, 0.0
      %v4942 = vmax.f32 %v4901, 0.0
      %v4943 = vmax.f32 %v4902, 0.0
      %v4944 = vmax.f32 %v4903, 0.0
      %v4945 = vmax.f32 %v4904, 0.0
      %v4946 = vmax.f32 %v4905, 0.0
      %v4947 = vmax.f32 %v4906, 0.0
      %v4948 = vmax.f32 %v4907, 0.0
      %v4949 = vmax.f32 %v4908, 0.0
      %v4950 = vld [vmem:[%s386] sm:$0xff]
      %v4951 = vld [vmem:[%s386 + $0x8] sm:$0xff]
      %v4952 = vld [vmem:[%s386 + $0x10] sm:$0xff]
      %v4953 = vld [vmem:[%s386 + $0x18] sm:$0xff]
      %v4954 = vld [vmem:[%s386 + $0x20] sm:$0xff]
      %v4955 = vld [vmem:[%s386 + $0x28] sm:$0xff]
      %v4956 = vld [vmem:[%s386 + $0x30] sm:$0xff]
      %v4957 = vld [vmem:[%s386 + $0x38] sm:$0xff]
      %v4958 = vld [vmem:[%s386 + $0x40] sm:$0xff]
      %v4959 = vld [vmem:[%s386 + $0x48] sm:$0xff]
      %v4960 = vld [vmem:[%s386 + $0x50] sm:$0xff]
      %v4961 = vld [vmem:[%s386 + $0x58] sm:$0xff]
      %v4962 = vld [vmem:[%s386 + $0x60] sm:$0xff]
      %v4963 = vld [vmem:[%s386 + $0x68] sm:$0xff]
      %v4964 = vld [vmem:[%s386 + $0x70] sm:$0xff]
      %v4965 = vld [vmem:[%s386 + $0x78] sm:$0xff]
      %v4966 = vld [vmem:[%s386 + $0x80] sm:$0xff]
      %v4967 = vld [vmem:[%s386 + $0x88] sm:$0xff]
      %v4968 = vld [vmem:[%s386 + $0x90] sm:$0xff]
      %v4969 = vld [vmem:[%s386 + $0x98] sm:$0xff]
      %v4970 = vld [vmem:[%s386 + $0xa0] sm:$0xff]
      %v4971 = vld [vmem:[%s386 + $0xa8] sm:$0xff]
      %v4972 = vld [vmem:[%s386 + $0xb0] sm:$0xff]
      %v4973 = vld [vmem:[%s386 + $0xb8] sm:$0xff]
      %v4974 = vld [vmem:[%s386 + $0xc0] sm:$0xff]
      %v4975 = vld [vmem:[%s386 + $0xc8] sm:$0xff]
      %v4976 = vld [vmem:[%s386 + $0xd0] sm:$0xff]
      %v4977 = vld [vmem:[%s386 + $0xd8] sm:$0xff]
      %v4978 = vld [vmem:[%s386 + $0xe0] sm:$0xff]
      %v4979 = vld [vmem:[%s386 + $0xe8] sm:$0xff]
      %v4980 = vld [vmem:[%s386 + $0xf0] sm:$0xff]
      %v4981 = vld [vmem:[%s386 + $0xf8] sm:$0xff]
      %v4982 = vld [vmem:[%s386 + $0x100] sm:$0xff]
      %v4983 = vld [vmem:[%s386 + $0x108] sm:$0xff]
      %v4984 = vld [vmem:[%s386 + $0x110] sm:$0xff]
      %v4985 = vld [vmem:[%s386 + $0x118] sm:$0xff]
      %v4986 = vld [vmem:[%s386 + $0x120] sm:$0xff]
      %v4987 = vld [vmem:[%s386 + $0x128] sm:$0xff]
      %v4988 = vld [vmem:[%s386 + $0x130] sm:$0xff]
      %v4989 = vld [vmem:[%s386 + $0x138] sm:$0xff]
      %v4990 = vld [vmem:[%s386 + $0x140] sm:$0xff]
      %4992 = vset.pattern.permute.xlu0 0
      %4993 = vperm.xlu0 %4992, %v4950
      %v4994 = vpop.permute.xlu0 %4993
      %4997 = vset.pattern.permute.xlu0 0
      %4998 = vperm.xlu0 %4997, %v4951
      %v4999 = vpop.permute.xlu0 %4998
      %5002 = vset.pattern.permute.xlu0 0
      %5003 = vperm.xlu0 %5002, %v4952
      %v5004 = vpop.permute.xlu0 %5003
      %5007 = vset.pattern.permute.xlu0 0
      %5008 = vperm.xlu0 %5007, %v4953
      %v5009 = vpop.permute.xlu0 %5008
      %5012 = vset.pattern.permute.xlu0 0
      %5013 = vperm.xlu0 %5012, %v4954
      %v5014 = vpop.permute.xlu0 %5013
      %5017 = vset.pattern.permute.xlu0 0
      %5018 = vperm.xlu0 %5017, %v4955
      %v5019 = vpop.permute.xlu0 %5018
      %5022 = vset.pattern.permute.xlu0 0
      %5023 = vperm.xlu0 %5022, %v4956
      %v5024 = vpop.permute.xlu0 %5023
      %5027 = vset.pattern.permute.xlu0 0
      %5028 = vperm.xlu0 %5027, %v4957
      %v5029 = vpop.permute.xlu0 %5028
      %5032 = vset.pattern.permute.xlu0 0
      %5033 = vperm.xlu0 %5032, %v4958
      %v5034 = vpop.permute.xlu0 %5033
      %5037 = vset.pattern.permute.xlu0 0
      %5038 = vperm.xlu0 %5037, %v4959
      %v5039 = vpop.permute.xlu0 %5038
      %5042 = vset.pattern.permute.xlu0 0
      %5043 = vperm.xlu0 %5042, %v4960
      %v5044 = vpop.permute.xlu0 %5043
      %5047 = vset.pattern.permute.xlu0 0
      %5048 = vperm.xlu0 %5047, %v4961
      %v5049 = vpop.permute.xlu0 %5048
      %5052 = vset.pattern.permute.xlu0 0
      %5053 = vperm.xlu0 %5052, %v4962
      %v5054 = vpop.permute.xlu0 %5053
      %5057 = vset.pattern.permute.xlu0 0
      %5058 = vperm.xlu0 %5057, %v4963
      %v5059 = vpop.permute.xlu0 %5058
      %5062 = vset.pattern.permute.xlu0 0
      %5063 = vperm.xlu0 %5062, %v4964
      %v5064 = vpop.permute.xlu0 %5063
      %5067 = vset.pattern.permute.xlu0 0
      %5068 = vperm.xlu0 %5067, %v4965
      %v5069 = vpop.permute.xlu0 %5068
      %5072 = vset.pattern.permute.xlu0 0
      %5073 = vperm.xlu0 %5072, %v4966
      %v5074 = vpop.permute.xlu0 %5073
      %5077 = vset.pattern.permute.xlu0 0
      %5078 = vperm.xlu0 %5077, %v4967
      %v5079 = vpop.permute.xlu0 %5078
      %5082 = vset.pattern.permute.xlu0 0
      %5083 = vperm.xlu0 %5082, %v4968
      %v5084 = vpop.permute.xlu0 %5083
      %5087 = vset.pattern.permute.xlu0 0
      %5088 = vperm.xlu0 %5087, %v4969
      %v5089 = vpop.permute.xlu0 %5088
      %5092 = vset.pattern.permute.xlu0 0
      %5093 = vperm.xlu0 %5092, %v4970
      %v5094 = vpop.permute.xlu0 %5093
      %5097 = vset.pattern.permute.xlu0 0
      %5098 = vperm.xlu0 %5097, %v4971
      %v5099 = vpop.permute.xlu0 %5098
      %5102 = vset.pattern.permute.xlu0 0
      %5103 = vperm.xlu0 %5102, %v4972
      %v5104 = vpop.permute.xlu0 %5103
      %5107 = vset.pattern.permute.xlu0 0
      %5108 = vperm.xlu0 %5107, %v4973
      %v5109 = vpop.permute.xlu0 %5108
      %5112 = vset.pattern.permute.xlu0 0
      %5113 = vperm.xlu0 %5112, %v4974
      %v5114 = vpop.permute.xlu0 %5113
      %5117 = vset.pattern.permute.xlu0 0
      %5118 = vperm.xlu0 %5117, %v4975
      %v5119 = vpop.permute.xlu0 %5118
      %5122 = vset.pattern.permute.xlu0 0
      %5123 = vperm.xlu0 %5122, %v4976
      %v5124 = vpop.permute.xlu0 %5123
      %5127 = vset.pattern.permute.xlu0 0
      %5128 = vperm.xlu0 %5127, %v4977
      %v5129 = vpop.permute.xlu0 %5128
      %5132 = vset.pattern.permute.xlu0 0
      %5133 = vperm.xlu0 %5132, %v4978
      %v5134 = vpop.permute.xlu0 %5133
      %5137 = vset.pattern.permute.xlu0 0
      %5138 = vperm.xlu0 %5137, %v4979
      %v5139 = vpop.permute.xlu0 %5138
      %5142 = vset.pattern.permute.xlu0 0
      %5143 = vperm.xlu0 %5142, %v4980
      %v5144 = vpop.permute.xlu0 %5143
      %5147 = vset.pattern.permute.xlu0 0
      %5148 = vperm.xlu0 %5147, %v4981
      %v5149 = vpop.permute.xlu0 %5148
      %5152 = vset.pattern.permute.xlu0 0
      %5153 = vperm.xlu0 %5152, %v4982
      %v5154 = vpop.permute.xlu0 %5153
      %5157 = vset.pattern.permute.xlu0 0
      %5158 = vperm.xlu0 %5157, %v4983
      %v5159 = vpop.permute.xlu0 %5158
      %5162 = vset.pattern.permute.xlu0 0
      %5163 = vperm.xlu0 %5162, %v4984
      %v5164 = vpop.permute.xlu0 %5163
      %5167 = vset.pattern.permute.xlu0 0
      %5168 = vperm.xlu0 %5167, %v4985
      %v5169 = vpop.permute.xlu0 %5168
      %5172 = vset.pattern.permute.xlu0 0
      %5173 = vperm.xlu0 %5172, %v4986
      %v5174 = vpop.permute.xlu0 %5173
      %5177 = vset.pattern.permute.xlu0 0
      %5178 = vperm.xlu0 %5177, %v4987
      %v5179 = vpop.permute.xlu0 %5178
      %5182 = vset.pattern.permute.xlu0 0
      %5183 = vperm.xlu0 %5182, %v4988
      %v5184 = vpop.permute.xlu0 %5183
      %5187 = vset.pattern.permute.xlu0 0
      %5188 = vperm.xlu0 %5187, %v4989
      %v5189 = vpop.permute.xlu0 %5188
      %5192 = vset.pattern.permute.xlu0 0
      %5193 = vperm.xlu0 %5192, %v4990
      %v5194 = vpop.permute.xlu0 %5193
      %v5196 = vmul.f32 %v4909, %v4994
      %v5197 = vmul.f32 %v4910, %v4999
      %v5198 = vmul.f32 %v4911, %v5004
      %v5199 = vmul.f32 %v4912, %v5009
      %v5200 = vmul.f32 %v4913, %v5014
      %v5201 = vmul.f32 %v4914, %v5019
      %v5202 = vmul.f32 %v4915, %v5024
      %v5203 = vmul.f32 %v4916, %v5029
      %v5204 = vmul.f32 %v4917, %v5034
      %v5205 = vmul.f32 %v4918, %v5039
      %v5206 = vmul.f32 %v4919, %v5044
      %v5207 = vmul.f32 %v4920, %v5049
      %v5208 = vmul.f32 %v4921, %v5054
      %v5209 = vmul.f32 %v4922, %v5059
      %v5210 = vmul.f32 %v4923, %v5064
      %v5211 = vmul.f32 %v4924, %v5069
      %v5212 = vmul.f32 %v4925, %v5074
      %v5213 = vmul.f32 %v4926, %v5079
      %v5214 = vmul.f32 %v4927, %v5084
      %v5215 = vmul.f32 %v4928, %v5089
      %v5216 = vmul.f32 %v4929, %v5094
      %v5217 = vmul.f32 %v4930, %v5099
      %v5218 = vmul.f32 %v4931, %v5104
      %v5219 = vmul.f32 %v4932, %v5109
      %v5220 = vmul.f32 %v4933, %v5114
      %v5221 = vmul.f32 %v4934, %v5119
      %v5222 = vmul.f32 %v4935, %v5124
      %v5223 = vmul.f32 %v4936, %v5129
      %v5224 = vmul.f32 %v4937, %v5134
      %v5225 = vmul.f32 %v4938, %v5139
      %v5226 = vmul.f32 %v4939, %v5144
      %v5227 = vmul.f32 %v4940, %v5149
      %v5228 = vmul.f32 %v4941, %v5154
      %v5229 = vmul.f32 %v4942, %v5159
      %v5230 = vmul.f32 %v4943, %v5164
      %v5231 = vmul.f32 %v4944, %v5169
      %v5232 = vmul.f32 %v4945, %v5174
      %v5233 = vmul.f32 %v4946, %v5179
      %v5234 = vmul.f32 %v4947, %v5184
      %v5235 = vmul.f32 %v4948, %v5189
      %v5236 = vmul.f32 %v4949, %v5194
      %v5237 = vpack.c.bf16 %v5196, %v5196
      %v5238 = vpack.c.bf16 %v5197, %v5197
      %v5239 = vpack.c.bf16 %v5198, %v5198
      %v5240 = vpack.c.bf16 %v5199, %v5199
      %v5241 = vpack.c.bf16 %v5200, %v5200
      %v5242 = vpack.c.bf16 %v5201, %v5201
      %v5243 = vpack.c.bf16 %v5202, %v5202
      %v5244 = vpack.c.bf16 %v5203, %v5203
      %v5245 = vpack.c.bf16 %v5204, %v5204
      %v5246 = vpack.c.bf16 %v5205, %v5205
      %v5247 = vpack.c.bf16 %v5206, %v5206
      %v5248 = vpack.c.bf16 %v5207, %v5207
      %v5249 = vpack.c.bf16 %v5208, %v5208
      %v5250 = vpack.c.bf16 %v5209, %v5209
      %v5251 = vpack.c.bf16 %v5210, %v5210
      %v5252 = vpack.c.bf16 %v5211, %v5211
      %v5253 = vpack.c.bf16 %v5212, %v5212
      %v5254 = vpack.c.bf16 %v5213, %v5213
      %v5255 = vpack.c.bf16 %v5214, %v5214
      %v5256 = vpack.c.bf16 %v5215, %v5215
      %v5257 = vpack.c.bf16 %v5216, %v5216
      %v5258 = vpack.c.bf16 %v5217, %v5217
      %v5259 = vpack.c.bf16 %v5218, %v5218
      %v5260 = vpack.c.bf16 %v5219, %v5219
      %v5261 = vpack.c.bf16 %v5220, %v5220
      %v5262 = vpack.c.bf16 %v5221, %v5221
      %v5263 = vpack.c.bf16 %v5222, %v5222
      %v5264 = vpack.c.bf16 %v5223, %v5223
      %v5265 = vpack.c.bf16 %v5224, %v5224
      %v5266 = vpack.c.bf16 %v5225, %v5225
      %v5267 = vpack.c.bf16 %v5226, %v5226
      %v5268 = vpack.c.bf16 %v5227, %v5227
      %v5269 = vpack.c.bf16 %v5228, %v5228
      %v5270 = vpack.c.bf16 %v5229, %v5229
      %v5271 = vpack.c.bf16 %v5230, %v5230
      %v5272 = vpack.c.bf16 %v5231, %v5231
      %v5273 = vpack.c.bf16 %v5232, %v5232
      %v5274 = vpack.c.bf16 %v5233, %v5233
      %v5275 = vpack.c.bf16 %v5234, %v5234
      %v5276 = vpack.c.bf16 %v5235, %v5235
      %v5277 = vpack.c.bf16 %v5236, %v5236
      %v5318 = vunpack.c.l.b16 %v5237
      %v5319 = vunpack.c.l.b16 %v5238
      %v5320 = vunpack.c.l.b16 %v5239
      %v5321 = vunpack.c.l.b16 %v5240
      %v5322 = vunpack.c.l.b16 %v5241
      %v5323 = vunpack.c.l.b16 %v5242
      %v5324 = vunpack.c.l.b16 %v5243
      %v5325 = vunpack.c.l.b16 %v5244
      %v5326 = vunpack.c.l.b16 %v5245
      %v5327 = vunpack.c.l.b16 %v5246
      %v5328 = vunpack.c.l.b16 %v5247
      %v5329 = vunpack.c.l.b16 %v5248
      %v5330 = vunpack.c.l.b16 %v5249
      %v5331 = vunpack.c.l.b16 %v5250
      %v5332 = vunpack.c.l.b16 %v5251
      %v5333 = vunpack.c.l.b16 %v5252
      %v5334 = vunpack.c.l.b16 %v5253
      %v5335 = vunpack.c.l.b16 %v5254
      %v5336 = vunpack.c.l.b16 %v5255
      %v5337 = vunpack.c.l.b16 %v5256
      %v5338 = vunpack.c.l.b16 %v5257
      %v5339 = vunpack.c.l.b16 %v5258
      %v5340 = vunpack.c.l.b16 %v5259
      %v5341 = vunpack.c.l.b16 %v5260
      %v5342 = vunpack.c.l.b16 %v5261
      %v5343 = vunpack.c.l.b16 %v5262
      %v5344 = vunpack.c.l.b16 %v5263
      %v5345 = vunpack.c.l.b16 %v5264
      %v5346 = vunpack.c.l.b16 %v5265
      %v5347 = vunpack.c.l.b16 %v5266
      %v5348 = vunpack.c.l.b16 %v5267
      %v5349 = vunpack.c.l.b16 %v5268
      %v5350 = vunpack.c.l.b16 %v5269
      %v5351 = vunpack.c.l.b16 %v5270
      %v5352 = vunpack.c.l.b16 %v5271
      %v5353 = vunpack.c.l.b16 %v5272
      %v5354 = vunpack.c.l.b16 %v5273
      %v5355 = vunpack.c.l.b16 %v5274
      %v5356 = vunpack.c.l.b16 %v5275
      %v5357 = vunpack.c.l.b16 %v5276
      %v5358 = vpack.c.b16 %v5319, %v5318
      %v5359 = vpack.c.b16 %v5321, %v5320
      %v5360 = vpack.c.b16 %v5323, %v5322
      %v5361 = vpack.c.b16 %v5325, %v5324
      %v5362 = vpack.c.b16 %v5327, %v5326
      %v5363 = vpack.c.b16 %v5329, %v5328
      %v5364 = vpack.c.b16 %v5331, %v5330
      %v5365 = vpack.c.b16 %v5333, %v5332
      %v5366 = vpack.c.b16 %v5335, %v5334
      %v5367 = vpack.c.b16 %v5337, %v5336
      %v5368 = vpack.c.b16 %v5339, %v5338
      %v5369 = vpack.c.b16 %v5341, %v5340
      %v5370 = vpack.c.b16 %v5343, %v5342
      %v5371 = vpack.c.b16 %v5345, %v5344
      %v5372 = vpack.c.b16 %v5347, %v5346
      %v5373 = vpack.c.b16 %v5349, %v5348
      %v5374 = vpack.c.b16 %v5351, %v5350
      %v5375 = vpack.c.b16 %v5353, %v5352
      %v5376 = vpack.c.b16 %v5355, %v5354
      %v5377 = vpack.c.b16 %v5357, %v5356
      %v5399 = vunpack.c.l.b16 %v5277
      %v5400 = vpack.c.b16 %v5399, %v5399
      %v5402 = vshrl.u32 %v5358, 16
      %v5404 = vshll.u32 %v5358, 16
      %v5406 = vrot.slane %v5404, 1
      %v5407 = vor.u32 %v5402, %v5406
      %v5409 = vshll.u32 %v5359, 16
      %v5411 = vrot.slane %v5409, 1
      %v5412 = vsel %vm661, %v5407, %v5411
      %v5413 = vshrl.u32 %v5359, 16
      %v5415 = vor.u32 %v5413, %v5411
      %v5417 = vshll.u32 %v5360, 16
      %v5419 = vrot.slane %v5417, 1
      %v5420 = vsel %vm661, %v5415, %v5419
      %v5421 = vshrl.u32 %v5360, 16
      %v5423 = vor.u32 %v5421, %v5419
      %v5425 = vshll.u32 %v5361, 16
      %v5427 = vrot.slane %v5425, 1
      %v5428 = vsel %vm661, %v5423, %v5427
      %v5429 = vshrl.u32 %v5361, 16
      %v5431 = vor.u32 %v5429, %v5427
      %v5433 = vshll.u32 %v5362, 16
      %v5435 = vrot.slane %v5433, 1
      %v5436 = vsel %vm661, %v5431, %v5435
      %v5437 = vshrl.u32 %v5362, 16
      %v5439 = vor.u32 %v5437, %v5435
      %v5441 = vshll.u32 %v5363, 16
      %v5443 = vrot.slane %v5441, 1
      %v5444 = vsel %vm661, %v5439, %v5443
      %v5445 = vshrl.u32 %v5363, 16
      %v5447 = vor.u32 %v5445, %v5443
      %v5449 = vshll.u32 %v5364, 16
      %v5451 = vrot.slane %v5449, 1
      %v5452 = vsel %vm661, %v5447, %v5451
      %v5453 = vshrl.u32 %v5364, 16
      %v5455 = vor.u32 %v5453, %v5451
      %v5457 = vshll.u32 %v5365, 16
      %v5459 = vrot.slane %v5457, 1
      %v5460 = vsel %vm661, %v5455, %v5459
      %v5461 = vshrl.u32 %v5365, 16
      %v5463 = vor.u32 %v5461, %v5459
      %v5465 = vshll.u32 %v5366, 16
      %v5467 = vrot.slane %v5465, 1
      %v5468 = vsel %vm661, %v5463, %v5467
      %v5469 = vshrl.u32 %v5366, 16
      %v5471 = vor.u32 %v5469, %v5467
      %v5473 = vshll.u32 %v5367, 16
      %v5475 = vrot.slane %v5473, 1
      %v5476 = vsel %vm661, %v5471, %v5475
      %v5477 = vshrl.u32 %v5367, 16
      %v5479 = vor.u32 %v5477, %v5475
      %v5481 = vshll.u32 %v5368, 16
      %v5483 = vrot.slane %v5481, 1
      %v5484 = vsel %vm661, %v5479, %v5483
      %v5485 = vshrl.u32 %v5368, 16
      %v5487 = vor.u32 %v5485, %v5483
      %v5489 = vshll.u32 %v5369, 16
      %v5491 = vrot.slane %v5489, 1
      %v5492 = vsel %vm661, %v5487, %v5491
      %v5493 = vshrl.u32 %v5369, 16
      %v5495 = vor.u32 %v5493, %v5491
      %v5497 = vshll.u32 %v5370, 16
      %v5499 = vrot.slane %v5497, 1
      %v5500 = vsel %vm661, %v5495, %v5499
      %v5501 = vshrl.u32 %v5370, 16
      %v5503 = vor.u32 %v5501, %v5499
      %v5505 = vshll.u32 %v5371, 16
      %v5507 = vrot.slane %v5505, 1
      %v5508 = vsel %vm661, %v5503, %v5507
      %v5509 = vshrl.u32 %v5371, 16
      %v5511 = vor.u32 %v5509, %v5507
      %v5513 = vshll.u32 %v5372, 16
      %v5515 = vrot.slane %v5513, 1
      %v5516 = vsel %vm661, %v5511, %v5515
      %v5517 = vshrl.u32 %v5372, 16
      %v5519 = vor.u32 %v5517, %v5515
      %v5521 = vshll.u32 %v5373, 16
      %v5523 = vrot.slane %v5521, 1
      %v5524 = vsel %vm661, %v5519, %v5523
      %v5525 = vshrl.u32 %v5373, 16
      %v5527 = vor.u32 %v5525, %v5523
      %v5529 = vshll.u32 %v5374, 16
      %v5531 = vrot.slane %v5529, 1
      %v5532 = vsel %vm661, %v5527, %v5531
      %v5533 = vshrl.u32 %v5374, 16
      %v5535 = vor.u32 %v5533, %v5531
      %v5537 = vshll.u32 %v5375, 16
      %v5539 = vrot.slane %v5537, 1
      %v5540 = vsel %vm661, %v5535, %v5539
      %v5541 = vshrl.u32 %v5375, 16
      %v5543 = vor.u32 %v5541, %v5539
      %v5545 = vshll.u32 %v5376, 16
      %v5547 = vrot.slane %v5545, 1
      %v5548 = vsel %vm661, %v5543, %v5547
      %v5549 = vshrl.u32 %v5376, 16
      %v5551 = vor.u32 %v5549, %v5547
      %v5553 = vshll.u32 %v5377, 16
      %v5555 = vrot.slane %v5553, 1
      %v5556 = vsel %vm661, %v5551, %v5555
      %v5557 = vshrl.u32 %v5377, 16
      %v5559 = vor.u32 %v5557, %v5555
      %v5561 = vshll.u32 %v5400, 16
      %v5563 = vrot.slane %v5561, 1
      %v5564 = vsel %vm661, %v5559, %v5563
      %v5585 = vrot.slane %v5358, 1
      %v5586 = vrot.slane %v5359, 1
      %v5587 = vsel %vm900, %v5585, %v5586
      %v5588 = vrot.slane %v5360, 1
      %v5589 = vsel %vm900, %v5586, %v5588
      %v5590 = vrot.slane %v5361, 1
      %v5591 = vsel %vm900, %v5588, %v5590
      %v5592 = vrot.slane %v5362, 1
      %v5593 = vsel %vm900, %v5590, %v5592
      %v5594 = vrot.slane %v5363, 1
      %v5595 = vsel %vm900, %v5592, %v5594
      %v5596 = vrot.slane %v5364, 1
      %v5597 = vsel %vm900, %v5594, %v5596
      %v5598 = vrot.slane %v5365, 1
      %v5599 = vsel %vm900, %v5596, %v5598
      %v5600 = vrot.slane %v5366, 1
      %v5601 = vsel %vm900, %v5598, %v5600
      %v5602 = vrot.slane %v5367, 1
      %v5603 = vsel %vm900, %v5600, %v5602
      %v5604 = vrot.slane %v5368, 1
      %v5605 = vsel %vm900, %v5602, %v5604
      %v5606 = vrot.slane %v5369, 1
      %v5607 = vsel %vm900, %v5604, %v5606
      %v5608 = vrot.slane %v5370, 1
      %v5609 = vsel %vm900, %v5606, %v5608
      %v5610 = vrot.slane %v5371, 1
      %v5611 = vsel %vm900, %v5608, %v5610
      %v5612 = vrot.slane %v5372, 1
      %v5613 = vsel %vm900, %v5610, %v5612
      %v5614 = vrot.slane %v5373, 1
      %v5615 = vsel %vm900, %v5612, %v5614
      %v5616 = vrot.slane %v5374, 1
      %v5617 = vsel %vm900, %v5614, %v5616
      %v5618 = vrot.slane %v5375, 1
      %v5619 = vsel %vm900, %v5616, %v5618
      %v5620 = vrot.slane %v5376, 1
      %v5621 = vsel %vm900, %v5618, %v5620
      %v5622 = vrot.slane %v5377, 1
      %v5623 = vsel %vm900, %v5620, %v5622
      %v5624 = vrot.slane %v5400, 1
      %v5625 = vsel %vm900, %v5622, %v5624
      %v5646 = vld [vmem:[%s5] sm:$0xf]
      %v5647 = vld [vmem:[%s5 + $0x4] sm:$0xf]
      %v5648 = vld [vmem:[%s5 + $0x8] sm:$0xf]
      %v5649 = vld [vmem:[%s5 + $0xc] sm:$0xf]
      %v5650 = vld [vmem:[%s5 + $0x10] sm:$0xf]
      %v5651 = vld [vmem:[%s5 + $0x14] sm:$0xf]
      %v5652 = vld [vmem:[%s5 + $0x18] sm:$0xf]
      %v5653 = vld [vmem:[%s5 + $0x1c] sm:$0xf]
      %v5654 = vld [vmem:[%s5 + $0x20] sm:$0xf]
      %v5655 = vld [vmem:[%s5 + $0x24] sm:$0xf]
      %v5656 = vld [vmem:[%s5 + $0x28] sm:$0xf]
      %v5657 = vld [vmem:[%s5 + $0x2c] sm:$0xf]
      %v5658 = vld [vmem:[%s5 + $0x30] sm:$0xf]
      %v5659 = vld [vmem:[%s5 + $0x34] sm:$0xf]
      %v5660 = vld [vmem:[%s5 + $0x38] sm:$0xf]
      %v5661 = vld [vmem:[%s5 + $0x3c] sm:$0xf]
      %v5662 = vld [vmem:[%s5 + $0x40] sm:$0xf]
      %v5663 = vld [vmem:[%s5 + $0x44] sm:$0xf]
      %v5664 = vld [vmem:[%s5 + $0x48] sm:$0xf]
      %v5665 = vld [vmem:[%s5 + $0x4c] sm:$0xf]
      %v5666 = vld [vmem:[%s5 + $0x50] sm:$0xf]
      %v5667 = vld [vmem:[%s5 + $0x54] sm:$0xf]
      %v5668 = vld [vmem:[%s5 + $0x58] sm:$0xf]
      %v5669 = vld [vmem:[%s5 + $0x5c] sm:$0xf]
      %v5670 = vld [vmem:[%s5 + $0x60] sm:$0xf]
      %v5671 = vld [vmem:[%s5 + $0x64] sm:$0xf]
      %v5672 = vld [vmem:[%s5 + $0x68] sm:$0xf]
      %v5673 = vld [vmem:[%s5 + $0x6c] sm:$0xf]
      %v5674 = vld [vmem:[%s5 + $0x70] sm:$0xf]
      %v5675 = vld [vmem:[%s5 + $0x74] sm:$0xf]
      %v5676 = vld [vmem:[%s5 + $0x78] sm:$0xf]
      %v5677 = vld [vmem:[%s5 + $0x7c] sm:$0xf]
      %v5678 = vld [vmem:[%s5 + $0x80] sm:$0xf]
      %v5679 = vld [vmem:[%s5 + $0x84] sm:$0xf]
      %v5680 = vld [vmem:[%s5 + $0x88] sm:$0xf]
      %v5681 = vld [vmem:[%s5 + $0x8c] sm:$0xf]
      %v5682 = vld [vmem:[%s5 + $0x90] sm:$0xf]
      %v5683 = vld [vmem:[%s5 + $0x94] sm:$0xf]
      %v5684 = vld [vmem:[%s5 + $0x98] sm:$0xf]
      %v5685 = vld [vmem:[%s5 + $0x9c] sm:$0xf]
      %v5686 = vld [vmem:[%s5 + $0xa0] sm:$0xf]
      %v5687 = vld [vmem:[%s5 + $0xa4] sm:$0xf]
      %v5688 = vld [vmem:[%s5 + $0xa8] sm:$0xf]
      %v5689 = vld [vmem:[%s5 + $0xac] sm:$0xf]
      %v5690 = vld [vmem:[%s5 + $0xb0] sm:$0xf]
      %v5691 = vld [vmem:[%s5 + $0xb4] sm:$0xf]
      %v5692 = vld [vmem:[%s5 + $0xb8] sm:$0xf]
      %v5693 = vld [vmem:[%s5 + $0xbc] sm:$0xf]
      %s5694 = scalar_lea.vmem %s5, 192
      %v5695 = vld [vmem:[%s5694] sm:$0xf]
      %v5696 = vld [vmem:[%s5694 + $0x4] sm:$0xf]
      %v5697 = vld [vmem:[%s5694 + $0x8] sm:$0xf]
      %v5698 = vld [vmem:[%s5694 + $0xc] sm:$0xf]
      %v5699 = vld [vmem:[%s5694 + $0x10] sm:$0xf]
      %v5700 = vld [vmem:[%s5694 + $0x14] sm:$0xf]
      %v5701 = vld [vmem:[%s5694 + $0x18] sm:$0xf]
      %v5702 = vld [vmem:[%s5694 + $0x1c] sm:$0xf]
      %v5703 = vld [vmem:[%s5694 + $0x20] sm:$0xf]
      %v5704 = vld [vmem:[%s5694 + $0x24] sm:$0xf]
      %v5705 = vld [vmem:[%s5694 + $0x28] sm:$0xf]
      %v5706 = vld [vmem:[%s5694 + $0x2c] sm:$0xf]
      %v5707 = vld [vmem:[%s5694 + $0x30] sm:$0xf]
      %v5708 = vld [vmem:[%s5694 + $0x34] sm:$0xf]
      %v5709 = vld [vmem:[%s5694 + $0x38] sm:$0xf]
      %v5710 = vld [vmem:[%s5694 + $0x3c] sm:$0xf]
      %v5711 = vld [vmem:[%s5694 + $0x40] sm:$0xf]
      %v5712 = vld [vmem:[%s5694 + $0x44] sm:$0xf]
      %v5713 = vld [vmem:[%s5694 + $0x48] sm:$0xf]
      %v5714 = vld [vmem:[%s5694 + $0x4c] sm:$0xf]
      %v5715 = vld [vmem:[%s5694 + $0x50] sm:$0xf]
      %v5716 = vld [vmem:[%s5694 + $0x54] sm:$0xf]
      %v5717 = vld [vmem:[%s5694 + $0x58] sm:$0xf]
      %v5718 = vld [vmem:[%s5694 + $0x5c] sm:$0xf]
      %v5719 = vld [vmem:[%s5694 + $0x60] sm:$0xf]
      %v5720 = vld [vmem:[%s5694 + $0x64] sm:$0xf]
      %v5721 = vld [vmem:[%s5694 + $0x68] sm:$0xf]
      %v5722 = vld [vmem:[%s5694 + $0x6c] sm:$0xf]
      %v5723 = vld [vmem:[%s5694 + $0x70] sm:$0xf]
      %v5724 = vld [vmem:[%s5694 + $0x74] sm:$0xf]
      %v5725 = vld [vmem:[%s5694 + $0x78] sm:$0xf]
      %v5726 = vld [vmem:[%s5694 + $0x7c] sm:$0xf]
      %v5727 = vld [vmem:[%s5694 + $0x80] sm:$0xf]
      %v5728 = vld [vmem:[%s5694 + $0x84] sm:$0xf]
      %v5729 = vld [vmem:[%s5694 + $0x88] sm:$0xf]
      %v5730 = vld [vmem:[%s5694 + $0x8c] sm:$0xf]
      %v5731 = vld [vmem:[%s5694 + $0x90] sm:$0xf]
      %v5732 = vld [vmem:[%s5694 + $0x94] sm:$0xf]
      %v5733 = vld [vmem:[%s5694 + $0x98] sm:$0xf]
      %v5734 = vld [vmem:[%s5694 + $0x9c] sm:$0xf]
      %v5735 = vld [vmem:[%s5694 + $0xa0] sm:$0xf]
      %v5736 = vld [vmem:[%s5694 + $0xa4] sm:$0xf]
      %v5737 = vld [vmem:[%s5694 + $0xa8] sm:$0xf]
      %v5738 = vld [vmem:[%s5694 + $0xac] sm:$0xf]
      %v5739 = vld [vmem:[%s5694 + $0xb0] sm:$0xf]
      %v5740 = vld [vmem:[%s5694 + $0xb4] sm:$0xf]
      %v5741 = vld [vmem:[%s5694 + $0xb8] sm:$0xf]
      %v5742 = vld [vmem:[%s5694 + $0xbc] sm:$0xf]
      %v5791 = vunpack.c.l.b16 %v5695
      %v5792 = vunpack.c.l.b16 %v5696
      %v5793 = vunpack.c.l.b16 %v5697
      %v5794 = vunpack.c.l.b16 %v5698
      %v5795 = vunpack.c.l.b16 %v5699
      %v5796 = vunpack.c.l.b16 %v5700
      %v5797 = vunpack.c.l.b16 %v5701
      %v5798 = vunpack.c.l.b16 %v5702
      %v5799 = vunpack.c.l.b16 %v5703
      %v5800 = vunpack.c.l.b16 %v5704
      %v5801 = vunpack.c.l.b16 %v5705
      %v5802 = vunpack.c.l.b16 %v5706
      %v5803 = vunpack.c.l.b16 %v5707
      %v5804 = vunpack.c.l.b16 %v5708
      %v5805 = vunpack.c.l.b16 %v5709
      %v5806 = vunpack.c.l.b16 %v5710
      %v5807 = vunpack.c.l.b16 %v5711
      %v5808 = vunpack.c.l.b16 %v5712
      %v5809 = vunpack.c.l.b16 %v5713
      %v5810 = vunpack.c.l.b16 %v5714
      %v5811 = vunpack.c.l.b16 %v5715
      %v5812 = vunpack.c.l.b16 %v5716
      %v5813 = vunpack.c.l.b16 %v5717
      %v5814 = vunpack.c.l.b16 %v5718
      %v5815 = vunpack.c.l.b16 %v5719
      %v5816 = vunpack.c.l.b16 %v5720
      %v5817 = vunpack.c.l.b16 %v5721
      %v5818 = vunpack.c.l.b16 %v5722
      %v5819 = vunpack.c.l.b16 %v5723
      %v5820 = vunpack.c.l.b16 %v5724
      %v5821 = vunpack.c.l.b16 %v5725
      %v5822 = vunpack.c.l.b16 %v5726
      %v5823 = vunpack.c.l.b16 %v5727
      %v5824 = vunpack.c.l.b16 %v5728
      %v5825 = vunpack.c.l.b16 %v5729
      %v5826 = vunpack.c.l.b16 %v5730
      %v5827 = vunpack.c.l.b16 %v5731
      %v5828 = vunpack.c.l.b16 %v5732
      %v5829 = vunpack.c.l.b16 %v5733
      %v5830 = vunpack.c.l.b16 %v5734
      %v5831 = vunpack.c.l.b16 %v5735
      %v5832 = vunpack.c.l.b16 %v5736
      %v5833 = vunpack.c.l.b16 %v5737
      %v5834 = vunpack.c.l.b16 %v5738
      %v5835 = vunpack.c.l.b16 %v5739
      %v5836 = vunpack.c.l.b16 %v5740
      %v5837 = vunpack.c.l.b16 %v5741
      %v5838 = vunpack.c.l.b16 %v5742
      %v5839 = vpack.c.b16 %v5792, %v5791
      %v5840 = vpack.c.b16 %v5794, %v5793
      %v5841 = vpack.c.b16 %v5796, %v5795
      %v5842 = vpack.c.b16 %v5798, %v5797
      %v5843 = vpack.c.b16 %v5800, %v5799
      %v5844 = vpack.c.b16 %v5802, %v5801
      %v5845 = vpack.c.b16 %v5804, %v5803
      %v5846 = vpack.c.b16 %v5806, %v5805
      %v5847 = vpack.c.b16 %v5808, %v5807
      %v5848 = vpack.c.b16 %v5810, %v5809
      %v5849 = vpack.c.b16 %v5812, %v5811
      %v5850 = vpack.c.b16 %v5814, %v5813
      %v5851 = vpack.c.b16 %v5816, %v5815
      %v5852 = vpack.c.b16 %v5818, %v5817
      %v5853 = vpack.c.b16 %v5820, %v5819
      %v5854 = vpack.c.b16 %v5822, %v5821
      %v5855 = vpack.c.b16 %v5824, %v5823
      %v5856 = vpack.c.b16 %v5826, %v5825
      %v5857 = vpack.c.b16 %v5828, %v5827
      %v5858 = vpack.c.b16 %v5830, %v5829
      %v5859 = vpack.c.b16 %v5832, %v5831
      %v5860 = vpack.c.b16 %v5834, %v5833
      %v5861 = vpack.c.b16 %v5836, %v5835
      %v5862 = vpack.c.b16 %v5838, %v5837
      %5887 = vmatpush.bf16.msra.mxu0 %v5846
      %5888 = vmatpush.bf16.msra.mxu0 %v5845
      %5889 = vmatpush.bf16.msra.mxu0 %v5844
      %5890 = vmatpush.bf16.msra.mxu0 %v5843
      %5891 = vmatpush.bf16.msra.mxu0 %v5842
      %5892 = vmatpush.bf16.msra.mxu0 %v5841
      %5893 = vmatpush.bf16.msra.mxu0 %v5840
      %5894 = vmatpush.bf16.msra.mxu0 %v5839
      %5895 = vmatmul.bf16.gmra.mxu0 %v5360
      %v5896 = vpop.f32.mrf.mxu0
      %v5897 = vadd.f32 0.0, %v5896
      %v5898 = vpop.f32.mrf.mxu0
      %v5899 = vadd.f32 0.0, %v5898
      %5900 = vmatmul.bf16.gmra.mxu0 %v5361
      %v5901 = vpop.f32.mrf.mxu0
      %v5902 = vadd.f32 0.0, %v5901
      %v5903 = vpop.f32.mrf.mxu0
      %v5904 = vadd.f32 0.0, %v5903
      %5905 = vmatmul.bf16.gmra.mxu0 %v5362
      %v5906 = vpop.f32.mrf.mxu0
      %v5907 = vadd.f32 0.0, %v5906
      %v5908 = vpop.f32.mrf.mxu0
      %v5909 = vadd.f32 0.0, %v5908
      %5910 = vmatmul.bf16.gmra.mxu0 %v5363
      %v5911 = vpop.f32.mrf.mxu0
      %v5912 = vadd.f32 0.0, %v5911
      %v5913 = vpop.f32.mrf.mxu0
      %v5914 = vadd.f32 0.0, %v5913
      %5915 = vmatmul.bf16.gmra.mxu0 %v5364
      %v5916 = vpop.f32.mrf.mxu0
      %v5917 = vadd.f32 0.0, %v5916
      %v5918 = vpop.f32.mrf.mxu0
      %v5919 = vadd.f32 0.0, %v5918
      %5920 = vmatmul.bf16.gmra.mxu0 %v5365
      %v5921 = vpop.f32.mrf.mxu0
      %v5922 = vadd.f32 0.0, %v5921
      %v5923 = vpop.f32.mrf.mxu0
      %v5924 = vadd.f32 0.0, %v5923
      %5925 = vmatmul.bf16.gmra.mxu0 %v5366
      %v5926 = vpop.f32.mrf.mxu0
      %v5927 = vadd.f32 0.0, %v5926
      %v5928 = vpop.f32.mrf.mxu0
      %v5929 = vadd.f32 0.0, %v5928
      %5930 = vmatmul.bf16.gmra.mxu0 %v5367
      %v5931 = vpop.f32.mrf.mxu0
      %v5932 = vadd.f32 0.0, %v5931
      %v5933 = vpop.f32.mrf.mxu0
      %v5934 = vadd.f32 0.0, %v5933
      %5935 = vmatmul.bf16.gmra.mxu0 %v5368
      %v5936 = vpop.f32.mrf.mxu0
      %v5937 = vadd.f32 0.0, %v5936
      %v5938 = vpop.f32.mrf.mxu0
      %v5939 = vadd.f32 0.0, %v5938
      %5940 = vmatmul.bf16.gmra.mxu0 %v5369
      %v5941 = vpop.f32.mrf.mxu0
      %v5942 = vadd.f32 0.0, %v5941
      %v5943 = vpop.f32.mrf.mxu0
      %v5944 = vadd.f32 0.0, %v5943
      %5945 = vmatmul.bf16.gmra.mxu0 %v5370
      %v5946 = vpop.f32.mrf.mxu0
      %v5947 = vadd.f32 0.0, %v5946
      %v5948 = vpop.f32.mrf.mxu0
      %v5949 = vadd.f32 0.0, %v5948
      %5950 = vmatmul.bf16.gmra.mxu0 %v5371
      %v5951 = vpop.f32.mrf.mxu0
      %v5952 = vadd.f32 0.0, %v5951
      %v5953 = vpop.f32.mrf.mxu0
      %v5954 = vadd.f32 0.0, %v5953
      %5955 = vmatmul.bf16.gmra.mxu0 %v5372
      %v5956 = vpop.f32.mrf.mxu0
      %v5957 = vadd.f32 0.0, %v5956
      %v5958 = vpop.f32.mrf.mxu0
      %v5959 = vadd.f32 0.0, %v5958
      %5960 = vmatmul.bf16.gmra.mxu0 %v5373
      %v5961 = vpop.f32.mrf.mxu0
      %v5962 = vadd.f32 0.0, %v5961
      %v5963 = vpop.f32.mrf.mxu0
      %v5964 = vadd.f32 0.0, %v5963
      %5965 = vmatmul.bf16.gmra.mxu0 %v5374
      %v5966 = vpop.f32.mrf.mxu0
      %v5967 = vadd.f32 0.0, %v5966
      %v5968 = vpop.f32.mrf.mxu0
      %v5969 = vadd.f32 0.0, %v5968
      %5970 = vmatmul.bf16.gmra.mxu0 %v5375
      %v5971 = vpop.f32.mrf.mxu0
      %v5972 = vadd.f32 0.0, %v5971
      %v5973 = vpop.f32.mrf.mxu0
      %v5974 = vadd.f32 0.0, %v5973
      %5975 = vdwg.mxu0
      %5976 = vmatpush.bf16.msra.mxu0 %v5854
      %5977 = vmatpush.bf16.msra.mxu0 %v5853
      %5978 = vmatpush.bf16.msra.mxu0 %v5852
      %5979 = vmatpush.bf16.msra.mxu0 %v5851
      %5980 = vmatpush.bf16.msra.mxu0 %v5850
      %5981 = vmatpush.bf16.msra.mxu0 %v5849
      %5982 = vmatpush.bf16.msra.mxu0 %v5848
      %5983 = vmatpush.bf16.msra.mxu0 %v5847
      %5984 = vmatmul.bf16.gmra.mxu0 %v5428
      %v5985 = vpop.f32.mrf.mxu0
      %v5986 = vadd.f32 %v5897, %v5985
      %v5987 = vpop.f32.mrf.mxu0
      %v5988 = vadd.f32 %v5899, %v5987
      %5989 = vmatmul.bf16.gmra.mxu0 %v5436
      %v5990 = vpop.f32.mrf.mxu0
      %v5991 = vadd.f32 %v5902, %v5990
      %v5992 = vpop.f32.mrf.mxu0
      %v5993 = vadd.f32 %v5904, %v5992
      %5994 = vmatmul.bf16.gmra.mxu0 %v5444
      %v5995 = vpop.f32.mrf.mxu0
      %v5996 = vadd.f32 %v5907, %v5995
      %v5997 = vpop.f32.mrf.mxu0
      %v5998 = vadd.f32 %v5909, %v5997
      %5999 = vmatmul.bf16.gmra.mxu0 %v5452
      %v6000 = vpop.f32.mrf.mxu0
      %v6001 = vadd.f32 %v5912, %v6000
      %v6002 = vpop.f32.mrf.mxu0
      %v6003 = vadd.f32 %v5914, %v6002
      %6004 = vmatmul.bf16.gmra.mxu0 %v5460
      %v6005 = vpop.f32.mrf.mxu0
      %v6006 = vadd.f32 %v5917, %v6005
      %v6007 = vpop.f32.mrf.mxu0
      %v6008 = vadd.f32 %v5919, %v6007
      %6009 = vmatmul.bf16.gmra.mxu0 %v5468
      %v6010 = vpop.f32.mrf.mxu0
      %v6011 = vadd.f32 %v5922, %v6010
      %v6012 = vpop.f32.mrf.mxu0
      %v6013 = vadd.f32 %v5924, %v6012
      %6014 = vmatmul.bf16.gmra.mxu0 %v5476
      %v6015 = vpop.f32.mrf.mxu0
      %v6016 = vadd.f32 %v5927, %v6015
      %v6017 = vpop.f32.mrf.mxu0
      %v6018 = vadd.f32 %v5929, %v6017
      %6019 = vmatmul.bf16.gmra.mxu0 %v5484
      %v6020 = vpop.f32.mrf.mxu0
      %v6021 = vadd.f32 %v5932, %v6020
      %v6022 = vpop.f32.mrf.mxu0
      %v6023 = vadd.f32 %v5934, %v6022
      %6024 = vmatmul.bf16.gmra.mxu0 %v5492
      %v6025 = vpop.f32.mrf.mxu0
      %v6026 = vadd.f32 %v5937, %v6025
      %v6027 = vpop.f32.mrf.mxu0
      %v6028 = vadd.f32 %v5939, %v6027
      %6029 = vmatmul.bf16.gmra.mxu0 %v5500
      %v6030 = vpop.f32.mrf.mxu0
      %v6031 = vadd.f32 %v5942, %v6030
      %v6032 = vpop.f32.mrf.mxu0
      %v6033 = vadd.f32 %v5944, %v6032
      %6034 = vmatmul.bf16.gmra.mxu0 %v5508
      %v6035 = vpop.f32.mrf.mxu0
      %v6036 = vadd.f32 %v5947, %v6035
      %v6037 = vpop.f32.mrf.mxu0
      %v6038 = vadd.f32 %v5949, %v6037
      %6039 = vmatmul.bf16.gmra.mxu0 %v5516
      %v6040 = vpop.f32.mrf.mxu0
      %v6041 = vadd.f32 %v5952, %v6040
      %v6042 = vpop.f32.mrf.mxu0
      %v6043 = vadd.f32 %v5954, %v6042
      %6044 = vmatmul.bf16.gmra.mxu0 %v5524
      %v6045 = vpop.f32.mrf.mxu0
      %v6046 = vadd.f32 %v5957, %v6045
      %v6047 = vpop.f32.mrf.mxu0
      %v6048 = vadd.f32 %v5959, %v6047
      %6049 = vmatmul.bf16.gmra.mxu0 %v5532
      %v6050 = vpop.f32.mrf.mxu0
      %v6051 = vadd.f32 %v5962, %v6050
      %v6052 = vpop.f32.mrf.mxu0
      %v6053 = vadd.f32 %v5964, %v6052
      %6054 = vmatmul.bf16.gmra.mxu0 %v5540
      %v6055 = vpop.f32.mrf.mxu0
      %v6056 = vadd.f32 %v5967, %v6055
      %v6057 = vpop.f32.mrf.mxu0
      %v6058 = vadd.f32 %v5969, %v6057
      %6059 = vmatmul.bf16.gmra.mxu0 %v5548
      %v6060 = vpop.f32.mrf.mxu0
      %v6061 = vadd.f32 %v5972, %v6060
      %v6062 = vpop.f32.mrf.mxu0
      %v6063 = vadd.f32 %v5974, %v6062
      %6064 = vdwg.mxu0
      %6065 = vmatpush.bf16.msra.mxu0 %v5862
      %6066 = vmatpush.bf16.msra.mxu0 %v5861
      %6067 = vmatpush.bf16.msra.mxu0 %v5860
      %6068 = vmatpush.bf16.msra.mxu0 %v5859
      %6069 = vmatpush.bf16.msra.mxu0 %v5858
      %6070 = vmatpush.bf16.msra.mxu0 %v5857
      %6071 = vmatpush.bf16.msra.mxu0 %v5856
      %6072 = vmatpush.bf16.msra.mxu0 %v5855
      %6073 = vmatmul.bf16.gmra.mxu0 %v5591
      %v6074 = vpop.f32.mrf.mxu0
      %v6075 = vadd.f32 %v5986, %v6074
      %v6076 = vpop.f32.mrf.mxu0
      %v6077 = vadd.f32 %v5988, %v6076
      %6078 = vmatmul.bf16.gmra.mxu0 %v5593
      %v6079 = vpop.f32.mrf.mxu0
      %v6080 = vadd.f32 %v5991, %v6079
      %v6081 = vpop.f32.mrf.mxu0
      %v6082 = vadd.f32 %v5993, %v6081
      %6083 = vmatmul.bf16.gmra.mxu0 %v5595
      %v6084 = vpop.f32.mrf.mxu0
      %v6085 = vadd.f32 %v5996, %v6084
      %v6086 = vpop.f32.mrf.mxu0
      %v6087 = vadd.f32 %v5998, %v6086
      %6088 = vmatmul.bf16.gmra.mxu0 %v5597
      %v6089 = vpop.f32.mrf.mxu0
      %v6090 = vadd.f32 %v6001, %v6089
      %v6091 = vpop.f32.mrf.mxu0
      %v6092 = vadd.f32 %v6003, %v6091
      %6093 = vmatmul.bf16.gmra.mxu0 %v5599
      %v6094 = vpop.f32.mrf.mxu0
      %v6095 = vadd.f32 %v6006, %v6094
      %v6096 = vpop.f32.mrf.mxu0
      %v6097 = vadd.f32 %v6008, %v6096
      %6098 = vmatmul.bf16.gmra.mxu0 %v5601
      %v6099 = vpop.f32.mrf.mxu0
      %v6100 = vadd.f32 %v6011, %v6099
      %v6101 = vpop.f32.mrf.mxu0
      %v6102 = vadd.f32 %v6013, %v6101
      %6103 = vmatmul.bf16.gmra.mxu0 %v5603
      %v6104 = vpop.f32.mrf.mxu0
      %v6105 = vadd.f32 %v6016, %v6104
      %v6106 = vpop.f32.mrf.mxu0
      %v6107 = vadd.f32 %v6018, %v6106
      %6108 = vmatmul.bf16.gmra.mxu0 %v5605
      %v6109 = vpop.f32.mrf.mxu0
      %v6110 = vadd.f32 %v6021, %v6109
      %v6111 = vpop.f32.mrf.mxu0
      %v6112 = vadd.f32 %v6023, %v6111
      %6113 = vmatmul.bf16.gmra.mxu0 %v5607
      %v6114 = vpop.f32.mrf.mxu0
      %v6115 = vadd.f32 %v6026, %v6114
      %v6116 = vpop.f32.mrf.mxu0
      %v6117 = vadd.f32 %v6028, %v6116
      %6118 = vmatmul.bf16.gmra.mxu0 %v5609
      %v6119 = vpop.f32.mrf.mxu0
      %v6120 = vadd.f32 %v6031, %v6119
      %v6121 = vpop.f32.mrf.mxu0
      %v6122 = vadd.f32 %v6033, %v6121
      %6123 = vmatmul.bf16.gmra.mxu0 %v5611
      %v6124 = vpop.f32.mrf.mxu0
      %v6125 = vadd.f32 %v6036, %v6124
      %v6126 = vpop.f32.mrf.mxu0
      %v6127 = vadd.f32 %v6038, %v6126
      %6128 = vmatmul.bf16.gmra.mxu0 %v5613
      %v6129 = vpop.f32.mrf.mxu0
      %v6130 = vadd.f32 %v6041, %v6129
      %v6131 = vpop.f32.mrf.mxu0
      %v6132 = vadd.f32 %v6043, %v6131
      %6133 = vmatmul.bf16.gmra.mxu0 %v5615
      %v6134 = vpop.f32.mrf.mxu0
      %v6135 = vadd.f32 %v6046, %v6134
      %v6136 = vpop.f32.mrf.mxu0
      %v6137 = vadd.f32 %v6048, %v6136
      %6138 = vmatmul.bf16.gmra.mxu0 %v5617
      %v6139 = vpop.f32.mrf.mxu0
      %v6140 = vadd.f32 %v6051, %v6139
      %v6141 = vpop.f32.mrf.mxu0
      %v6142 = vadd.f32 %v6053, %v6141
      %6143 = vmatmul.bf16.gmra.mxu0 %v5619
      %v6144 = vpop.f32.mrf.mxu0
      %v6145 = vadd.f32 %v6056, %v6144
      %v6146 = vpop.f32.mrf.mxu0
      %v6147 = vadd.f32 %v6058, %v6146
      %6148 = vmatmul.bf16.gmra.mxu0 %v5621
      %v6149 = vpop.f32.mrf.mxu0
      %v6150 = vadd.f32 %v6061, %v6149
      %v6151 = vpop.f32.mrf.mxu0
      %v6152 = vadd.f32 %v6063, %v6151
      %6153 = vdwg.mxu0
      %v6202 = vunpack.c.l.b16 %v5646
      %v6203 = vunpack.c.l.b16 %v5647
      %v6204 = vunpack.c.l.b16 %v5648
      %v6205 = vunpack.c.l.b16 %v5649
      %v6206 = vunpack.c.l.b16 %v5650
      %v6207 = vunpack.c.l.b16 %v5651
      %v6208 = vunpack.c.l.b16 %v5652
      %v6209 = vunpack.c.l.b16 %v5653
      %v6210 = vunpack.c.l.b16 %v5654
      %v6211 = vunpack.c.l.b16 %v5655
      %v6212 = vunpack.c.l.b16 %v5656
      %v6213 = vunpack.c.l.b16 %v5657
      %v6214 = vunpack.c.l.b16 %v5658
      %v6215 = vunpack.c.l.b16 %v5659
      %v6216 = vunpack.c.l.b16 %v5660
      %v6217 = vunpack.c.l.b16 %v5661
      %v6218 = vunpack.c.l.b16 %v5662
      %v6219 = vunpack.c.l.b16 %v5663
      %v6220 = vunpack.c.l.b16 %v5664
      %v6221 = vunpack.c.l.b16 %v5665
      %v6222 = vunpack.c.l.b16 %v5666
      %v6223 = vunpack.c.l.b16 %v5667
      %v6224 = vunpack.c.l.b16 %v5668
      %v6225 = vunpack.c.l.b16 %v5669
      %v6226 = vunpack.c.l.b16 %v5670
      %v6227 = vunpack.c.l.b16 %v5671
      %v6228 = vunpack.c.l.b16 %v5672
      %v6229 = vunpack.c.l.b16 %v5673
      %v6230 = vunpack.c.l.b16 %v5674
      %v6231 = vunpack.c.l.b16 %v5675
      %v6232 = vunpack.c.l.b16 %v5676
      %v6233 = vunpack.c.l.b16 %v5677
      %v6234 = vunpack.c.l.b16 %v5678
      %v6235 = vunpack.c.l.b16 %v5679
      %v6236 = vunpack.c.l.b16 %v5680
      %v6237 = vunpack.c.l.b16 %v5681
      %v6238 = vunpack.c.l.b16 %v5682
      %v6239 = vunpack.c.l.b16 %v5683
      %v6240 = vunpack.c.l.b16 %v5684
      %v6241 = vunpack.c.l.b16 %v5685
      %v6242 = vunpack.c.l.b16 %v5686
      %v6243 = vunpack.c.l.b16 %v5687
      %v6244 = vunpack.c.l.b16 %v5688
      %v6245 = vunpack.c.l.b16 %v5689
      %v6246 = vunpack.c.l.b16 %v5690
      %v6247 = vunpack.c.l.b16 %v5691
      %v6248 = vunpack.c.l.b16 %v5692
      %v6249 = vunpack.c.l.b16 %v5693
      %v6250 = vpack.c.b16 %v6203, %v6202
      %v6251 = vpack.c.b16 %v6205, %v6204
      %v6252 = vpack.c.b16 %v6207, %v6206
      %v6253 = vpack.c.b16 %v6209, %v6208
      %v6254 = vpack.c.b16 %v6211, %v6210
      %v6255 = vpack.c.b16 %v6213, %v6212
      %v6256 = vpack.c.b16 %v6215, %v6214
      %v6257 = vpack.c.b16 %v6217, %v6216
      %v6258 = vpack.c.b16 %v6219, %v6218
      %v6259 = vpack.c.b16 %v6221, %v6220
      %v6260 = vpack.c.b16 %v6223, %v6222
      %v6261 = vpack.c.b16 %v6225, %v6224
      %v6262 = vpack.c.b16 %v6227, %v6226
      %v6263 = vpack.c.b16 %v6229, %v6228
      %v6264 = vpack.c.b16 %v6231, %v6230
      %v6265 = vpack.c.b16 %v6233, %v6232
      %v6266 = vpack.c.b16 %v6235, %v6234
      %v6267 = vpack.c.b16 %v6237, %v6236
      %v6268 = vpack.c.b16 %v6239, %v6238
      %v6269 = vpack.c.b16 %v6241, %v6240
      %v6270 = vpack.c.b16 %v6243, %v6242
      %v6271 = vpack.c.b16 %v6245, %v6244
      %v6272 = vpack.c.b16 %v6247, %v6246
      %v6273 = vpack.c.b16 %v6249, %v6248
      %6298 = vmatpush.bf16.msra.mxu0 %v6257
      %6299 = vmatpush.bf16.msra.mxu0 %v6256
      %6300 = vmatpush.bf16.msra.mxu0 %v6255
      %6301 = vmatpush.bf16.msra.mxu0 %v6254
      %6302 = vmatpush.bf16.msra.mxu0 %v6253
      %6303 = vmatpush.bf16.msra.mxu0 %v6252
      %6304 = vmatpush.bf16.msra.mxu0 %v6251
      %6305 = vmatpush.bf16.msra.mxu0 %v6250
      %6306 = vmatmul.bf16.gmra.mxu0 %v5358
      %v6307 = vpop.f32.mrf.mxu0
      %v6308 = vadd.f32 %v6075, %v6307
      %v6309 = vpop.f32.mrf.mxu0
      %v6310 = vadd.f32 %v6077, %v6309
      %6311 = vmatmul.bf16.gmra.mxu0 %v5359
      %v6312 = vpop.f32.mrf.mxu0
      %v6313 = vadd.f32 %v6080, %v6312
      %v6314 = vpop.f32.mrf.mxu0
      %v6315 = vadd.f32 %v6082, %v6314
      %6316 = vmatmul.bf16.gmra.mxu0 %v5360
      %v6317 = vpop.f32.mrf.mxu0
      %v6318 = vadd.f32 %v6085, %v6317
      %v6319 = vpop.f32.mrf.mxu0
      %v6320 = vadd.f32 %v6087, %v6319
      %6321 = vmatmul.bf16.gmra.mxu0 %v5361
      %v6322 = vpop.f32.mrf.mxu0
      %v6323 = vadd.f32 %v6090, %v6322
      %v6324 = vpop.f32.mrf.mxu0
      %v6325 = vadd.f32 %v6092, %v6324
      %6326 = vmatmul.bf16.gmra.mxu0 %v5362
      %v6327 = vpop.f32.mrf.mxu0
      %v6328 = vadd.f32 %v6095, %v6327
      %v6329 = vpop.f32.mrf.mxu0
      %v6330 = vadd.f32 %v6097, %v6329
      %6331 = vmatmul.bf16.gmra.mxu0 %v5363
      %v6332 = vpop.f32.mrf.mxu0
      %v6333 = vadd.f32 %v6100, %v6332
      %v6334 = vpop.f32.mrf.mxu0
      %v6335 = vadd.f32 %v6102, %v6334
      %6336 = vmatmul.bf16.gmra.mxu0 %v5364
      %v6337 = vpop.f32.mrf.mxu0
      %v6338 = vadd.f32 %v6105, %v6337
      %v6339 = vpop.f32.mrf.mxu0
      %v6340 = vadd.f32 %v6107, %v6339
      %6341 = vmatmul.bf16.gmra.mxu0 %v5365
      %v6342 = vpop.f32.mrf.mxu0
      %v6343 = vadd.f32 %v6110, %v6342
      %v6344 = vpop.f32.mrf.mxu0
      %v6345 = vadd.f32 %v6112, %v6344
      %6346 = vmatmul.bf16.gmra.mxu0 %v5366
      %v6347 = vpop.f32.mrf.mxu0
      %v6348 = vadd.f32 %v6115, %v6347
      %v6349 = vpop.f32.mrf.mxu0
      %v6350 = vadd.f32 %v6117, %v6349
      %6351 = vmatmul.bf16.gmra.mxu0 %v5367
      %v6352 = vpop.f32.mrf.mxu0
      %v6353 = vadd.f32 %v6120, %v6352
      %v6354 = vpop.f32.mrf.mxu0
      %v6355 = vadd.f32 %v6122, %v6354
      %6356 = vmatmul.bf16.gmra.mxu0 %v5368
      %v6357 = vpop.f32.mrf.mxu0
      %v6358 = vadd.f32 %v6125, %v6357
      %v6359 = vpop.f32.mrf.mxu0
      %v6360 = vadd.f32 %v6127, %v6359
      %6361 = vmatmul.bf16.gmra.mxu0 %v5369
      %v6362 = vpop.f32.mrf.mxu0
      %v6363 = vadd.f32 %v6130, %v6362
      %v6364 = vpop.f32.mrf.mxu0
      %v6365 = vadd.f32 %v6132, %v6364
      %6366 = vmatmul.bf16.gmra.mxu0 %v5370
      %v6367 = vpop.f32.mrf.mxu0
      %v6368 = vadd.f32 %v6135, %v6367
      %v6369 = vpop.f32.mrf.mxu0
      %v6370 = vadd.f32 %v6137, %v6369
      %6371 = vmatmul.bf16.gmra.mxu0 %v5371
      %v6372 = vpop.f32.mrf.mxu0
      %v6373 = vadd.f32 %v6140, %v6372
      %v6374 = vpop.f32.mrf.mxu0
      %v6375 = vadd.f32 %v6142, %v6374
      %6376 = vmatmul.bf16.gmra.mxu0 %v5372
      %v6377 = vpop.f32.mrf.mxu0
      %v6378 = vadd.f32 %v6145, %v6377
      %v6379 = vpop.f32.mrf.mxu0
      %v6380 = vadd.f32 %v6147, %v6379
      %6381 = vmatmul.bf16.gmra.mxu0 %v5373
      %v6382 = vpop.f32.mrf.mxu0
      %v6383 = vadd.f32 %v6150, %v6382
      %v6384 = vpop.f32.mrf.mxu0
      %v6385 = vadd.f32 %v6152, %v6384
      %6386 = vdwg.mxu0
      %6387 = vmatpush.bf16.msra.mxu0 %v6265
      %6388 = vmatpush.bf16.msra.mxu0 %v6264
      %6389 = vmatpush.bf16.msra.mxu0 %v6263
      %6390 = vmatpush.bf16.msra.mxu0 %v6262
      %6391 = vmatpush.bf16.msra.mxu0 %v6261
      %6392 = vmatpush.bf16.msra.mxu0 %v6260
      %6393 = vmatpush.bf16.msra.mxu0 %v6259
      %6394 = vmatpush.bf16.msra.mxu0 %v6258
      %6395 = vmatmul.bf16.gmra.mxu0 %v5412
      %v6396 = vpop.f32.mrf.mxu0
      %v6397 = vadd.f32 %v6308, %v6396
      %v6398 = vpop.f32.mrf.mxu0
      %v6399 = vadd.f32 %v6310, %v6398
      %6400 = vmatmul.bf16.gmra.mxu0 %v5420
      %v6401 = vpop.f32.mrf.mxu0
      %v6402 = vadd.f32 %v6313, %v6401
      %v6403 = vpop.f32.mrf.mxu0
      %v6404 = vadd.f32 %v6315, %v6403
      %6405 = vmatmul.bf16.gmra.mxu0 %v5428
      %v6406 = vpop.f32.mrf.mxu0
      %v6407 = vadd.f32 %v6318, %v6406
      %v6408 = vpop.f32.mrf.mxu0
      %v6409 = vadd.f32 %v6320, %v6408
      %6410 = vmatmul.bf16.gmra.mxu0 %v5436
      %v6411 = vpop.f32.mrf.mxu0
      %v6412 = vadd.f32 %v6323, %v6411
      %v6413 = vpop.f32.mrf.mxu0
      %v6414 = vadd.f32 %v6325, %v6413
      %6415 = vmatmul.bf16.gmra.mxu0 %v5444
      %v6416 = vpop.f32.mrf.mxu0
      %v6417 = vadd.f32 %v6328, %v6416
      %v6418 = vpop.f32.mrf.mxu0
      %v6419 = vadd.f32 %v6330, %v6418
      %6420 = vmatmul.bf16.gmra.mxu0 %v5452
      %v6421 = vpop.f32.mrf.mxu0
      %v6422 = vadd.f32 %v6333, %v6421
      %v6423 = vpop.f32.mrf.mxu0
      %v6424 = vadd.f32 %v6335, %v6423
      %6425 = vmatmul.bf16.gmra.mxu0 %v5460
      %v6426 = vpop.f32.mrf.mxu0
      %v6427 = vadd.f32 %v6338, %v6426
      %v6428 = vpop.f32.mrf.mxu0
      %v6429 = vadd.f32 %v6340, %v6428
      %6430 = vmatmul.bf16.gmra.mxu0 %v5468
      %v6431 = vpop.f32.mrf.mxu0
      %v6432 = vadd.f32 %v6343, %v6431
      %v6433 = vpop.f32.mrf.mxu0
      %v6434 = vadd.f32 %v6345, %v6433
      %6435 = vmatmul.bf16.gmra.mxu0 %v5476
      %v6436 = vpop.f32.mrf.mxu0
      %v6437 = vadd.f32 %v6348, %v6436
      %v6438 = vpop.f32.mrf.mxu0
      %v6439 = vadd.f32 %v6350, %v6438
      %6440 = vmatmul.bf16.gmra.mxu0 %v5484
      %v6441 = vpop.f32.mrf.mxu0
      %v6442 = vadd.f32 %v6353, %v6441
      %v6443 = vpop.f32.mrf.mxu0
      %v6444 = vadd.f32 %v6355, %v6443
      %6445 = vmatmul.bf16.gmra.mxu0 %v5492
      %v6446 = vpop.f32.mrf.mxu0
      %v6447 = vadd.f32 %v6358, %v6446
      %v6448 = vpop.f32.mrf.mxu0
      %v6449 = vadd.f32 %v6360, %v6448
      %6450 = vmatmul.bf16.gmra.mxu0 %v5500
      %v6451 = vpop.f32.mrf.mxu0
      %v6452 = vadd.f32 %v6363, %v6451
      %v6453 = vpop.f32.mrf.mxu0
      %v6454 = vadd.f32 %v6365, %v6453
      %6455 = vmatmul.bf16.gmra.mxu0 %v5508
      %v6456 = vpop.f32.mrf.mxu0
      %v6457 = vadd.f32 %v6368, %v6456
      %v6458 = vpop.f32.mrf.mxu0
      %v6459 = vadd.f32 %v6370, %v6458
      %6460 = vmatmul.bf16.gmra.mxu0 %v5516
      %v6461 = vpop.f32.mrf.mxu0
      %v6462 = vadd.f32 %v6373, %v6461
      %v6463 = vpop.f32.mrf.mxu0
      %v6464 = vadd.f32 %v6375, %v6463
      %6465 = vmatmul.bf16.gmra.mxu0 %v5524
      %v6466 = vpop.f32.mrf.mxu0
      %v6467 = vadd.f32 %v6378, %v6466
      %v6468 = vpop.f32.mrf.mxu0
      %v6469 = vadd.f32 %v6380, %v6468
      %6470 = vmatmul.bf16.gmra.mxu0 %v5532
      %v6471 = vpop.f32.mrf.mxu0
      %v6472 = vadd.f32 %v6383, %v6471
      %v6473 = vpop.f32.mrf.mxu0
      %v6474 = vadd.f32 %v6385, %v6473
      %6475 = vdwg.mxu0
      %6476 = vmatpush.bf16.msra.mxu0 %v6273
      %6477 = vmatpush.bf16.msra.mxu0 %v6272
      %6478 = vmatpush.bf16.msra.mxu0 %v6271
      %6479 = vmatpush.bf16.msra.mxu0 %v6270
      %6480 = vmatpush.bf16.msra.mxu0 %v6269
      %6481 = vmatpush.bf16.msra.mxu0 %v6268
      %6482 = vmatpush.bf16.msra.mxu0 %v6267
      %6483 = vmatpush.bf16.msra.mxu0 %v6266
      %6484 = vmatmul.bf16.gmra.mxu0 %v5587
      %v6485 = vpop.f32.mrf.mxu0
      %v6486 = vadd.f32 %v6397, %v6485
      %v6487 = vpop.f32.mrf.mxu0
      %v6488 = vadd.f32 %v6399, %v6487
      %6489 = vmatmul.bf16.gmra.mxu0 %v5589
      %v6490 = vpop.f32.mrf.mxu0
      %v6491 = vadd.f32 %v6402, %v6490
      %v6492 = vpop.f32.mrf.mxu0
      %v6493 = vadd.f32 %v6404, %v6492
      %6494 = vmatmul.bf16.gmra.mxu0 %v5591
      %v6495 = vpop.f32.mrf.mxu0
      %v6496 = vadd.f32 %v6407, %v6495
      %v6497 = vpop.f32.mrf.mxu0
      %v6498 = vadd.f32 %v6409, %v6497
      %6499 = vmatmul.bf16.gmra.mxu0 %v5593
      %v6500 = vpop.f32.mrf.mxu0
      %v6501 = vadd.f32 %v6412, %v6500
      %v6502 = vpop.f32.mrf.mxu0
      %v6503 = vadd.f32 %v6414, %v6502
      %6504 = vmatmul.bf16.gmra.mxu0 %v5595
      %v6505 = vpop.f32.mrf.mxu0
      %v6506 = vadd.f32 %v6417, %v6505
      %v6507 = vpop.f32.mrf.mxu0
      %v6508 = vadd.f32 %v6419, %v6507
      %6509 = vmatmul.bf16.gmra.mxu0 %v5597
      %v6510 = vpop.f32.mrf.mxu0
      %v6511 = vadd.f32 %v6422, %v6510
      %v6512 = vpop.f32.mrf.mxu0
      %v6513 = vadd.f32 %v6424, %v6512
      %6514 = vmatmul.bf16.gmra.mxu0 %v5599
      %v6515 = vpop.f32.mrf.mxu0
      %v6516 = vadd.f32 %v6427, %v6515
      %v6517 = vpop.f32.mrf.mxu0
      %v6518 = vadd.f32 %v6429, %v6517
      %6519 = vmatmul.bf16.gmra.mxu0 %v5601
      %v6520 = vpop.f32.mrf.mxu0
      %v6521 = vadd.f32 %v6432, %v6520
      %v6522 = vpop.f32.mrf.mxu0
      %v6523 = vadd.f32 %v6434, %v6522
      %6524 = vmatmul.bf16.gmra.mxu0 %v5603
      %v6525 = vpop.f32.mrf.mxu0
      %v6526 = vadd.f32 %v6437, %v6525
      %v6527 = vpop.f32.mrf.mxu0
      %v6528 = vadd.f32 %v6439, %v6527
      %6529 = vmatmul.bf16.gmra.mxu0 %v5605
      %v6530 = vpop.f32.mrf.mxu0
      %v6531 = vadd.f32 %v6442, %v6530
      %v6532 = vpop.f32.mrf.mxu0
      %v6533 = vadd.f32 %v6444, %v6532
      %6534 = vmatmul.bf16.gmra.mxu0 %v5607
      %v6535 = vpop.f32.mrf.mxu0
      %v6536 = vadd.f32 %v6447, %v6535
      %v6537 = vpop.f32.mrf.mxu0
      %v6538 = vadd.f32 %v6449, %v6537
      %6539 = vmatmul.bf16.gmra.mxu0 %v5609
      %v6540 = vpop.f32.mrf.mxu0
      %v6541 = vadd.f32 %v6452, %v6540
      %v6542 = vpop.f32.mrf.mxu0
      %v6543 = vadd.f32 %v6454, %v6542
      %6544 = vmatmul.bf16.gmra.mxu0 %v5611
      %v6545 = vpop.f32.mrf.mxu0
      %v6546 = vadd.f32 %v6457, %v6545
      %v6547 = vpop.f32.mrf.mxu0
      %v6548 = vadd.f32 %v6459, %v6547
      %6549 = vmatmul.bf16.gmra.mxu0 %v5613
      %v6550 = vpop.f32.mrf.mxu0
      %v6551 = vadd.f32 %v6462, %v6550
      %v6552 = vpop.f32.mrf.mxu0
      %v6553 = vadd.f32 %v6464, %v6552
      %6554 = vmatmul.bf16.gmra.mxu0 %v5615
      %v6555 = vpop.f32.mrf.mxu0
      %v6556 = vadd.f32 %v6467, %v6555
      %v6557 = vpop.f32.mrf.mxu0
      %v6558 = vadd.f32 %v6469, %v6557
      %6559 = vmatmul.bf16.gmra.mxu0 %v5617
      %v6560 = vpop.f32.mrf.mxu0
      %v6561 = vadd.f32 %v6472, %v6560
      %v6562 = vpop.f32.mrf.mxu0
      %v6563 = vadd.f32 %v6474, %v6562
      %6564 = vdwg.mxu0
      %s6565 = scalar_lea.vmem %s5, 384
      %v6566 = vld [vmem:[%s6565] sm:$0xf]
      %v6567 = vld [vmem:[%s6565 + $0x4] sm:$0xf]
      %v6568 = vld [vmem:[%s6565 + $0x8] sm:$0xf]
      %v6569 = vld [vmem:[%s6565 + $0xc] sm:$0xf]
      %v6570 = vld [vmem:[%s6565 + $0x10] sm:$0xf]
      %v6571 = vld [vmem:[%s6565 + $0x14] sm:$0xf]
      %v6572 = vld [vmem:[%s6565 + $0x18] sm:$0xf]
      %v6573 = vld [vmem:[%s6565 + $0x1c] sm:$0xf]
      %v6574 = vld [vmem:[%s6565 + $0x20] sm:$0xf]
      %v6575 = vld [vmem:[%s6565 + $0x24] sm:$0xf]
      %v6576 = vld [vmem:[%s6565 + $0x28] sm:$0xf]
      %v6577 = vld [vmem:[%s6565 + $0x2c] sm:$0xf]
      %v6578 = vld [vmem:[%s6565 + $0x30] sm:$0xf]
      %v6579 = vld [vmem:[%s6565 + $0x34] sm:$0xf]
      %v6580 = vld [vmem:[%s6565 + $0x38] sm:$0xf]
      %v6581 = vld [vmem:[%s6565 + $0x3c] sm:$0xf]
      %v6582 = vld [vmem:[%s6565 + $0x40] sm:$0xf]
      %v6583 = vld [vmem:[%s6565 + $0x44] sm:$0xf]
      %v6584 = vld [vmem:[%s6565 + $0x48] sm:$0xf]
      %v6585 = vld [vmem:[%s6565 + $0x4c] sm:$0xf]
      %v6586 = vld [vmem:[%s6565 + $0x50] sm:$0xf]
      %v6587 = vld [vmem:[%s6565 + $0x54] sm:$0xf]
      %v6588 = vld [vmem:[%s6565 + $0x58] sm:$0xf]
      %v6589 = vld [vmem:[%s6565 + $0x5c] sm:$0xf]
      %v6590 = vld [vmem:[%s6565 + $0x60] sm:$0xf]
      %v6591 = vld [vmem:[%s6565 + $0x64] sm:$0xf]
      %v6592 = vld [vmem:[%s6565 + $0x68] sm:$0xf]
      %v6593 = vld [vmem:[%s6565 + $0x6c] sm:$0xf]
      %v6594 = vld [vmem:[%s6565 + $0x70] sm:$0xf]
      %v6595 = vld [vmem:[%s6565 + $0x74] sm:$0xf]
      %v6596 = vld [vmem:[%s6565 + $0x78] sm:$0xf]
      %v6597 = vld [vmem:[%s6565 + $0x7c] sm:$0xf]
      %v6598 = vld [vmem:[%s6565 + $0x80] sm:$0xf]
      %v6599 = vld [vmem:[%s6565 + $0x84] sm:$0xf]
      %v6600 = vld [vmem:[%s6565 + $0x88] sm:$0xf]
      %v6601 = vld [vmem:[%s6565 + $0x8c] sm:$0xf]
      %v6602 = vld [vmem:[%s6565 + $0x90] sm:$0xf]
      %v6603 = vld [vmem:[%s6565 + $0x94] sm:$0xf]
      %v6604 = vld [vmem:[%s6565 + $0x98] sm:$0xf]
      %v6605 = vld [vmem:[%s6565 + $0x9c] sm:$0xf]
      %v6606 = vld [vmem:[%s6565 + $0xa0] sm:$0xf]
      %v6607 = vld [vmem:[%s6565 + $0xa4] sm:$0xf]
      %v6608 = vld [vmem:[%s6565 + $0xa8] sm:$0xf]
      %v6609 = vld [vmem:[%s6565 + $0xac] sm:$0xf]
      %v6610 = vld [vmem:[%s6565 + $0xb0] sm:$0xf]
      %v6611 = vld [vmem:[%s6565 + $0xb4] sm:$0xf]
      %v6612 = vld [vmem:[%s6565 + $0xb8] sm:$0xf]
      %v6613 = vld [vmem:[%s6565 + $0xbc] sm:$0xf]
      %v6662 = vunpack.c.l.b16 %v6566
      %v6663 = vunpack.c.l.b16 %v6567
      %v6664 = vunpack.c.l.b16 %v6568
      %v6665 = vunpack.c.l.b16 %v6569
      %v6666 = vunpack.c.l.b16 %v6570
      %v6667 = vunpack.c.l.b16 %v6571
      %v6668 = vunpack.c.l.b16 %v6572
      %v6669 = vunpack.c.l.b16 %v6573
      %v6670 = vunpack.c.l.b16 %v6574
      %v6671 = vunpack.c.l.b16 %v6575
      %v6672 = vunpack.c.l.b16 %v6576
      %v6673 = vunpack.c.l.b16 %v6577
      %v6674 = vunpack.c.l.b16 %v6578
      %v6675 = vunpack.c.l.b16 %v6579
      %v6676 = vunpack.c.l.b16 %v6580
      %v6677 = vunpack.c.l.b16 %v6581
      %v6678 = vunpack.c.l.b16 %v6582
      %v6679 = vunpack.c.l.b16 %v6583
      %v6680 = vunpack.c.l.b16 %v6584
      %v6681 = vunpack.c.l.b16 %v6585
      %v6682 = vunpack.c.l.b16 %v6586
      %v6683 = vunpack.c.l.b16 %v6587
      %v6684 = vunpack.c.l.b16 %v6588
      %v6685 = vunpack.c.l.b16 %v6589
      %v6686 = vunpack.c.l.b16 %v6590
      %v6687 = vunpack.c.l.b16 %v6591
      %v6688 = vunpack.c.l.b16 %v6592
      %v6689 = vunpack.c.l.b16 %v6593
      %v6690 = vunpack.c.l.b16 %v6594
      %v6691 = vunpack.c.l.b16 %v6595
      %v6692 = vunpack.c.l.b16 %v6596
      %v6693 = vunpack.c.l.b16 %v6597
      %v6694 = vunpack.c.l.b16 %v6598
      %v6695 = vunpack.c.l.b16 %v6599
      %v6696 = vunpack.c.l.b16 %v6600
      %v6697 = vunpack.c.l.b16 %v6601
      %v6698 = vunpack.c.l.b16 %v6602
      %v6699 = vunpack.c.l.b16 %v6603
      %v6700 = vunpack.c.l.b16 %v6604
      %v6701 = vunpack.c.l.b16 %v6605
      %v6702 = vunpack.c.l.b16 %v6606
      %v6703 = vunpack.c.l.b16 %v6607
      %v6704 = vunpack.c.l.b16 %v6608
      %v6705 = vunpack.c.l.b16 %v6609
      %v6706 = vunpack.c.l.b16 %v6610
      %v6707 = vunpack.c.l.b16 %v6611
      %v6708 = vunpack.c.l.b16 %v6612
      %v6709 = vunpack.c.l.b16 %v6613
      %v6710 = vpack.c.b16 %v6663, %v6662
      %v6711 = vpack.c.b16 %v6665, %v6664
      %v6712 = vpack.c.b16 %v6667, %v6666
      %v6713 = vpack.c.b16 %v6669, %v6668
      %v6714 = vpack.c.b16 %v6671, %v6670
      %v6715 = vpack.c.b16 %v6673, %v6672
      %v6716 = vpack.c.b16 %v6675, %v6674
      %v6717 = vpack.c.b16 %v6677, %v6676
      %v6718 = vpack.c.b16 %v6679, %v6678
      %v6719 = vpack.c.b16 %v6681, %v6680
      %v6720 = vpack.c.b16 %v6683, %v6682
      %v6721 = vpack.c.b16 %v6685, %v6684
      %v6722 = vpack.c.b16 %v6687, %v6686
      %v6723 = vpack.c.b16 %v6689, %v6688
      %v6724 = vpack.c.b16 %v6691, %v6690
      %v6725 = vpack.c.b16 %v6693, %v6692
      %v6726 = vpack.c.b16 %v6695, %v6694
      %v6727 = vpack.c.b16 %v6697, %v6696
      %v6728 = vpack.c.b16 %v6699, %v6698
      %v6729 = vpack.c.b16 %v6701, %v6700
      %v6730 = vpack.c.b16 %v6703, %v6702
      %v6731 = vpack.c.b16 %v6705, %v6704
      %v6732 = vpack.c.b16 %v6707, %v6706
      %v6733 = vpack.c.b16 %v6709, %v6708
      %6758 = vmatpush.bf16.msra.mxu0 %v6717
      %6759 = vmatpush.bf16.msra.mxu0 %v6716
      %6760 = vmatpush.bf16.msra.mxu0 %v6715
      %6761 = vmatpush.bf16.msra.mxu0 %v6714
      %6762 = vmatpush.bf16.msra.mxu0 %v6713
      %6763 = vmatpush.bf16.msra.mxu0 %v6712
      %6764 = vmatpush.bf16.msra.mxu0 %v6711
      %6765 = vmatpush.bf16.msra.mxu0 %v6710
      %6766 = vmatmul.bf16.gmra.mxu0 %v5362
      %v6767 = vpop.f32.mrf.mxu0
      %v6768 = vadd.f32 0.0, %v6767
      %v6769 = vpop.f32.mrf.mxu0
      %v6770 = vadd.f32 0.0, %v6769
      %6771 = vmatmul.bf16.gmra.mxu0 %v5363
      %v6772 = vpop.f32.mrf.mxu0
      %v6773 = vadd.f32 0.0, %v6772
      %v6774 = vpop.f32.mrf.mxu0
      %v6775 = vadd.f32 0.0, %v6774
      %6776 = vmatmul.bf16.gmra.mxu0 %v5364
      %v6777 = vpop.f32.mrf.mxu0
      %v6778 = vadd.f32 0.0, %v6777
      %v6779 = vpop.f32.mrf.mxu0
      %v6780 = vadd.f32 0.0, %v6779
      %6781 = vmatmul.bf16.gmra.mxu0 %v5365
      %v6782 = vpop.f32.mrf.mxu0
      %v6783 = vadd.f32 0.0, %v6782
      %v6784 = vpop.f32.mrf.mxu0
      %v6785 = vadd.f32 0.0, %v6784
      %6786 = vmatmul.bf16.gmra.mxu0 %v5366
      %v6787 = vpop.f32.mrf.mxu0
      %v6788 = vadd.f32 0.0, %v6787
      %v6789 = vpop.f32.mrf.mxu0
      %v6790 = vadd.f32 0.0, %v6789
      %6791 = vmatmul.bf16.gmra.mxu0 %v5367
      %v6792 = vpop.f32.mrf.mxu0
      %v6793 = vadd.f32 0.0, %v6792
      %v6794 = vpop.f32.mrf.mxu0
      %v6795 = vadd.f32 0.0, %v6794
      %6796 = vmatmul.bf16.gmra.mxu0 %v5368
      %v6797 = vpop.f32.mrf.mxu0
      %v6798 = vadd.f32 0.0, %v6797
      %v6799 = vpop.f32.mrf.mxu0
      %v6800 = vadd.f32 0.0, %v6799
      %6801 = vmatmul.bf16.gmra.mxu0 %v5369
      %v6802 = vpop.f32.mrf.mxu0
      %v6803 = vadd.f32 0.0, %v6802
      %v6804 = vpop.f32.mrf.mxu0
      %v6805 = vadd.f32 0.0, %v6804
      %6806 = vmatmul.bf16.gmra.mxu0 %v5370
      %v6807 = vpop.f32.mrf.mxu0
      %v6808 = vadd.f32 0.0, %v6807
      %v6809 = vpop.f32.mrf.mxu0
      %v6810 = vadd.f32 0.0, %v6809
      %6811 = vmatmul.bf16.gmra.mxu0 %v5371
      %v6812 = vpop.f32.mrf.mxu0
      %v6813 = vadd.f32 0.0, %v6812
      %v6814 = vpop.f32.mrf.mxu0
      %v6815 = vadd.f32 0.0, %v6814
      %6816 = vmatmul.bf16.gmra.mxu0 %v5372
      %v6817 = vpop.f32.mrf.mxu0
      %v6818 = vadd.f32 0.0, %v6817
      %v6819 = vpop.f32.mrf.mxu0
      %v6820 = vadd.f32 0.0, %v6819
      %6821 = vmatmul.bf16.gmra.mxu0 %v5373
      %v6822 = vpop.f32.mrf.mxu0
      %v6823 = vadd.f32 0.0, %v6822
      %v6824 = vpop.f32.mrf.mxu0
      %v6825 = vadd.f32 0.0, %v6824
      %6826 = vmatmul.bf16.gmra.mxu0 %v5374
      %v6827 = vpop.f32.mrf.mxu0
      %v6828 = vadd.f32 0.0, %v6827
      %v6829 = vpop.f32.mrf.mxu0
      %v6830 = vadd.f32 0.0, %v6829
      %6831 = vmatmul.bf16.gmra.mxu0 %v5375
      %v6832 = vpop.f32.mrf.mxu0
      %v6833 = vadd.f32 0.0, %v6832
      %v6834 = vpop.f32.mrf.mxu0
      %v6835 = vadd.f32 0.0, %v6834
      %6836 = vmatmul.bf16.gmra.mxu0 %v5376
      %v6837 = vpop.f32.mrf.mxu0
      %v6838 = vadd.f32 0.0, %v6837
      %v6839 = vpop.f32.mrf.mxu0
      %v6840 = vadd.f32 0.0, %v6839
      %6841 = vmatmul.bf16.gmra.mxu0 %v5377
      %v6842 = vpop.f32.mrf.mxu0
      %v6843 = vadd.f32 0.0, %v6842
      %v6844 = vpop.f32.mrf.mxu0
      %v6845 = vadd.f32 0.0, %v6844
      %6846 = vdwg.mxu0
      %6847 = vmatpush.bf16.msra.mxu0 %v6725
      %6848 = vmatpush.bf16.msra.mxu0 %v6724
      %6849 = vmatpush.bf16.msra.mxu0 %v6723
      %6850 = vmatpush.bf16.msra.mxu0 %v6722
      %6851 = vmatpush.bf16.msra.mxu0 %v6721
      %6852 = vmatpush.bf16.msra.mxu0 %v6720
      %6853 = vmatpush.bf16.msra.mxu0 %v6719
      %6854 = vmatpush.bf16.msra.mxu0 %v6718
      %6855 = vmatmul.bf16.gmra.mxu0 %v5444
      %v6856 = vpop.f32.mrf.mxu0
      %v6857 = vadd.f32 %v6768, %v6856
      %v6858 = vpop.f32.mrf.mxu0
      %v6859 = vadd.f32 %v6770, %v6858
      %6860 = vmatmul.bf16.gmra.mxu0 %v5452
      %v6861 = vpop.f32.mrf.mxu0
      %v6862 = vadd.f32 %v6773, %v6861
      %v6863 = vpop.f32.mrf.mxu0
      %v6864 = vadd.f32 %v6775, %v6863
      %6865 = vmatmul.bf16.gmra.mxu0 %v5460
      %v6866 = vpop.f32.mrf.mxu0
      %v6867 = vadd.f32 %v6778, %v6866
      %v6868 = vpop.f32.mrf.mxu0
      %v6869 = vadd.f32 %v6780, %v6868
      %6870 = vmatmul.bf16.gmra.mxu0 %v5468
      %v6871 = vpop.f32.mrf.mxu0
      %v6872 = vadd.f32 %v6783, %v6871
      %v6873 = vpop.f32.mrf.mxu0
      %v6874 = vadd.f32 %v6785, %v6873
      %6875 = vmatmul.bf16.gmra.mxu0 %v5476
      %v6876 = vpop.f32.mrf.mxu0
      %v6877 = vadd.f32 %v6788, %v6876
      %v6878 = vpop.f32.mrf.mxu0
      %v6879 = vadd.f32 %v6790, %v6878
      %6880 = vmatmul.bf16.gmra.mxu0 %v5484
      %v6881 = vpop.f32.mrf.mxu0
      %v6882 = vadd.f32 %v6793, %v6881
      %v6883 = vpop.f32.mrf.mxu0
      %v6884 = vadd.f32 %v6795, %v6883
      %6885 = vmatmul.bf16.gmra.mxu0 %v5492
      %v6886 = vpop.f32.mrf.mxu0
      %v6887 = vadd.f32 %v6798, %v6886
      %v6888 = vpop.f32.mrf.mxu0
      %v6889 = vadd.f32 %v6800, %v6888
      %6890 = vmatmul.bf16.gmra.mxu0 %v5500
      %v6891 = vpop.f32.mrf.mxu0
      %v6892 = vadd.f32 %v6803, %v6891
      %v6893 = vpop.f32.mrf.mxu0
      %v6894 = vadd.f32 %v6805, %v6893
      %6895 = vmatmul.bf16.gmra.mxu0 %v5508
      %v6896 = vpop.f32.mrf.mxu0
      %v6897 = vadd.f32 %v6808, %v6896
      %v6898 = vpop.f32.mrf.mxu0
      %v6899 = vadd.f32 %v6810, %v6898
      %6900 = vmatmul.bf16.gmra.mxu0 %v5516
      %v6901 = vpop.f32.mrf.mxu0
      %v6902 = vadd.f32 %v6813, %v6901
      %v6903 = vpop.f32.mrf.mxu0
      %v6904 = vadd.f32 %v6815, %v6903
      %6905 = vmatmul.bf16.gmra.mxu0 %v5524
      %v6906 = vpop.f32.mrf.mxu0
      %v6907 = vadd.f32 %v6818, %v6906
      %v6908 = vpop.f32.mrf.mxu0
      %v6909 = vadd.f32 %v6820, %v6908
      %6910 = vmatmul.bf16.gmra.mxu0 %v5532
      %v6911 = vpop.f32.mrf.mxu0
      %v6912 = vadd.f32 %v6823, %v6911
      %v6913 = vpop.f32.mrf.mxu0
      %v6914 = vadd.f32 %v6825, %v6913
      %6915 = vmatmul.bf16.gmra.mxu0 %v5540
      %v6916 = vpop.f32.mrf.mxu0
      %v6917 = vadd.f32 %v6828, %v6916
      %v6918 = vpop.f32.mrf.mxu0
      %v6919 = vadd.f32 %v6830, %v6918
      %6920 = vmatmul.bf16.gmra.mxu0 %v5548
      %v6921 = vpop.f32.mrf.mxu0
      %v6922 = vadd.f32 %v6833, %v6921
      %v6923 = vpop.f32.mrf.mxu0
      %v6924 = vadd.f32 %v6835, %v6923
      %6925 = vmatmul.bf16.gmra.mxu0 %v5556
      %v6926 = vpop.f32.mrf.mxu0
      %v6927 = vadd.f32 %v6838, %v6926
      %v6928 = vpop.f32.mrf.mxu0
      %v6929 = vadd.f32 %v6840, %v6928
      %6930 = vmatmul.bf16.gmra.mxu0 %v5564
      %v6931 = vpop.f32.mrf.mxu0
      %v6932 = vadd.f32 %v6843, %v6931
      %v6933 = vpop.f32.mrf.mxu0
      %v6934 = vadd.f32 %v6845, %v6933
      %6935 = vdwg.mxu0
      %6936 = vmatpush.bf16.msra.mxu0 %v6733
      %6937 = vmatpush.bf16.msra.mxu0 %v6732
      %6938 = vmatpush.bf16.msra.mxu0 %v6731
      %6939 = vmatpush.bf16.msra.mxu0 %v6730
      %6940 = vmatpush.bf16.msra.mxu0 %v6729
      %6941 = vmatpush.bf16.msra.mxu0 %v6728
      %6942 = vmatpush.bf16.msra.mxu0 %v6727
      %6943 = vmatpush.bf16.msra.mxu0 %v6726
      %6944 = vmatmul.bf16.gmra.mxu0 %v5595
      %v6945 = vpop.f32.mrf.mxu0
      %v6946 = vadd.f32 %v6857, %v6945
      %v6947 = vpop.f32.mrf.mxu0
      %v6948 = vadd.f32 %v6859, %v6947
      %6949 = vmatmul.bf16.gmra.mxu0 %v5597
      %v6950 = vpop.f32.mrf.mxu0
      %v6951 = vadd.f32 %v6862, %v6950
      %v6952 = vpop.f32.mrf.mxu0
      %v6953 = vadd.f32 %v6864, %v6952
      %6954 = vmatmul.bf16.gmra.mxu0 %v5599
      %v6955 = vpop.f32.mrf.mxu0
      %v6956 = vadd.f32 %v6867, %v6955
      %v6957 = vpop.f32.mrf.mxu0
      %v6958 = vadd.f32 %v6869, %v6957
      %6959 = vmatmul.bf16.gmra.mxu0 %v5601
      %v6960 = vpop.f32.mrf.mxu0
      %v6961 = vadd.f32 %v6872, %v6960
      %v6962 = vpop.f32.mrf.mxu0
      %v6963 = vadd.f32 %v6874, %v6962
      %6964 = vmatmul.bf16.gmra.mxu0 %v5603
      %v6965 = vpop.f32.mrf.mxu0
      %v6966 = vadd.f32 %v6877, %v6965
      %v6967 = vpop.f32.mrf.mxu0
      %v6968 = vadd.f32 %v6879, %v6967
      %6969 = vmatmul.bf16.gmra.mxu0 %v5605
      %v6970 = vpop.f32.mrf.mxu0
      %v6971 = vadd.f32 %v6882, %v6970
      %v6972 = vpop.f32.mrf.mxu0
      %v6973 = vadd.f32 %v6884, %v6972
      %6974 = vmatmul.bf16.gmra.mxu0 %v5607
      %v6975 = vpop.f32.mrf.mxu0
      %v6976 = vadd.f32 %v6887, %v6975
      %v6977 = vpop.f32.mrf.mxu0
      %v6978 = vadd.f32 %v6889, %v6977
      %6979 = vmatmul.bf16.gmra.mxu0 %v5609
      %v6980 = vpop.f32.mrf.mxu0
      %v6981 = vadd.f32 %v6892, %v6980
      %v6982 = vpop.f32.mrf.mxu0
      %v6983 = vadd.f32 %v6894, %v6982
      %6984 = vmatmul.bf16.gmra.mxu0 %v5611
      %v6985 = vpop.f32.mrf.mxu0
      %v6986 = vadd.f32 %v6897, %v6985
      %v6987 = vpop.f32.mrf.mxu0
      %v6988 = vadd.f32 %v6899, %v6987
      %6989 = vmatmul.bf16.gmra.mxu0 %v5613
      %v6990 = vpop.f32.mrf.mxu0
      %v6991 = vadd.f32 %v6902, %v6990
      %v6992 = vpop.f32.mrf.mxu0
      %v6993 = vadd.f32 %v6904, %v6992
      %6994 = vmatmul.bf16.gmra.mxu0 %v5615
      %v6995 = vpop.f32.mrf.mxu0
      %v6996 = vadd.f32 %v6907, %v6995
      %v6997 = vpop.f32.mrf.mxu0
      %v6998 = vadd.f32 %v6909, %v6997
      %6999 = vmatmul.bf16.gmra.mxu0 %v5617
      %v7000 = vpop.f32.mrf.mxu0
      %v7001 = vadd.f32 %v6912, %v7000
      %v7002 = vpop.f32.mrf.mxu0
      %v7003 = vadd.f32 %v6914, %v7002
      %7004 = vmatmul.bf16.gmra.mxu0 %v5619
      %v7005 = vpop.f32.mrf.mxu0
      %v7006 = vadd.f32 %v6917, %v7005
      %v7007 = vpop.f32.mrf.mxu0
      %v7008 = vadd.f32 %v6919, %v7007
      %7009 = vmatmul.bf16.gmra.mxu0 %v5621
      %v7010 = vpop.f32.mrf.mxu0
      %v7011 = vadd.f32 %v6922, %v7010
      %v7012 = vpop.f32.mrf.mxu0
      %v7013 = vadd.f32 %v6924, %v7012
      %7014 = vmatmul.bf16.gmra.mxu0 %v5623
      %v7015 = vpop.f32.mrf.mxu0
      %v7016 = vadd.f32 %v6927, %v7015
      %v7017 = vpop.f32.mrf.mxu0
      %v7018 = vadd.f32 %v6929, %v7017
      %7019 = vmatmul.bf16.gmra.mxu0 %v5625
      %v7020 = vpop.f32.mrf.mxu0
      %v7021 = vadd.f32 %v6932, %v7020
      %v7022 = vpop.f32.mrf.mxu0
      %v7023 = vadd.f32 %v6934, %v7022
      %7024 = vdwg.mxu0
      %v7025 = vadd.f32 %v6486, %v6946
      %v7026 = vadd.f32 %v6488, %v6948
      %v7027 = vadd.f32 %v6491, %v6951
      %v7028 = vadd.f32 %v6493, %v6953
      %v7029 = vadd.f32 %v6496, %v6956
      %v7030 = vadd.f32 %v6498, %v6958
      %v7031 = vadd.f32 %v6501, %v6961
      %v7032 = vadd.f32 %v6503, %v6963
      %v7033 = vadd.f32 %v6506, %v6966
      %v7034 = vadd.f32 %v6508, %v6968
      %v7035 = vadd.f32 %v6511, %v6971
      %v7036 = vadd.f32 %v6513, %v6973
      %v7037 = vadd.f32 %v6516, %v6976
      %v7038 = vadd.f32 %v6518, %v6978
      %v7039 = vadd.f32 %v6521, %v6981
      %v7040 = vadd.f32 %v6523, %v6983
      %v7041 = vadd.f32 %v6526, %v6986
      %v7042 = vadd.f32 %v6528, %v6988
      %v7043 = vadd.f32 %v6531, %v6991
      %v7044 = vadd.f32 %v6533, %v6993
      %v7045 = vadd.f32 %v6536, %v6996
      %v7046 = vadd.f32 %v6538, %v6998
      %v7047 = vadd.f32 %v6541, %v7001
      %v7048 = vadd.f32 %v6543, %v7003
      %v7049 = vadd.f32 %v6546, %v7006
      %v7050 = vadd.f32 %v6548, %v7008
      %v7051 = vadd.f32 %v6551, %v7011
      %v7052 = vadd.f32 %v6553, %v7013
      %v7053 = vadd.f32 %v6556, %v7016
      %v7054 = vadd.f32 %v6558, %v7018
      %v7055 = vadd.f32 %v6561, %v7021
      %v7056 = vadd.f32 %v6563, %v7023
      %v7057 = vld [vmem:[%s7] sm:$0x1]
      %v7059 = vperm.slane %v7057, 0
      %v7061 = vadd.f32 %v7025, %v7059
      %v7062 = vadd.f32 %v7026, %v7059
      %v7063 = vadd.f32 %v7027, %v7059
      %v7064 = vadd.f32 %v7028, %v7059
      %v7065 = vadd.f32 %v7029, %v7059
      %v7066 = vadd.f32 %v7030, %v7059
      %v7067 = vadd.f32 %v7031, %v7059
      %v7068 = vadd.f32 %v7032, %v7059
      %v7069 = vadd.f32 %v7033, %v7059
      %v7070 = vadd.f32 %v7034, %v7059
      %v7071 = vadd.f32 %v7035, %v7059
      %v7072 = vadd.f32 %v7036, %v7059
      %v7073 = vadd.f32 %v7037, %v7059
      %v7074 = vadd.f32 %v7038, %v7059
      %v7075 = vadd.f32 %v7039, %v7059
      %v7076 = vadd.f32 %v7040, %v7059
      %v7077 = vadd.f32 %v7041, %v7059
      %v7078 = vadd.f32 %v7042, %v7059
      %v7079 = vadd.f32 %v7043, %v7059
      %v7080 = vadd.f32 %v7044, %v7059
      %v7081 = vadd.f32 %v7045, %v7059
      %v7082 = vadd.f32 %v7046, %v7059
      %v7083 = vadd.f32 %v7047, %v7059
      %v7084 = vadd.f32 %v7048, %v7059
      %v7085 = vadd.f32 %v7049, %v7059
      %v7086 = vadd.f32 %v7050, %v7059
      %v7087 = vadd.f32 %v7051, %v7059
      %v7088 = vadd.f32 %v7052, %v7059
      %v7089 = vadd.f32 %v7053, %v7059
      %v7090 = vadd.f32 %v7054, %v7059
      %v7091 = vadd.f32 %v7055, %v7059
      %v7092 = vadd.f32 %v7056, %v7059
      %v7093 = vmax.f32 %v7061, 0.0
      %v7094 = vmax.f32 %v7062, 0.0
      %v7095 = vmax.f32 %v7063, 0.0
      %v7096 = vmax.f32 %v7064, 0.0
      %v7097 = vmax.f32 %v7065, 0.0
      %v7098 = vmax.f32 %v7066, 0.0
      %v7099 = vmax.f32 %v7067, 0.0
      %v7100 = vmax.f32 %v7068, 0.0
      %v7101 = vmax.f32 %v7069, 0.0
      %v7102 = vmax.f32 %v7070, 0.0
      %v7103 = vmax.f32 %v7071, 0.0
      %v7104 = vmax.f32 %v7072, 0.0
      %v7105 = vmax.f32 %v7073, 0.0
      %v7106 = vmax.f32 %v7074, 0.0
      %v7107 = vmax.f32 %v7075, 0.0
      %v7108 = vmax.f32 %v7076, 0.0
      %v7109 = vmax.f32 %v7077, 0.0
      %v7110 = vmax.f32 %v7078, 0.0
      %v7111 = vmax.f32 %v7079, 0.0
      %v7112 = vmax.f32 %v7080, 0.0
      %v7113 = vmax.f32 %v7081, 0.0
      %v7114 = vmax.f32 %v7082, 0.0
      %v7115 = vmax.f32 %v7083, 0.0
      %v7116 = vmax.f32 %v7084, 0.0
      %v7117 = vmax.f32 %v7085, 0.0
      %v7118 = vmax.f32 %v7086, 0.0
      %v7119 = vmax.f32 %v7087, 0.0
      %v7120 = vmax.f32 %v7088, 0.0
      %v7121 = vmax.f32 %v7089, 0.0
      %v7122 = vmax.f32 %v7090, 0.0
      %v7123 = vmax.f32 %v7091, 0.0
      %v7124 = vmax.f32 %v7092, 0.0
      %v7125 = vpack.c.bf16 %v7093, %v7093
      %v7126 = vpack.c.bf16 %v7094, %v7094
      %v7127 = vpack.c.bf16 %v7095, %v7095
      %v7128 = vpack.c.bf16 %v7096, %v7096
      %v7129 = vpack.c.bf16 %v7097, %v7097
      %v7130 = vpack.c.bf16 %v7098, %v7098
      %v7131 = vpack.c.bf16 %v7099, %v7099
      %v7132 = vpack.c.bf16 %v7100, %v7100
      %v7133 = vpack.c.bf16 %v7101, %v7101
      %v7134 = vpack.c.bf16 %v7102, %v7102
      %v7135 = vpack.c.bf16 %v7103, %v7103
      %v7136 = vpack.c.bf16 %v7104, %v7104
      %v7137 = vpack.c.bf16 %v7105, %v7105
      %v7138 = vpack.c.bf16 %v7106, %v7106
      %v7139 = vpack.c.bf16 %v7107, %v7107
      %v7140 = vpack.c.bf16 %v7108, %v7108
      %v7141 = vpack.c.bf16 %v7109, %v7109
      %v7142 = vpack.c.bf16 %v7110, %v7110
      %v7143 = vpack.c.bf16 %v7111, %v7111
      %v7144 = vpack.c.bf16 %v7112, %v7112
      %v7145 = vpack.c.bf16 %v7113, %v7113
      %v7146 = vpack.c.bf16 %v7114, %v7114
      %v7147 = vpack.c.bf16 %v7115, %v7115
      %v7148 = vpack.c.bf16 %v7116, %v7116
      %v7149 = vpack.c.bf16 %v7117, %v7117
      %v7150 = vpack.c.bf16 %v7118, %v7118
      %v7151 = vpack.c.bf16 %v7119, %v7119
      %v7152 = vpack.c.bf16 %v7120, %v7120
      %v7153 = vpack.c.bf16 %v7121, %v7121
      %v7154 = vpack.c.bf16 %v7122, %v7122
      %v7155 = vpack.c.bf16 %v7123, %v7123
      %v7156 = vpack.c.bf16 %v7124, %v7124
      %7157 = vst [vmem:[%s393] sm:$0xf] %v7125
      %7158 = vst [vmem:[%s393 + $0x4] sm:$0xf] %v7126
      %7159 = vst [vmem:[%s393 + $0x8] sm:$0xf] %v7127
      %7160 = vst [vmem:[%s393 + $0xc] sm:$0xf] %v7128
      %7161 = vst [vmem:[%s393 + $0x10] sm:$0xf] %v7129
      %7162 = vst [vmem:[%s393 + $0x14] sm:$0xf] %v7130
      %7163 = vst [vmem:[%s393 + $0x18] sm:$0xf] %v7131
      %7164 = vst [vmem:[%s393 + $0x1c] sm:$0xf] %v7132
      %7165 = vst [vmem:[%s393 + $0x20] sm:$0xf] %v7133
      %7166 = vst [vmem:[%s393 + $0x24] sm:$0xf] %v7134
      %7167 = vst [vmem:[%s393 + $0x28] sm:$0xf] %v7135
      %7168 = vst [vmem:[%s393 + $0x2c] sm:$0xf] %v7136
      %7169 = vst [vmem:[%s393 + $0x30] sm:$0xf] %v7137
      %7170 = vst [vmem:[%s393 + $0x34] sm:$0xf] %v7138
      %7171 = vst [vmem:[%s393 + $0x38] sm:$0xf] %v7139
      %7172 = vst [vmem:[%s393 + $0x3c] sm:$0xf] %v7140
      %7173 = vst [vmem:[%s393 + $0x40] sm:$0xf] %v7141
      %7174 = vst [vmem:[%s393 + $0x44] sm:$0xf] %v7142
      %7175 = vst [vmem:[%s393 + $0x48] sm:$0xf] %v7143
      %7176 = vst [vmem:[%s393 + $0x4c] sm:$0xf] %v7144
      %7177 = vst [vmem:[%s393 + $0x50] sm:$0xf] %v7145
      %7178 = vst [vmem:[%s393 + $0x54] sm:$0xf] %v7146
      %7179 = vst [vmem:[%s393 + $0x58] sm:$0xf] %v7147
      %7180 = vst [vmem:[%s393 + $0x5c] sm:$0xf] %v7148
      %7181 = vst [vmem:[%s393 + $0x60] sm:$0xf] %v7149
      %7182 = vst [vmem:[%s393 + $0x64] sm:$0xf] %v7150
      %7183 = vst [vmem:[%s393 + $0x68] sm:$0xf] %v7151
      %7184 = vst [vmem:[%s393 + $0x6c] sm:$0xf] %v7152
      %7185 = vst [vmem:[%s393 + $0x70] sm:$0xf] %v7153
      %7186 = vst [vmem:[%s393 + $0x74] sm:$0xf] %v7154
      %7187 = vst [vmem:[%s393 + $0x78] sm:$0xf] %v7155
      %7188 = vst [vmem:[%s393 + $0x7c] sm:$0xf] %v7156
      %s7189 = smul.u32 %s23, 2
      %s7190 = sadd.s32 %s7189, %s24
      %p7191 = scmp.lt.s32.totalorder %s7190, 3
      %s7192 = scalar_select %p7191, %s7190, 3
      %s7193 = smul.addr %s7192, 32
      %s7194 = smul.addr %s7193, 4
      %s7195 = scalar_lea.vmem %s8, %s7194
      // Predicated region
      $region53: #{unet_up_forward.1} parent=51 // pred_check
        %p7196 = pneg %p244
      $region54: #{unet_up_forward.1} parent=51 // pred_check_branch
        %7198 = sbr.rel (%p7196) target = $region56
      $region55: #{unet_up_forward.1} parent=51 // pred_region
        %s7199 = smul.u32 %s23, 2
        %s7200 = sadd.s32 %s7199, %s24
      $region56: #{unet_up_forward.1} parent=51 // pred_fallthru
        _
    $region52: #{unet_up_forward.1} parent=5 // pred_fallthru
      _
    %p7201 = scmp.le.s32.totalorder 2, %s14
    // Predicated region
    $region57: #{unet_up_forward.1} parent=5 // pred_check
      %p7202 = pneg %p7201
    $region58: #{unet_up_forward.1} parent=5 // pred_check_branch
      %7204 = sbr.rel (%p7202) target = $region60
    $region59: #{unet_up_forward.1} parent=5 // pred_region
      %s7205 = ssub.s32 %s14, 2
      // Predicated region
      $region61: #{unet_up_forward.1} parent=59 // pred_check
        %p7206 = pneg %p250
      $region62: #{unet_up_forward.1} parent=59 // pred_check_branch
        %7208 = sbr.rel (%p7206) target = $region64
      $region63: #{unet_up_forward.1} parent=59 // pred_region
        %s7209 = smul.u32 %s25, 2
        %s7210 = sadd.s32 %s7209, %s26
        %p7211 = scmp.lt.s32.totalorder %s7210, 3
        %s7212 = scalar_select %p7211, %s7210, 3
        %s7213 = smul.addr %s7212, 32
        %s7214 = smul.addr %s7213, 4
        %s7215 = scalar_lea.vmem %s8, %s7214
      $region64: #{unet_up_forward.1} parent=59 // pred_fallthru
        _
    $region60: #{unet_up_forward.1} parent=5 // pred_fallthru
      _
  $region6: #{unet_up_forward.1} parent=0 // loop_footer
    %s18 = sadd.s32 1, %s14
  $region7: #{unet_up_forward.1} parent=0 // loop_footer_branch
    %13 = sbr.rel target = $region3
  $region8: #{unet_up_forward.1} parent=0 // loop_exit
    _

</llo_original>
